<compile_context>
chip_gen: v6e
topology: v6e:2x2x1
jax: 0.10.0
libtpu: 0.0.40
codegen_flags: <defaults>
</compile_context>

<pallas_src>
import functools

import jax
import jax.numpy as jnp
from jax.experimental import pallas as pl
from jax.experimental.pallas import tpu as pltpu


def _round_up(x, m):
    return (x + m - 1) // m * m


# --------------------------------------------------------------------------- #
# Fused kernel: all GRU layers + MLP head in a single grid-less pallas_call    #
# --------------------------------------------------------------------------- #
def _make_fused_kernel(T, B, B_pad, H_pad, num_layers):
    """kernel(perm, x, [wihT, whhT, bih, bhn] * L, w1T, b1, w2T, b2, out, hseq)."""

    def kernel(*refs):
        idx = 0
        perm_ref = refs[idx]; idx += 1          # (T*B_pad, B*T) permutation
        x_ref = refs[idx]; idx += 1             # (B, T, D) batch-first input
        layers = []
        for _ in range(num_layers):
            layers.append(refs[idx:idx + 4]); idx += 4
        w1_ref, b1_ref, w2_ref, b2_ref = refs[idx:idx + 4]; idx += 4
        out_ref = refs[idx]; idx += 1           # (B, S)
        hseq_ref = refs[idx]                    # VMEM scratch (T, B_pad, H_pad)

        def mm(a, w):                           # (M,K)@(K,N) on MXU, f32 acc
            return jnp.dot(a, w, preferred_element_type=jnp.float32)

        # ---- time-major rearrangement + batch zero-padding on the MXU ------- #
        # seq_in[t*B_pad + b] = x[b, t, :]  (rows with b >= B are zero).
        D = x_ref.shape[-1]
        x_flat = x_ref[...].astype(jnp.float32).reshape(B * T, D)   # free reshape
        seq_in = mm(perm_ref[...], x_flat)                          # (T*B_pad, D)

        h_last = []
        for l, (wih_ref, whh_ref, bih_ref, bhn_ref) in enumerate(layers):
            last_layer = l == num_layers - 1
            # One big, hoisted input projection for all T steps.  Gate order
            # [r, z, n]; r/z recurrent biases were pre-folded into bih.
            gi = mm(seq_in, wih_ref[...]) + bih_ref[...]     # (T*B_pad, 3*H_pad)
            gi = gi.reshape(T, B_pad, 3 * H_pad)             # tile-aligned reshape
            whh = whh_ref[...]                               # (H_pad, 3*H_pad)
            bhn = jnp.broadcast_to(bhn_ref[...], (B_pad, H_pad))   # hoisted once

            h = jnp.zeros((B_pad, H_pad), jnp.float32)       # torch h_0 = 0
            # TODO(synk): switch to lax.fori_loop(..., unroll=True) if T > ~16.
            for t in range(T):                               # static unroll, T=8
                gi_t = gi[t]                                 # (B_pad, 3*H_pad)
                gh = mm(h, whh)                              # fused 3-gate matmul
                r = jax.nn.sigmoid(gi_t[:, 0:H_pad] + gh[:, 0:H_pad])
                z = jax.nn.sigmoid(gi_t[:, H_pad:2 * H_pad] + gh[:, H_pad:2 * H_pad])
                n = jnp.tanh(gi_t[:, 2 * H_pad:3 * H_pad]
                             + r * (gh[:, 2 * H_pad:3 * H_pad] + bhn))
                h = (1.0 - z) * n + z * h
                if not last_layer:
                    hseq_ref[t] = h                          # aligned full-tile store
            h_last.append(h)                                 # final hidden (B_pad, H_pad)
            if not last_layer:
                seq_in = hseq_ref[...].reshape(T * B_pad, H_pad)

        # ---- MLP head: linear1 -> relu -> dropout(identity) -> linear2 ------ #
        # No lane-axis concatenation: accumulate per-layer row blocks of W1^T.
        z1 = mm(h_last[0], w1_ref[0:H_pad, :])
        for l in range(1, num_layers):
            z1 = z1 + mm(h_last[l], w1_ref[l * H_pad:(l + 1) * H_pad, :])
        z1 = jnp.maximum(z1 + b1_ref[...], 0.0)
        # TODO(synk): dropout implemented as identity (inference / eval mode).
        out = mm(z1, w2_ref[...]) + b2_ref[...]              # (B_pad, S)
        out_ref[...] = out[:B, :].astype(out_ref.dtype)

    return kernel


# --------------------------------------------------------------------------- #
# Host-side weight prep (constant-folded by XLA when params are closed over)  #
# --------------------------------------------------------------------------- #
def _pad_to(a, shape):
    return jnp.pad(a, [(0, s - d) for d, s in zip(a.shape, shape)])


def _pack_gates_w(w3, h_pad):
    """(3, H, K) torch gate weights -> (K, 3*h_pad); gate g in cols [g*h_pad, g*h_pad+H)."""
    k = w3.shape[-1]
    return jnp.concatenate([_pad_to(w3[g].T, (k, h_pad)) for g in range(3)], axis=1)


def _pack_gates_b(b3, h_pad):
    """(3, 1, H) -> (1, 3*h_pad)."""
    return jnp.concatenate([_pad_to(b3[g], (1, h_pad)) for g in range(3)], axis=1)


# --------------------------------------------------------------------------- #
# Full module forward                                                          #
# --------------------------------------------------------------------------- #
def gru_module_forward(x, params):
    """x: (B, T, num_sensors) batch-first -- matches the PyTorch module."""
    B, T, D = x.shape
    layers = params["gru_layers"]
    num_layers = len(layers)
    H = layers[0][1].shape[-1]
    S = params["w2"].shape[0]

    B_pad = _round_up(max(B, 1), 8)        # sublane tile
    H_pad = _round_up(H, 128)              # lane tile -> gate boundaries on tile edges
    f32 = jnp.float32

    # Permutation turning batch-major rows (b*T + t) into zero-padded
    # time-major rows (t*B_pad + b); applied as a single MXU op in-kernel.
    bt = jnp.arange(B * T)
    rows = (bt % T) * B_pad + (bt // T)
    perm = jnp.zeros((T * B_pad, B * T), f32).at[rows, bt].set(1.0)

    # Weights pre-transposed to MXU-native (K, N) layout, gates [r, z, n]
    # fused along N, zero-padded so every gate owns whole (8, 128) tiles.
    flat_weights = []
    for l, (w_ih, w_hh, b_ih, b_hh) in enumerate(layers):
        k_in = w_ih.shape[-1]
        k_pad = k_in if l == 0 else H_pad
        wihT = _pad_to(_pack_gates_w(w_ih, H_pad), (k_pad, 3 * H_pad))
        whhT = _pad_to(_pack_gates_w(w_hh, H_pad), (H_pad, 3 * H_pad))
        # Fold recurrent r/z biases into the hoisted input-projection bias;
        # the n-gate recurrent bias must stay inside r * (W_hn h + b_hn).
        b_comb = jnp.stack([b_ih[0] + b_hh[0], b_ih[1] + b_hh[1], b_ih[2]], axis=0)
        bih = _pack_gates_b(b_comb, H_pad)               # (1, 3*H_pad)
        bhn = _pad_to(b_hh[2], (1, H_pad))               # (1, H_pad)
        flat_weights += [wihT.astype(f32), whhT.astype(f32),
                         bih.astype(f32), bhn.astype(f32)]

    w1 = params["w1"]                                    # (H, L*H)
    w1T = jnp.concatenate(
        [_pad_to(w1[:, l * H:(l + 1) * H].T, (H_pad, H_pad)) for l in range(num_layers)],
        axis=0)                                          # (L*H_pad, H_pad)
    b1 = _pad_to(params["b1"].reshape(1, H), (1, H_pad))
    w2T = _pad_to(params["w2"].T, (H_pad, S))            # (H_pad, S)
    b2 = params["b2"].reshape(1, S)
    flat_weights += [w1T.astype(f32), b1.astype(f32), w2T.astype(f32), b2.astype(f32)]

    n_inputs = 2 + len(flat_weights)
    # TODO(synk): on v7x, add a ("parallel",) batch grid axis once B is large
    # enough to split across the two TensorCores; grid-less is best at B=2.
    return pl.pallas_call(
        _make_fused_kernel(T, B, B_pad, H_pad, num_layers),
        out_shape=jax.ShapeDtypeStruct((B, S), x.dtype),
        in_specs=[pl.BlockSpec(memory_space=pltpu.MemorySpace.VMEM)
                  for _ in range(n_inputs)],
        out_specs=pl.BlockSpec(memory_space=pltpu.MemorySpace.VMEM),
        scratch_shapes=[pltpu.VMEM((T, B_pad, H_pad), f32)],
    )(perm, x, *flat_weights)


# --------------------------------------------------------------------------- #
# Pure-JAX reference (for correctness check)                                   #
# --------------------------------------------------------------------------- #
def gru_module_reference(x, params):
    B = x.shape[0]
    xs = jnp.transpose(x, (1, 0, 2))                       # (T, B, D)
    T = xs.shape[0]
    hs = [jnp.zeros((B, w_hh.shape[-1]), jnp.float32)
          for (_, w_hh, _, _) in params["gru_layers"]]
    for t in range(T):
        inp = xs[t]
        for l, (w_ih, w_hh, b_ih, b_hh) in enumerate(params["gru_layers"]):
            h = hs[l]
            gi = jnp.einsum("bd,ghd->gbh", inp, w_ih) + b_ih
            gh = jnp.einsum("bh,gkh->gbk", h, w_hh) + b_hh
            r = jax.nn.sigmoid(gi[0] + gh[0])
            z = jax.nn.sigmoid(gi[1] + gh[1])
            n = jnp.tanh(gi[2] + r * gh[2])
            h = (1.0 - z) * n + z * h
            hs[l] = h
            inp = h
    hcat = jnp.concatenate(hs, axis=-1)
    z1 = jnp.maximum(hcat @ params["w1"].T + params["b1"], 0.0)
    return z1 @ params["w2"].T + params["b2"]


# --------------------------------------------------------------------------- #
# Deterministic parameter init (shapes per torch.nn.GRU / nn.Linear)           #
# --------------------------------------------------------------------------- #
def init_params(key, num_sensors, num_states, hidden_dim, num_layers):
    bound = 1.0 / float(hidden_dim) ** 0.5
    layers = []
    for layer in range(num_layers):
        d_in = num_sensors if layer == 0 else hidden_dim
        key, k1, k2, k3, k4 = jax.random.split(key, 5)
        w_ih = jax.random.uniform(k1, (3, hidden_dim, d_in),
                                  minval=-bound, maxval=bound, dtype=jnp.float32)
        w_hh = jax.random.uniform(k2, (3, hidden_dim, hidden_dim),
                                  minval=-bound, maxval=bound, dtype=jnp.float32)
        b_ih = jax.random.uniform(k3, (3, 1, hidden_dim),
                                  minval=-bound, maxval=bound, dtype=jnp.float32)
        b_hh = jax.random.uniform(k4, (3, 1, hidden_dim),
                                  minval=-bound, maxval=bound, dtype=jnp.float32)
        layers.append((w_ih, w_hh, b_ih, b_hh))

    f_in1 = hidden_dim * num_layers
    key, k1, k2, k3, k4 = jax.random.split(key, 5)
    b1s = 1.0 / float(f_in1) ** 0.5
    b2s = 1.0 / float(hidden_dim) ** 0.5
    return {
        "gru_layers": layers,
        "w1": jax.random.uniform(k1, (hidden_dim, f_in1),
                                 minval=-b1s, maxval=b1s, dtype=jnp.float32),
        "b1": jax.random.uniform(k2, (hidden_dim,),
                                 minval=-b1s, maxval=b1s, dtype=jnp.float32),
        "w2": jax.random.uniform(k3, (num_states, hidden_dim),
                                 minval=-b2s, maxval=b2s, dtype=jnp.float32),
        "b2": jax.random.uniform(k4, (num_states,),
                                 minval=-b2s, maxval=b2s, dtype=jnp.float32),
    }


if __name__ == "__main__":
    num_sensors, num_states, hidden_dim, num_layers = 4, 5, 32, 2
    batch, seq = 2, 8

    key = jax.random.PRNGKey(0)
    key, xkey = jax.random.split(key)
    x = jax.random.normal(xkey, (batch, seq, num_sensors), dtype=jnp.float32)
    params = init_params(key, num_sensors, num_states, hidden_dim, num_layers)

    fwd = jax.jit(functools.partial(gru_module_forward, params=params))
    out = fwd(x)
    jax.block_until_ready(out)

    assert out.shape == (batch, num_states), out.shape
    assert out.dtype == jnp.float32

    ref = gru_module_reference(x, params)
    assert jnp.allclose(out, ref, atol=1e-5, rtol=1e-5), (out, ref)

    print("KERNEL_OK")
</pallas_src>

<mosaic_0001>
module attributes {stable_mosaic.version = 11 : i64} {
  func.func @kernel(%arg0: memref<64x16xf32, #tpu.memory_space<vmem>>, %arg1: memref<2x8x4xf32, #tpu.memory_space<vmem>>, %arg2: memref<4x384xf32, #tpu.memory_space<vmem>>, %arg3: memref<128x384xf32, #tpu.memory_space<vmem>>, %arg4: memref<1x384xf32, #tpu.memory_space<vmem>>, %arg5: memref<1x128xf32, #tpu.memory_space<vmem>>, %arg6: memref<128x384xf32, #tpu.memory_space<vmem>>, %arg7: memref<128x384xf32, #tpu.memory_space<vmem>>, %arg8: memref<1x384xf32, #tpu.memory_space<vmem>>, %arg9: memref<1x128xf32, #tpu.memory_space<vmem>>, %arg10: memref<256x128xf32, #tpu.memory_space<vmem>>, %arg11: memref<1x128xf32, #tpu.memory_space<vmem>>, %arg12: memref<128x5xf32, #tpu.memory_space<vmem>>, %arg13: memref<1x5xf32, #tpu.memory_space<vmem>>, %arg14: memref<2x5xf32, #tpu.memory_space<vmem>>, %arg15: memref<8x8x128xf32, #tpu.memory_space<vmem>>) attributes {dimension_semantics = [], scalar_prefetch = 0 : i64, scratch_operands = 1 : i64, tpu.core_type = #tpu.core_type<tc>} {
    %c0 = arith.constant 0 : index
    %c0_0 = arith.constant 0 : index
    %c0_1 = arith.constant 0 : index
    %0 = vector.load %arg1[%c0, %c0_0, %c0_1] : memref<2x8x4xf32, #tpu.memory_space<vmem>>, vector<2x8x4xf32>
    %1 = vector.shape_cast %0 : vector<2x8x4xf32> to vector<16x4xf32>
    %c0_2 = arith.constant 0 : index
    %c0_3 = arith.constant 0 : index
    %2 = vector.load %arg0[%c0_2, %c0_3] : memref<64x16xf32, #tpu.memory_space<vmem>>, vector<64x16xf32>
    %cst = arith.constant dense<0.000000e+00> : vector<64x4xf32>
    %3 = tpu.matmul %2, %1, %cst {dimension_numbers = #tpu.dot_dimension_numbers<[1], [0], [0], [1], [0, 0, 1, 1], [], []>} : vector<64x16xf32>, vector<16x4xf32>, vector<64x4xf32> -> vector<64x4xf32>
    %c0_4 = arith.constant 0 : index
    %c0_5 = arith.constant 0 : index
    %4 = vector.load %arg2[%c0_4, %c0_5] : memref<4x384xf32, #tpu.memory_space<vmem>>, vector<4x384xf32>
    %cst_6 = arith.constant dense<0.000000e+00> : vector<64x384xf32>
    %5 = tpu.matmul %3, %4, %cst_6 {dimension_numbers = #tpu.dot_dimension_numbers<[1], [0], [0], [1], [0, 0, 1, 1], [], []>} : vector<64x4xf32>, vector<4x384xf32>, vector<64x384xf32> -> vector<64x384xf32>
    %c0_7 = arith.constant 0 : index
    %c0_8 = arith.constant 0 : index
    %6 = vector.load %arg4[%c0_7, %c0_8] : memref<1x384xf32, #tpu.memory_space<vmem>>, vector<1x384xf32>
    %7 = vector.broadcast %6 : vector<1x384xf32> to vector<64x384xf32>
    %8 = arith.addf %5, %7 : vector<64x384xf32>
    %9 = vector.shape_cast %8 : vector<64x384xf32> to vector<8x8x384xf32>
    %c0_9 = arith.constant 0 : index
    %c0_10 = arith.constant 0 : index
    %10 = vector.load %arg3[%c0_9, %c0_10] : memref<128x384xf32, #tpu.memory_space<vmem>>, vector<128x384xf32>
    %c0_11 = arith.constant 0 : index
    %c0_12 = arith.constant 0 : index
    %11 = vector.load %arg5[%c0_11, %c0_12] : memref<1x128xf32, #tpu.memory_space<vmem>>, vector<1x128xf32>
    %12 = vector.shape_cast %11 : vector<1x128xf32> to vector<1x128xf32>
    %13 = vector.broadcast %12 : vector<1x128xf32> to vector<8x128xf32>
    %cst_13 = arith.constant 0.000000e+00 : f32
    %14 = vector.broadcast %cst_13 : f32 to vector<8x128xf32>
    %15 = vector.extract_strided_slice %9 {offsets = [0, 0, 0], sizes = [1, 8, 384], strides = [1, 1, 1]} : vector<8x8x384xf32> to vector<1x8x384xf32>
    %16 = vector.shape_cast %15 : vector<1x8x384xf32> to vector<8x384xf32>
    %cst_14 = arith.constant dense<0.000000e+00> : vector<8x384xf32>
    %17 = tpu.matmul %14, %10, %cst_14 {dimension_numbers = #tpu.dot_dimension_numbers<[1], [0], [0], [1], [0, 0, 1, 1], [], []>} : vector<8x128xf32>, vector<128x384xf32>, vector<8x384xf32> -> vector<8x384xf32>
    %18 = vector.extract_strided_slice %16 {offsets = [0, 0], sizes = [8, 128], strides = [1, 1]} : vector<8x384xf32> to vector<8x128xf32>
    %19 = vector.extract_strided_slice %17 {offsets = [0, 0], sizes = [8, 128], strides = [1, 1]} : vector<8x384xf32> to vector<8x128xf32>
    %20 = arith.addf %18, %19 : vector<8x128xf32>
    %21 = arith.negf %20 : vector<8x128xf32>
    %22 = math.exp %21 : vector<8x128xf32>
    %cst_15 = arith.constant 1.000000e+00 : f32
    %23 = vector.broadcast %cst_15 : f32 to vector<8x128xf32>
    %24 = arith.addf %23, %22 : vector<8x128xf32>
    %25 = arith.divf %23, %24 : vector<8x128xf32>
    %26 = vector.extract_strided_slice %16 {offsets = [0, 128], sizes = [8, 128], strides = [1, 1]} : vector<8x384xf32> to vector<8x128xf32>
    %27 = vector.extract_strided_slice %17 {offsets = [0, 128], sizes = [8, 128], strides = [1, 1]} : vector<8x384xf32> to vector<8x128xf32>
    %28 = arith.addf %26, %27 : vector<8x128xf32>
    %29 = arith.negf %28 : vector<8x128xf32>
    %30 = math.exp %29 : vector<8x128xf32>
    %cst_16 = arith.constant 1.000000e+00 : f32
    %31 = vector.broadcast %cst_16 : f32 to vector<8x128xf32>
    %32 = arith.addf %31, %30 : vector<8x128xf32>
    %33 = arith.divf %31, %32 : vector<8x128xf32>
    %34 = vector.extract_strided_slice %16 {offsets = [0, 256], sizes = [8, 128], strides = [1, 1]} : vector<8x384xf32> to vector<8x128xf32>
    %35 = vector.extract_strided_slice %17 {offsets = [0, 256], sizes = [8, 128], strides = [1, 1]} : vector<8x384xf32> to vector<8x128xf32>
    %36 = arith.addf %35, %13 : vector<8x128xf32>
    %37 = arith.mulf %25, %36 : vector<8x128xf32>
    %38 = arith.addf %34, %37 : vector<8x128xf32>
    %39 = math.tanh %38 : vector<8x128xf32>
    %cst_17 = arith.constant 1.000000e+00 : f32
    %40 = vector.broadcast %cst_17 : f32 to vector<8x128xf32>
    %41 = arith.subf %40, %33 : vector<8x128xf32>
    %42 = arith.mulf %41, %39 : vector<8x128xf32>
    %43 = arith.mulf %33, %14 : vector<8x128xf32>
    %44 = arith.addf %42, %43 : vector<8x128xf32>
    %c0_18 = arith.constant 0 : index
    %c0_19 = arith.constant 0 : index
    %c0_20 = arith.constant 0 : index
    %45 = vector.load %arg15[%c0_18, %c0_19, %c0_20] : memref<8x8x128xf32, #tpu.memory_space<vmem>>, vector<1x8x128xf32>
    %46 = vector.shape_cast %45 : vector<1x8x128xf32> to vector<8x128xf32>
    %47 = vector.shape_cast %44 : vector<8x128xf32> to vector<1x8x128xf32>
    tpu.vector_store %arg15[%c0_18, %c0_19, %c0_20], %47 {strides = array<i32>} : memref<8x8x128xf32, #tpu.memory_space<vmem>>, vector<1x8x128xf32>,
    %48 = vector.extract_strided_slice %9 {offsets = [1, 0, 0], sizes = [1, 8, 384], strides = [1, 1, 1]} : vector<8x8x384xf32> to vector<1x8x384xf32>
    %49 = vector.shape_cast %48 : vector<1x8x384xf32> to vector<8x384xf32>
    %cst_21 = arith.constant dense<0.000000e+00> : vector<8x384xf32>
    %50 = tpu.matmul %44, %10, %cst_21 {dimension_numbers = #tpu.dot_dimension_numbers<[1], [0], [0], [1], [0, 0, 1, 1], [], []>} : vector<8x128xf32>, vector<128x384xf32>, vector<8x384xf32> -> vector<8x384xf32>
    %51 = vector.extract_strided_slice %49 {offsets = [0, 0], sizes = [8, 128], strides = [1, 1]} : vector<8x384xf32> to vector<8x128xf32>
    %52 = vector.extract_strided_slice %50 {offsets = [0, 0], sizes = [8, 128], strides = [1, 1]} : vector<8x384xf32> to vector<8x128xf32>
    %53 = arith.addf %51, %52 : vector<8x128xf32>
    %54 = arith.negf %53 : vector<8x128xf32>
    %55 = math.exp %54 : vector<8x128xf32>
    %cst_22 = arith.constant 1.000000e+00 : f32
    %56 = vector.broadcast %cst_22 : f32 to vector<8x128xf32>
    %57 = arith.addf %56, %55 : vector<8x128xf32>
    %58 = arith.divf %56, %57 : vector<8x128xf32>
    %59 = vector.extract_strided_slice %49 {offsets = [0, 128], sizes = [8, 128], strides = [1, 1]} : vector<8x384xf32> to vector<8x128xf32>
    %60 = vector.extract_strided_slice %50 {offsets = [0, 128], sizes = [8, 128], strides = [1, 1]} : vector<8x384xf32> to vector<8x128xf32>
    %61 = arith.addf %59, %60 : vector<8x128xf32>
    %62 = arith.negf %61 : vector<8x128xf32>
    %63 = math.exp %62 : vector<8x128xf32>
    %cst_23 = arith.constant 1.000000e+00 : f32
    %64 = vector.broadcast %cst_23 : f32 to vector<8x128xf32>
    %65 = arith.addf %64, %63 : vector<8x128xf32>
    %66 = arith.divf %64, %65 : vector<8x128xf32>
    %67 = vector.extract_strided_slice %49 {offsets = [0, 256], sizes = [8, 128], strides = [1, 1]} : vector<8x384xf32> to vector<8x128xf32>
    %68 = vector.extract_strided_slice %50 {offsets = [0, 256], sizes = [8, 128], strides = [1, 1]} : vector<8x384xf32> to vector<8x128xf32>
    %69 = arith.addf %68, %13 : vector<8x128xf32>
    %70 = arith.mulf %58, %69 : vector<8x128xf32>
    %71 = arith.addf %67, %70 : vector<8x128xf32>
    %72 = math.tanh %71 : vector<8x128xf32>
    %cst_24 = arith.constant 1.000000e+00 : f32
    %73 = vector.broadcast %cst_24 : f32 to vector<8x128xf32>
    %74 = arith.subf %73, %66 : vector<8x128xf32>
    %75 = arith.mulf %74, %72 : vector<8x128xf32>
    %76 = arith.mulf %66, %44 : vector<8x128xf32>
    %77 = arith.addf %75, %76 : vector<8x128xf32>
    %c1 = arith.constant 1 : index
    %c0_25 = arith.constant 0 : index
    %c0_26 = arith.constant 0 : index
    %78 = vector.load %arg15[%c1, %c0_25, %c0_26] : memref<8x8x128xf32, #tpu.memory_space<vmem>>, vector<1x8x128xf32>
    %79 = vector.shape_cast %78 : vector<1x8x128xf32> to vector<8x128xf32>
    %80 = vector.shape_cast %77 : vector<8x128xf32> to vector<1x8x128xf32>
    tpu.vector_store %arg15[%c1, %c0_25, %c0_26], %80 {strides = array<i32>} : memref<8x8x128xf32, #tpu.memory_space<vmem>>, vector<1x8x128xf32>,
    %81 = vector.extract_strided_slice %9 {offsets = [2, 0, 0], sizes = [1, 8, 384], strides = [1, 1, 1]} : vector<8x8x384xf32> to vector<1x8x384xf32>
    %82 = vector.shape_cast %81 : vector<1x8x384xf32> to vector<8x384xf32>
    %cst_27 = arith.constant dense<0.000000e+00> : vector<8x384xf32>
    %83 = tpu.matmul %77, %10, %cst_27 {dimension_numbers = #tpu.dot_dimension_numbers<[1], [0], [0], [1], [0, 0, 1, 1], [], []>} : vector<8x128xf32>, vector<128x384xf32>, vector<8x384xf32> -> vector<8x384xf32>
    %84 = vector.extract_strided_slice %82 {offsets = [0, 0], sizes = [8, 128], strides = [1, 1]} : vector<8x384xf32> to vector<8x128xf32>
    %85 = vector.extract_strided_slice %83 {offsets = [0, 0], sizes = [8, 128], strides = [1, 1]} : vector<8x384xf32> to vector<8x128xf32>
    %86 = arith.addf %84, %85 : vector<8x128xf32>
    %87 = arith.negf %86 : vector<8x128xf32>
    %88 = math.exp %87 : vector<8x128xf32>
    %cst_28 = arith.constant 1.000000e+00 : f32
    %89 = vector.broadcast %cst_28 : f32 to vector<8x128xf32>
    %90 = arith.addf %89, %88 : vector<8x128xf32>
    %91 = arith.divf %89, %90 : vector<8x128xf32>
    %92 = vector.extract_strided_slice %82 {offsets = [0, 128], sizes = [8, 128], strides = [1, 1]} : vector<8x384xf32> to vector<8x128xf32>
    %93 = vector.extract_strided_slice %83 {offsets = [0, 128], sizes = [8, 128], strides = [1, 1]} : vector<8x384xf32> to vector<8x128xf32>
    %94 = arith.addf %92, %93 : vector<8x128xf32>
    %95 = arith.negf %94 : vector<8x128xf32>
    %96 = math.exp %95 : vector<8x128xf32>
    %cst_29 = arith.constant 1.000000e+00 : f32
    %97 = vector.broadcast %cst_29 : f32 to vector<8x128xf32>
    %98 = arith.addf %97, %96 : vector<8x128xf32>
    %99 = arith.divf %97, %98 : vector<8x128xf32>
    %100 = vector.extract_strided_slice %82 {offsets = [0, 256], sizes = [8, 128], strides = [1, 1]} : vector<8x384xf32> to vector<8x128xf32>
    %101 = vector.extract_strided_slice %83 {offsets = [0, 256], sizes = [8, 128], strides = [1, 1]} : vector<8x384xf32> to vector<8x128xf32>
    %102 = arith.addf %101, %13 : vector<8x128xf32>
    %103 = arith.mulf %91, %102 : vector<8x128xf32>
    %104 = arith.addf %100, %103 : vector<8x128xf32>
    %105 = math.tanh %104 : vector<8x128xf32>
    %cst_30 = arith.constant 1.000000e+00 : f32
    %106 = vector.broadcast %cst_30 : f32 to vector<8x128xf32>
    %107 = arith.subf %106, %99 : vector<8x128xf32>
    %108 = arith.mulf %107, %105 : vector<8x128xf32>
    %109 = arith.mulf %99, %77 : vector<8x128xf32>
    %110 = arith.addf %108, %109 : vector<8x128xf32>
    %c2 = arith.constant 2 : index
    %c0_31 = arith.constant 0 : index
    %c0_32 = arith.constant 0 : index
    %111 = vector.load %arg15[%c2, %c0_31, %c0_32] : memref<8x8x128xf32, #tpu.memory_space<vmem>>, vector<1x8x128xf32>
    %112 = vector.shape_cast %111 : vector<1x8x128xf32> to vector<8x128xf32>
    %113 = vector.shape_cast %110 : vector<8x128xf32> to vector<1x8x128xf32>
    tpu.vector_store %arg15[%c2, %c0_31, %c0_32], %113 {strides = array<i32>} : memref<8x8x128xf32, #tpu.memory_space<vmem>>, vector<1x8x128xf32>,
    %114 = vector.extract_strided_slice %9 {offsets = [3, 0, 0], sizes = [1, 8, 384], strides = [1, 1, 1]} : vector<8x8x384xf32> to vector<1x8x384xf32>
    %115 = vector.shape_cast %114 : vector<1x8x384xf32> to vector<8x384xf32>
    %cst_33 = arith.constant dense<0.000000e+00> : vector<8x384xf32>
    %116 = tpu.matmul %110, %10, %cst_33 {dimension_numbers = #tpu.dot_dimension_numbers<[1], [0], [0], [1], [0, 0, 1, 1], [], []>} : vector<8x128xf32>, vector<128x384xf32>, vector<8x384xf32> -> vector<8x384xf32>
    %117 = vector.extract_strided_slice %115 {offsets = [0, 0], sizes = [8, 128], strides = [1, 1]} : vector<8x384xf32> to vector<8x128xf32>
    %118 = vector.extract_strided_slice %116 {offsets = [0, 0], sizes = [8, 128], strides = [1, 1]} : vector<8x384xf32> to vector<8x128xf32>
    %119 = arith.addf %117, %118 : vector<8x128xf32>
    %120 = arith.negf %119 : vector<8x128xf32>
    %121 = math.exp %120 : vector<8x128xf32>
    %cst_34 = arith.constant 1.000000e+00 : f32
    %122 = vector.broadcast %cst_34 : f32 to vector<8x128xf32>
    %123 = arith.addf %122, %121 : vector<8x128xf32>
    %124 = arith.divf %122, %123 : vector<8x128xf32>
    %125 = vector.extract_strided_slice %115 {offsets = [0, 128], sizes = [8, 128], strides = [1, 1]} : vector<8x384xf32> to vector<8x128xf32>
    %126 = vector.extract_strided_slice %116 {offsets = [0, 128], sizes = [8, 128], strides = [1, 1]} : vector<8x384xf32> to vector<8x128xf32>
    %127 = arith.addf %125, %126 : vector<8x128xf32>
    %128 = arith.negf %127 : vector<8x128xf32>
    %129 = math.exp %128 : vector<8x128xf32>
    %cst_35 = arith.constant 1.000000e+00 : f32
    %130 = vector.broadcast %cst_35 : f32 to vector<8x128xf32>
    %131 = arith.addf %130, %129 : vector<8x128xf32>
    %132 = arith.divf %130, %131 : vector<8x128xf32>
    %133 = vector.extract_strided_slice %115 {offsets = [0, 256], sizes = [8, 128], strides = [1, 1]} : vector<8x384xf32> to vector<8x128xf32>
    %134 = vector.extract_strided_slice %116 {offsets = [0, 256], sizes = [8, 128], strides = [1, 1]} : vector<8x384xf32> to vector<8x128xf32>
    %135 = arith.addf %134, %13 : vector<8x128xf32>
    %136 = arith.mulf %124, %135 : vector<8x128xf32>
    %137 = arith.addf %133, %136 : vector<8x128xf32>
    %138 = math.tanh %137 : vector<8x128xf32>
    %cst_36 = arith.constant 1.000000e+00 : f32
    %139 = vector.broadcast %cst_36 : f32 to vector<8x128xf32>
    %140 = arith.subf %139, %132 : vector<8x128xf32>
    %141 = arith.mulf %140, %138 : vector<8x128xf32>
    %142 = arith.mulf %132, %110 : vector<8x128xf32>
    %143 = arith.addf %141, %142 : vector<8x128xf32>
    %c3 = arith.constant 3 : index
    %c0_37 = arith.constant 0 : index
    %c0_38 = arith.constant 0 : index
    %144 = vector.load %arg15[%c3, %c0_37, %c0_38] : memref<8x8x128xf32, #tpu.memory_space<vmem>>, vector<1x8x128xf32>
    %145 = vector.shape_cast %144 : vector<1x8x128xf32> to vector<8x128xf32>
    %146 = vector.shape_cast %143 : vector<8x128xf32> to vector<1x8x128xf32>
    tpu.vector_store %arg15[%c3, %c0_37, %c0_38], %146 {strides = array<i32>} : memref<8x8x128xf32, #tpu.memory_space<vmem>>, vector<1x8x128xf32>,
    %147 = vector.extract_strided_slice %9 {offsets = [4, 0, 0], sizes = [1, 8, 384], strides = [1, 1, 1]} : vector<8x8x384xf32> to vector<1x8x384xf32>
    %148 = vector.shape_cast %147 : vector<1x8x384xf32> to vector<8x384xf32>
    %cst_39 = arith.constant dense<0.000000e+00> : vector<8x384xf32>
    %149 = tpu.matmul %143, %10, %cst_39 {dimension_numbers = #tpu.dot_dimension_numbers<[1], [0], [0], [1], [0, 0, 1, 1], [], []>} : vector<8x128xf32>, vector<128x384xf32>, vector<8x384xf32> -> vector<8x384xf32>
    %150 = vector.extract_strided_slice %148 {offsets = [0, 0], sizes = [8, 128], strides = [1, 1]} : vector<8x384xf32> to vector<8x128xf32>
    %151 = vector.extract_strided_slice %149 {offsets = [0, 0], sizes = [8, 128], strides = [1, 1]} : vector<8x384xf32> to vector<8x128xf32>
    %152 = arith.addf %150, %151 : vector<8x128xf32>
    %153 = arith.negf %152 : vector<8x128xf32>
    %154 = math.exp %153 : vector<8x128xf32>
    %cst_40 = arith.constant 1.000000e+00 : f32
    %155 = vector.broadcast %cst_40 : f32 to vector<8x128xf32>
    %156 = arith.addf %155, %154 : vector<8x128xf32>
    %157 = arith.divf %155, %156 : vector<8x128xf32>
    %158 = vector.extract_strided_slice %148 {offsets = [0, 128], sizes = [8, 128], strides = [1, 1]} : vector<8x384xf32> to vector<8x128xf32>
    %159 = vector.extract_strided_slice %149 {offsets = [0, 128], sizes = [8, 128], strides = [1, 1]} : vector<8x384xf32> to vector<8x128xf32>
    %160 = arith.addf %158, %159 : vector<8x128xf32>
    %161 = arith.negf %160 : vector<8x128xf32>
    %162 = math.exp %161 : vector<8x128xf32>
    %cst_41 = arith.constant 1.000000e+00 : f32
    %163 = vector.broadcast %cst_41 : f32 to vector<8x128xf32>
    %164 = arith.addf %163, %162 : vector<8x128xf32>
    %165 = arith.divf %163, %164 : vector<8x128xf32>
    %166 = vector.extract_strided_slice %148 {offsets = [0, 256], sizes = [8, 128], strides = [1, 1]} : vector<8x384xf32> to vector<8x128xf32>
    %167 = vector.extract_strided_slice %149 {offsets = [0, 256], sizes = [8, 128], strides = [1, 1]} : vector<8x384xf32> to vector<8x128xf32>
    %168 = arith.addf %167, %13 : vector<8x128xf32>
    %169 = arith.mulf %157, %168 : vector<8x128xf32>
    %170 = arith.addf %166, %169 : vector<8x128xf32>
    %171 = math.tanh %170 : vector<8x128xf32>
    %cst_42 = arith.constant 1.000000e+00 : f32
    %172 = vector.broadcast %cst_42 : f32 to vector<8x128xf32>
    %173 = arith.subf %172, %165 : vector<8x128xf32>
    %174 = arith.mulf %173, %171 : vector<8x128xf32>
    %175 = arith.mulf %165, %143 : vector<8x128xf32>
    %176 = arith.addf %174, %175 : vector<8x128xf32>
    %c4 = arith.constant 4 : index
    %c0_43 = arith.constant 0 : index
    %c0_44 = arith.constant 0 : index
    %177 = vector.load %arg15[%c4, %c0_43, %c0_44] : memref<8x8x128xf32, #tpu.memory_space<vmem>>, vector<1x8x128xf32>
    %178 = vector.shape_cast %177 : vector<1x8x128xf32> to vector<8x128xf32>
    %179 = vector.shape_cast %176 : vector<8x128xf32> to vector<1x8x128xf32>
    tpu.vector_store %arg15[%c4, %c0_43, %c0_44], %179 {strides = array<i32>} : memref<8x8x128xf32, #tpu.memory_space<vmem>>, vector<1x8x128xf32>,
    %180 = vector.extract_strided_slice %9 {offsets = [5, 0, 0], sizes = [1, 8, 384], strides = [1, 1, 1]} : vector<8x8x384xf32> to vector<1x8x384xf32>
    %181 = vector.shape_cast %180 : vector<1x8x384xf32> to vector<8x384xf32>
    %cst_45 = arith.constant dense<0.000000e+00> : vector<8x384xf32>
    %182 = tpu.matmul %176, %10, %cst_45 {dimension_numbers = #tpu.dot_dimension_numbers<[1], [0], [0], [1], [0, 0, 1, 1], [], []>} : vector<8x128xf32>, vector<128x384xf32>, vector<8x384xf32> -> vector<8x384xf32>
    %183 = vector.extract_strided_slice %181 {offsets = [0, 0], sizes = [8, 128], strides = [1, 1]} : vector<8x384xf32> to vector<8x128xf32>
    %184 = vector.extract_strided_slice %182 {offsets = [0, 0], sizes = [8, 128], strides = [1, 1]} : vector<8x384xf32> to vector<8x128xf32>
    %185 = arith.addf %183, %184 : vector<8x128xf32>
    %186 = arith.negf %185 : vector<8x128xf32>
    %187 = math.exp %186 : vector<8x128xf32>
    %cst_46 = arith.constant 1.000000e+00 : f32
    %188 = vector.broadcast %cst_46 : f32 to vector<8x128xf32>
    %189 = arith.addf %188, %187 : vector<8x128xf32>
    %190 = arith.divf %188, %189 : vector<8x128xf32>
    %191 = vector.extract_strided_slice %181 {offsets = [0, 128], sizes = [8, 128], strides = [1, 1]} : vector<8x384xf32> to vector<8x128xf32>
    %192 = vector.extract_strided_slice %182 {offsets = [0, 128], sizes = [8, 128], strides = [1, 1]} : vector<8x384xf32> to vector<8x128xf32>
    %193 = arith.addf %191, %192 : vector<8x128xf32>
    %194 = arith.negf %193 : vector<8x128xf32>
    %195 = math.exp %194 : vector<8x128xf32>
    %cst_47 = arith.constant 1.000000e+00 : f32
    %196 = vector.broadcast %cst_47 : f32 to vector<8x128xf32>
    %197 = arith.addf %196, %195 : vector<8x128xf32>
    %198 = arith.divf %196, %197 : vector<8x128xf32>
    %199 = vector.extract_strided_slice %181 {offsets = [0, 256], sizes = [8, 128], strides = [1, 1]} : vector<8x384xf32> to vector<8x128xf32>
    %200 = vector.extract_strided_slice %182 {offsets = [0, 256], sizes = [8, 128], strides = [1, 1]} : vector<8x384xf32> to vector<8x128xf32>
    %201 = arith.addf %200, %13 : vector<8x128xf32>
    %202 = arith.mulf %190, %201 : vector<8x128xf32>
    %203 = arith.addf %199, %202 : vector<8x128xf32>
    %204 = math.tanh %203 : vector<8x128xf32>
    %cst_48 = arith.constant 1.000000e+00 : f32
    %205 = vector.broadcast %cst_48 : f32 to vector<8x128xf32>
    %206 = arith.subf %205, %198 : vector<8x128xf32>
    %207 = arith.mulf %206, %204 : vector<8x128xf32>
    %208 = arith.mulf %198, %176 : vector<8x128xf32>
    %209 = arith.addf %207, %208 : vector<8x128xf32>
    %c5 = arith.constant 5 : index
    %c0_49 = arith.constant 0 : index
    %c0_50 = arith.constant 0 : index
    %210 = vector.load %arg15[%c5, %c0_49, %c0_50] : memref<8x8x128xf32, #tpu.memory_space<vmem>>, vector<1x8x128xf32>
    %211 = vector.shape_cast %210 : vector<1x8x128xf32> to vector<8x128xf32>
    %212 = vector.shape_cast %209 : vector<8x128xf32> to vector<1x8x128xf32>
    tpu.vector_store %arg15[%c5, %c0_49, %c0_50], %212 {strides = array<i32>} : memref<8x8x128xf32, #tpu.memory_space<vmem>>, vector<1x8x128xf32>,
    %213 = vector.extract_strided_slice %9 {offsets = [6, 0, 0], sizes = [1, 8, 384], strides = [1, 1, 1]} : vector<8x8x384xf32> to vector<1x8x384xf32>
    %214 = vector.shape_cast %213 : vector<1x8x384xf32> to vector<8x384xf32>
    %cst_51 = arith.constant dense<0.000000e+00> : vector<8x384xf32>
    %215 = tpu.matmul %209, %10, %cst_51 {dimension_numbers = #tpu.dot_dimension_numbers<[1], [0], [0], [1], [0, 0, 1, 1], [], []>} : vector<8x128xf32>, vector<128x384xf32>, vector<8x384xf32> -> vector<8x384xf32>
    %216 = vector.extract_strided_slice %214 {offsets = [0, 0], sizes = [8, 128], strides = [1, 1]} : vector<8x384xf32> to vector<8x128xf32>
    %217 = vector.extract_strided_slice %215 {offsets = [0, 0], sizes = [8, 128], strides = [1, 1]} : vector<8x384xf32> to vector<8x128xf32>
    %218 = arith.addf %216, %217 : vector<8x128xf32>
    %219 = arith.negf %218 : vector<8x128xf32>
    %220 = math.exp %219 : vector<8x128xf32>
    %cst_52 = arith.constant 1.000000e+00 : f32
    %221 = vector.broadcast %cst_52 : f32 to vector<8x128xf32>
    %222 = arith.addf %221, %220 : vector<8x128xf32>
    %223 = arith.divf %221, %222 : vector<8x128xf32>
    %224 = vector.extract_strided_slice %214 {offsets = [0, 128], sizes = [8, 128], strides = [1, 1]} : vector<8x384xf32> to vector<8x128xf32>
    %225 = vector.extract_strided_slice %215 {offsets = [0, 128], sizes = [8, 128], strides = [1, 1]} : vector<8x384xf32> to vector<8x128xf32>
    %226 = arith.addf %224, %225 : vector<8x128xf32>
    %227 = arith.negf %226 : vector<8x128xf32>
    %228 = math.exp %227 : vector<8x128xf32>
    %cst_53 = arith.constant 1.000000e+00 : f32
    %229 = vector.broadcast %cst_53 : f32 to vector<8x128xf32>
    %230 = arith.addf %229, %228 : vector<8x128xf32>
    %231 = arith.divf %229, %230 : vector<8x128xf32>
    %232 = vector.extract_strided_slice %214 {offsets = [0, 256], sizes = [8, 128], strides = [1, 1]} : vector<8x384xf32> to vector<8x128xf32>
    %233 = vector.extract_strided_slice %215 {offsets = [0, 256], sizes = [8, 128], strides = [1, 1]} : vector<8x384xf32> to vector<8x128xf32>
    %234 = arith.addf %233, %13 : vector<8x128xf32>
    %235 = arith.mulf %223, %234 : vector<8x128xf32>
    %236 = arith.addf %232, %235 : vector<8x128xf32>
    %237 = math.tanh %236 : vector<8x128xf32>
    %cst_54 = arith.constant 1.000000e+00 : f32
    %238 = vector.broadcast %cst_54 : f32 to vector<8x128xf32>
    %239 = arith.subf %238, %231 : vector<8x128xf32>
    %240 = arith.mulf %239, %237 : vector<8x128xf32>
    %241 = arith.mulf %231, %209 : vector<8x128xf32>
    %242 = arith.addf %240, %241 : vector<8x128xf32>
    %c6 = arith.constant 6 : index
    %c0_55 = arith.constant 0 : index
    %c0_56 = arith.constant 0 : index
    %243 = vector.load %arg15[%c6, %c0_55, %c0_56] : memref<8x8x128xf32, #tpu.memory_space<vmem>>, vector<1x8x128xf32>
    %244 = vector.shape_cast %243 : vector<1x8x128xf32> to vector<8x128xf32>
    %245 = vector.shape_cast %242 : vector<8x128xf32> to vector<1x8x128xf32>
    tpu.vector_store %arg15[%c6, %c0_55, %c0_56], %245 {strides = array<i32>} : memref<8x8x128xf32, #tpu.memory_space<vmem>>, vector<1x8x128xf32>,
    %246 = vector.extract_strided_slice %9 {offsets = [7, 0, 0], sizes = [1, 8, 384], strides = [1, 1, 1]} : vector<8x8x384xf32> to vector<1x8x384xf32>
    %247 = vector.shape_cast %246 : vector<1x8x384xf32> to vector<8x384xf32>
    %cst_57 = arith.constant dense<0.000000e+00> : vector<8x384xf32>
    %248 = tpu.matmul %242, %10, %cst_57 {dimension_numbers = #tpu.dot_dimension_numbers<[1], [0], [0], [1], [0, 0, 1, 1], [], []>} : vector<8x128xf32>, vector<128x384xf32>, vector<8x384xf32> -> vector<8x384xf32>
    %249 = vector.extract_strided_slice %247 {offsets = [0, 0], sizes = [8, 128], strides = [1, 1]} : vector<8x384xf32> to vector<8x128xf32>
    %250 = vector.extract_strided_slice %248 {offsets = [0, 0], sizes = [8, 128], strides = [1, 1]} : vector<8x384xf32> to vector<8x128xf32>
    %251 = arith.addf %249, %250 : vector<8x128xf32>
    %252 = arith.negf %251 : vector<8x128xf32>
    %253 = math.exp %252 : vector<8x128xf32>
    %cst_58 = arith.constant 1.000000e+00 : f32
    %254 = vector.broadcast %cst_58 : f32 to vector<8x128xf32>
    %255 = arith.addf %254, %253 : vector<8x128xf32>
    %256 = arith.divf %254, %255 : vector<8x128xf32>
    %257 = vector.extract_strided_slice %247 {offsets = [0, 128], sizes = [8, 128], strides = [1, 1]} : vector<8x384xf32> to vector<8x128xf32>
    %258 = vector.extract_strided_slice %248 {offsets = [0, 128], sizes = [8, 128], strides = [1, 1]} : vector<8x384xf32> to vector<8x128xf32>
    %259 = arith.addf %257, %258 : vector<8x128xf32>
    %260 = arith.negf %259 : vector<8x128xf32>
    %261 = math.exp %260 : vector<8x128xf32>
    %cst_59 = arith.constant 1.000000e+00 : f32
    %262 = vector.broadcast %cst_59 : f32 to vector<8x128xf32>
    %263 = arith.addf %262, %261 : vector<8x128xf32>
    %264 = arith.divf %262, %263 : vector<8x128xf32>
    %265 = vector.extract_strided_slice %247 {offsets = [0, 256], sizes = [8, 128], strides = [1, 1]} : vector<8x384xf32> to vector<8x128xf32>
    %266 = vector.extract_strided_slice %248 {offsets = [0, 256], sizes = [8, 128], strides = [1, 1]} : vector<8x384xf32> to vector<8x128xf32>
    %267 = arith.addf %266, %13 : vector<8x128xf32>
    %268 = arith.mulf %256, %267 : vector<8x128xf32>
    %269 = arith.addf %265, %268 : vector<8x128xf32>
    %270 = math.tanh %269 : vector<8x128xf32>
    %cst_60 = arith.constant 1.000000e+00 : f32
    %271 = vector.broadcast %cst_60 : f32 to vector<8x128xf32>
    %272 = arith.subf %271, %264 : vector<8x128xf32>
    %273 = arith.mulf %272, %270 : vector<8x128xf32>
    %274 = arith.mulf %264, %242 : vector<8x128xf32>
    %275 = arith.addf %273, %274 : vector<8x128xf32>
    %c7 = arith.constant 7 : index
    %c0_61 = arith.constant 0 : index
    %c0_62 = arith.constant 0 : index
    %276 = vector.load %arg15[%c7, %c0_61, %c0_62] : memref<8x8x128xf32, #tpu.memory_space<vmem>>, vector<1x8x128xf32>
    %277 = vector.shape_cast %276 : vector<1x8x128xf32> to vector<8x128xf32>
    %278 = vector.shape_cast %275 : vector<8x128xf32> to vector<1x8x128xf32>
    tpu.vector_store %arg15[%c7, %c0_61, %c0_62], %278 {strides = array<i32>} : memref<8x8x128xf32, #tpu.memory_space<vmem>>, vector<1x8x128xf32>,
    %c0_63 = arith.constant 0 : index
    %c0_64 = arith.constant 0 : index
    %c0_65 = arith.constant 0 : index
    %279 = vector.load %arg15[%c0_63, %c0_64, %c0_65] : memref<8x8x128xf32, #tpu.memory_space<vmem>>, vector<8x8x128xf32>
    %280 = vector.shape_cast %279 : vector<8x8x128xf32> to vector<64x128xf32>
    %c0_66 = arith.constant 0 : index
    %c0_67 = arith.constant 0 : index
    %281 = vector.load %arg6[%c0_66, %c0_67] : memref<128x384xf32, #tpu.memory_space<vmem>>, vector<128x384xf32>
    %cst_68 = arith.constant dense<0.000000e+00> : vector<64x384xf32>
    %282 = tpu.matmul %280, %281, %cst_68 {dimension_numbers = #tpu.dot_dimension_numbers<[1], [0], [0], [1], [0, 0, 1, 1], [], []>} : vector<64x128xf32>, vector<128x384xf32>, vector<64x384xf32> -> vector<64x384xf32>
    %c0_69 = arith.constant 0 : index
    %c0_70 = arith.constant 0 : index
    %283 = vector.load %arg8[%c0_69, %c0_70] : memref<1x384xf32, #tpu.memory_space<vmem>>, vector<1x384xf32>
    %284 = vector.broadcast %283 : vector<1x384xf32> to vector<64x384xf32>
    %285 = arith.addf %282, %284 : vector<64x384xf32>
    %286 = vector.shape_cast %285 : vector<64x384xf32> to vector<8x8x384xf32>
    %c0_71 = arith.constant 0 : index
    %c0_72 = arith.constant 0 : index
    %287 = vector.load %arg7[%c0_71, %c0_72] : memref<128x384xf32, #tpu.memory_space<vmem>>, vector<128x384xf32>
    %c0_73 = arith.constant 0 : index
    %c0_74 = arith.constant 0 : index
    %288 = vector.load %arg9[%c0_73, %c0_74] : memref<1x128xf32, #tpu.memory_space<vmem>>, vector<1x128xf32>
    %289 = vector.shape_cast %288 : vector<1x128xf32> to vector<1x128xf32>
    %290 = vector.broadcast %289 : vector<1x128xf32> to vector<8x128xf32>
    %cst_75 = arith.constant 0.000000e+00 : f32
    %291 = vector.broadcast %cst_75 : f32 to vector<8x128xf32>
    %292 = vector.extract_strided_slice %286 {offsets = [0, 0, 0], sizes = [1, 8, 384], strides = [1, 1, 1]} : vector<8x8x384xf32> to vector<1x8x384xf32>
    %293 = vector.shape_cast %292 : vector<1x8x384xf32> to vector<8x384xf32>
    %cst_76 = arith.constant dense<0.000000e+00> : vector<8x384xf32>
    %294 = tpu.matmul %291, %287, %cst_76 {dimension_numbers = #tpu.dot_dimension_numbers<[1], [0], [0], [1], [0, 0, 1, 1], [], []>} : vector<8x128xf32>, vector<128x384xf32>, vector<8x384xf32> -> vector<8x384xf32>
    %295 = vector.extract_strided_slice %293 {offsets = [0, 0], sizes = [8, 128], strides = [1, 1]} : vector<8x384xf32> to vector<8x128xf32>
    %296 = vector.extract_strided_slice %294 {offsets = [0, 0], sizes = [8, 128], strides = [1, 1]} : vector<8x384xf32> to vector<8x128xf32>
    %297 = arith.addf %295, %296 : vector<8x128xf32>
    %298 = arith.negf %297 : vector<8x128xf32>
    %299 = math.exp %298 : vector<8x128xf32>
    %cst_77 = arith.constant 1.000000e+00 : f32
    %300 = vector.broadcast %cst_77 : f32 to vector<8x128xf32>
    %301 = arith.addf %300, %299 : vector<8x128xf32>
    %302 = arith.divf %300, %301 : vector<8x128xf32>
    %303 = vector.extract_strided_slice %293 {offsets = [0, 128], sizes = [8, 128], strides = [1, 1]} : vector<8x384xf32> to vector<8x128xf32>
    %304 = vector.extract_strided_slice %294 {offsets = [0, 128], sizes = [8, 128], strides = [1, 1]} : vector<8x384xf32> to vector<8x128xf32>
    %305 = arith.addf %303, %304 : vector<8x128xf32>
    %306 = arith.negf %305 : vector<8x128xf32>
    %307 = math.exp %306 : vector<8x128xf32>
    %cst_78 = arith.constant 1.000000e+00 : f32
    %308 = vector.broadcast %cst_78 : f32 to vector<8x128xf32>
    %309 = arith.addf %308, %307 : vector<8x128xf32>
    %310 = arith.divf %308, %309 : vector<8x128xf32>
    %311 = vector.extract_strided_slice %293 {offsets = [0, 256], sizes = [8, 128], strides = [1, 1]} : vector<8x384xf32> to vector<8x128xf32>
    %312 = vector.extract_strided_slice %294 {offsets = [0, 256], sizes = [8, 128], strides = [1, 1]} : vector<8x384xf32> to vector<8x128xf32>
    %313 = arith.addf %312, %290 : vector<8x128xf32>
    %314 = arith.mulf %302, %313 : vector<8x128xf32>
    %315 = arith.addf %311, %314 : vector<8x128xf32>
    %316 = math.tanh %315 : vector<8x128xf32>
    %cst_79 = arith.constant 1.000000e+00 : f32
    %317 = vector.broadcast %cst_79 : f32 to vector<8x128xf32>
    %318 = arith.subf %317, %310 : vector<8x128xf32>
    %319 = arith.mulf %318, %316 : vector<8x128xf32>
    %320 = arith.mulf %310, %291 : vector<8x128xf32>
    %321 = arith.addf %319, %320 : vector<8x128xf32>
    %322 = vector.extract_strided_slice %286 {offsets = [1, 0, 0], sizes = [1, 8, 384], strides = [1, 1, 1]} : vector<8x8x384xf32> to vector<1x8x384xf32>
    %323 = vector.shape_cast %322 : vector<1x8x384xf32> to vector<8x384xf32>
    %cst_80 = arith.constant dense<0.000000e+00> : vector<8x384xf32>
    %324 = tpu.matmul %321, %287, %cst_80 {dimension_numbers = #tpu.dot_dimension_numbers<[1], [0], [0], [1], [0, 0, 1, 1], [], []>} : vector<8x128xf32>, vector<128x384xf32>, vector<8x384xf32> -> vector<8x384xf32>
    %325 = vector.extract_strided_slice %323 {offsets = [0, 0], sizes = [8, 128], strides = [1, 1]} : vector<8x384xf32> to vector<8x128xf32>
    %326 = vector.extract_strided_slice %324 {offsets = [0, 0], sizes = [8, 128], strides = [1, 1]} : vector<8x384xf32> to vector<8x128xf32>
    %327 = arith.addf %325, %326 : vector<8x128xf32>
    %328 = arith.negf %327 : vector<8x128xf32>
    %329 = math.exp %328 : vector<8x128xf32>
    %cst_81 = arith.constant 1.000000e+00 : f32
    %330 = vector.broadcast %cst_81 : f32 to vector<8x128xf32>
    %331 = arith.addf %330, %329 : vector<8x128xf32>
    %332 = arith.divf %330, %331 : vector<8x128xf32>
    %333 = vector.extract_strided_slice %323 {offsets = [0, 128], sizes = [8, 128], strides = [1, 1]} : vector<8x384xf32> to vector<8x128xf32>
    %334 = vector.extract_strided_slice %324 {offsets = [0, 128], sizes = [8, 128], strides = [1, 1]} : vector<8x384xf32> to vector<8x128xf32>
    %335 = arith.addf %333, %334 : vector<8x128xf32>
    %336 = arith.negf %335 : vector<8x128xf32>
    %337 = math.exp %336 : vector<8x128xf32>
    %cst_82 = arith.constant 1.000000e+00 : f32
    %338 = vector.broadcast %cst_82 : f32 to vector<8x128xf32>
    %339 = arith.addf %338, %337 : vector<8x128xf32>
    %340 = arith.divf %338, %339 : vector<8x128xf32>
    %341 = vector.extract_strided_slice %323 {offsets = [0, 256], sizes = [8, 128], strides = [1, 1]} : vector<8x384xf32> to vector<8x128xf32>
    %342 = vector.extract_strided_slice %324 {offsets = [0, 256], sizes = [8, 128], strides = [1, 1]} : vector<8x384xf32> to vector<8x128xf32>
    %343 = arith.addf %342, %290 : vector<8x128xf32>
    %344 = arith.mulf %332, %343 : vector<8x128xf32>
    %345 = arith.addf %341, %344 : vector<8x128xf32>
    %346 = math.tanh %345 : vector<8x128xf32>
    %cst_83 = arith.constant 1.000000e+00 : f32
    %347 = vector.broadcast %cst_83 : f32 to vector<8x128xf32>
    %348 = arith.subf %347, %340 : vector<8x128xf32>
    %349 = arith.mulf %348, %346 : vector<8x128xf32>
    %350 = arith.mulf %340, %321 : vector<8x128xf32>
    %351 = arith.addf %349, %350 : vector<8x128xf32>
    %352 = vector.extract_strided_slice %286 {offsets = [2, 0, 0], sizes = [1, 8, 384], strides = [1, 1, 1]} : vector<8x8x384xf32> to vector<1x8x384xf32>
    %353 = vector.shape_cast %352 : vector<1x8x384xf32> to vector<8x384xf32>
    %cst_84 = arith.constant dense<0.000000e+00> : vector<8x384xf32>
    %354 = tpu.matmul %351, %287, %cst_84 {dimension_numbers = #tpu.dot_dimension_numbers<[1], [0], [0], [1], [0, 0, 1, 1], [], []>} : vector<8x128xf32>, vector<128x384xf32>, vector<8x384xf32> -> vector<8x384xf32>
    %355 = vector.extract_strided_slice %353 {offsets = [0, 0], sizes = [8, 128], strides = [1, 1]} : vector<8x384xf32> to vector<8x128xf32>
    %356 = vector.extract_strided_slice %354 {offsets = [0, 0], sizes = [8, 128], strides = [1, 1]} : vector<8x384xf32> to vector<8x128xf32>
    %357 = arith.addf %355, %356 : vector<8x128xf32>
    %358 = arith.negf %357 : vector<8x128xf32>
    %359 = math.exp %358 : vector<8x128xf32>
    %cst_85 = arith.constant 1.000000e+00 : f32
    %360 = vector.broadcast %cst_85 : f32 to vector<8x128xf32>
    %361 = arith.addf %360, %359 : vector<8x128xf32>
    %362 = arith.divf %360, %361 : vector<8x128xf32>
    %363 = vector.extract_strided_slice %353 {offsets = [0, 128], sizes = [8, 128], strides = [1, 1]} : vector<8x384xf32> to vector<8x128xf32>
    %364 = vector.extract_strided_slice %354 {offsets = [0, 128], sizes = [8, 128], strides = [1, 1]} : vector<8x384xf32> to vector<8x128xf32>
    %365 = arith.addf %363, %364 : vector<8x128xf32>
    %366 = arith.negf %365 : vector<8x128xf32>
    %367 = math.exp %366 : vector<8x128xf32>
    %cst_86 = arith.constant 1.000000e+00 : f32
    %368 = vector.broadcast %cst_86 : f32 to vector<8x128xf32>
    %369 = arith.addf %368, %367 : vector<8x128xf32>
    %370 = arith.divf %368, %369 : vector<8x128xf32>
    %371 = vector.extract_strided_slice %353 {offsets = [0, 256], sizes = [8, 128], strides = [1, 1]} : vector<8x384xf32> to vector<8x128xf32>
    %372 = vector.extract_strided_slice %354 {offsets = [0, 256], sizes = [8, 128], strides = [1, 1]} : vector<8x384xf32> to vector<8x128xf32>
    %373 = arith.addf %372, %290 : vector<8x128xf32>
    %374 = arith.mulf %362, %373 : vector<8x128xf32>
    %375 = arith.addf %371, %374 : vector<8x128xf32>
    %376 = math.tanh %375 : vector<8x128xf32>
    %cst_87 = arith.constant 1.000000e+00 : f32
    %377 = vector.broadcast %cst_87 : f32 to vector<8x128xf32>
    %378 = arith.subf %377, %370 : vector<8x128xf32>
    %379 = arith.mulf %378, %376 : vector<8x128xf32>
    %380 = arith.mulf %370, %351 : vector<8x128xf32>
    %381 = arith.addf %379, %380 : vector<8x128xf32>
    %382 = vector.extract_strided_slice %286 {offsets = [3, 0, 0], sizes = [1, 8, 384], strides = [1, 1, 1]} : vector<8x8x384xf32> to vector<1x8x384xf32>
    %383 = vector.shape_cast %382 : vector<1x8x384xf32> to vector<8x384xf32>
    %cst_88 = arith.constant dense<0.000000e+00> : vector<8x384xf32>
    %384 = tpu.matmul %381, %287, %cst_88 {dimension_numbers = #tpu.dot_dimension_numbers<[1], [0], [0], [1], [0, 0, 1, 1], [], []>} : vector<8x128xf32>, vector<128x384xf32>, vector<8x384xf32> -> vector<8x384xf32>
    %385 = vector.extract_strided_slice %383 {offsets = [0, 0], sizes = [8, 128], strides = [1, 1]} : vector<8x384xf32> to vector<8x128xf32>
    %386 = vector.extract_strided_slice %384 {offsets = [0, 0], sizes = [8, 128], strides = [1, 1]} : vector<8x384xf32> to vector<8x128xf32>
    %387 = arith.addf %385, %386 : vector<8x128xf32>
    %388 = arith.negf %387 : vector<8x128xf32>
    %389 = math.exp %388 : vector<8x128xf32>
    %cst_89 = arith.constant 1.000000e+00 : f32
    %390 = vector.broadcast %cst_89 : f32 to vector<8x128xf32>
    %391 = arith.addf %390, %389 : vector<8x128xf32>
    %392 = arith.divf %390, %391 : vector<8x128xf32>
    %393 = vector.extract_strided_slice %383 {offsets = [0, 128], sizes = [8, 128], strides = [1, 1]} : vector<8x384xf32> to vector<8x128xf32>
    %394 = vector.extract_strided_slice %384 {offsets = [0, 128], sizes = [8, 128], strides = [1, 1]} : vector<8x384xf32> to vector<8x128xf32>
    %395 = arith.addf %393, %394 : vector<8x128xf32>
    %396 = arith.negf %395 : vector<8x128xf32>
    %397 = math.exp %396 : vector<8x128xf32>
    %cst_90 = arith.constant 1.000000e+00 : f32
    %398 = vector.broadcast %cst_90 : f32 to vector<8x128xf32>
    %399 = arith.addf %398, %397 : vector<8x128xf32>
    %400 = arith.divf %398, %399 : vector<8x128xf32>
    %401 = vector.extract_strided_slice %383 {offsets = [0, 256], sizes = [8, 128], strides = [1, 1]} : vector<8x384xf32> to vector<8x128xf32>
    %402 = vector.extract_strided_slice %384 {offsets = [0, 256], sizes = [8, 128], strides = [1, 1]} : vector<8x384xf32> to vector<8x128xf32>
    %403 = arith.addf %402, %290 : vector<8x128xf32>
    %404 = arith.mulf %392, %403 : vector<8x128xf32>
    %405 = arith.addf %401, %404 : vector<8x128xf32>
    %406 = math.tanh %405 : vector<8x128xf32>
    %cst_91 = arith.constant 1.000000e+00 : f32
    %407 = vector.broadcast %cst_91 : f32 to vector<8x128xf32>
    %408 = arith.subf %407, %400 : vector<8x128xf32>
    %409 = arith.mulf %408, %406 : vector<8x128xf32>
    %410 = arith.mulf %400, %381 : vector<8x128xf32>
    %411 = arith.addf %409, %410 : vector<8x128xf32>
    %412 = vector.extract_strided_slice %286 {offsets = [4, 0, 0], sizes = [1, 8, 384], strides = [1, 1, 1]} : vector<8x8x384xf32> to vector<1x8x384xf32>
    %413 = vector.shape_cast %412 : vector<1x8x384xf32> to vector<8x384xf32>
    %cst_92 = arith.constant dense<0.000000e+00> : vector<8x384xf32>
    %414 = tpu.matmul %411, %287, %cst_92 {dimension_numbers = #tpu.dot_dimension_numbers<[1], [0], [0], [1], [0, 0, 1, 1], [], []>} : vector<8x128xf32>, vector<128x384xf32>, vector<8x384xf32> -> vector<8x384xf32>
    %415 = vector.extract_strided_slice %413 {offsets = [0, 0], sizes = [8, 128], strides = [1, 1]} : vector<8x384xf32> to vector<8x128xf32>
    %416 = vector.extract_strided_slice %414 {offsets = [0, 0], sizes = [8, 128], strides = [1, 1]} : vector<8x384xf32> to vector<8x128xf32>
    %417 = arith.addf %415, %416 : vector<8x128xf32>
    %418 = arith.negf %417 : vector<8x128xf32>
    %419 = math.exp %418 : vector<8x128xf32>
    %cst_93 = arith.constant 1.000000e+00 : f32
    %420 = vector.broadcast %cst_93 : f32 to vector<8x128xf32>
    %421 = arith.addf %420, %419 : vector<8x128xf32>
    %422 = arith.divf %420, %421 : vector<8x128xf32>
    %423 = vector.extract_strided_slice %413 {offsets = [0, 128], sizes = [8, 128], strides = [1, 1]} : vector<8x384xf32> to vector<8x128xf32>
    %424 = vector.extract_strided_slice %414 {offsets = [0, 128], sizes = [8, 128], strides = [1, 1]} : vector<8x384xf32> to vector<8x128xf32>
    %425 = arith.addf %423, %424 : vector<8x128xf32>
    %426 = arith.negf %425 : vector<8x128xf32>
    %427 = math.exp %426 : vector<8x128xf32>
    %cst_94 = arith.constant 1.000000e+00 : f32
    %428 = vector.broadcast %cst_94 : f32 to vector<8x128xf32>
    %429 = arith.addf %428, %427 : vector<8x128xf32>
    %430 = arith.divf %428, %429 : vector<8x128xf32>
    %431 = vector.extract_strided_slice %413 {offsets = [0, 256], sizes = [8, 128], strides = [1, 1]} : vector<8x384xf32> to vector<8x128xf32>
    %432 = vector.extract_strided_slice %414 {offsets = [0, 256], sizes = [8, 128], strides = [1, 1]} : vector<8x384xf32> to vector<8x128xf32>
    %433 = arith.addf %432, %290 : vector<8x128xf32>
    %434 = arith.mulf %422, %433 : vector<8x128xf32>
    %435 = arith.addf %431, %434 : vector<8x128xf32>
    %436 = math.tanh %435 : vector<8x128xf32>
    %cst_95 = arith.constant 1.000000e+00 : f32
    %437 = vector.broadcast %cst_95 : f32 to vector<8x128xf32>
    %438 = arith.subf %437, %430 : vector<8x128xf32>
    %439 = arith.mulf %438, %436 : vector<8x128xf32>
    %440 = arith.mulf %430, %411 : vector<8x128xf32>
    %441 = arith.addf %439, %440 : vector<8x128xf32>
    %442 = vector.extract_strided_slice %286 {offsets = [5, 0, 0], sizes = [1, 8, 384], strides = [1, 1, 1]} : vector<8x8x384xf32> to vector<1x8x384xf32>
    %443 = vector.shape_cast %442 : vector<1x8x384xf32> to vector<8x384xf32>
    %cst_96 = arith.constant dense<0.000000e+00> : vector<8x384xf32>
    %444 = tpu.matmul %441, %287, %cst_96 {dimension_numbers = #tpu.dot_dimension_numbers<[1], [0], [0], [1], [0, 0, 1, 1], [], []>} : vector<8x128xf32>, vector<128x384xf32>, vector<8x384xf32> -> vector<8x384xf32>
    %445 = vector.extract_strided_slice %443 {offsets = [0, 0], sizes = [8, 128], strides = [1, 1]} : vector<8x384xf32> to vector<8x128xf32>
    %446 = vector.extract_strided_slice %444 {offsets = [0, 0], sizes = [8, 128], strides = [1, 1]} : vector<8x384xf32> to vector<8x128xf32>
    %447 = arith.addf %445, %446 : vector<8x128xf32>
    %448 = arith.negf %447 : vector<8x128xf32>
    %449 = math.exp %448 : vector<8x128xf32>
    %cst_97 = arith.constant 1.000000e+00 : f32
    %450 = vector.broadcast %cst_97 : f32 to vector<8x128xf32>
    %451 = arith.addf %450, %449 : vector<8x128xf32>
    %452 = arith.divf %450, %451 : vector<8x128xf32>
    %453 = vector.extract_strided_slice %443 {offsets = [0, 128], sizes = [8, 128], strides = [1, 1]} : vector<8x384xf32> to vector<8x128xf32>
    %454 = vector.extract_strided_slice %444 {offsets = [0, 128], sizes = [8, 128], strides = [1, 1]} : vector<8x384xf32> to vector<8x128xf32>
    %455 = arith.addf %453, %454 : vector<8x128xf32>
    %456 = arith.negf %455 : vector<8x128xf32>
    %457 = math.exp %456 : vector<8x128xf32>
    %cst_98 = arith.constant 1.000000e+00 : f32
    %458 = vector.broadcast %cst_98 : f32 to vector<8x128xf32>
    %459 = arith.addf %458, %457 : vector<8x128xf32>
    %460 = arith.divf %458, %459 : vector<8x128xf32>
    %461 = vector.extract_strided_slice %443 {offsets = [0, 256], sizes = [8, 128], strides = [1, 1]} : vector<8x384xf32> to vector<8x128xf32>
    %462 = vector.extract_strided_slice %444 {offsets = [0, 256], sizes = [8, 128], strides = [1, 1]} : vector<8x384xf32> to vector<8x128xf32>
    %463 = arith.addf %462, %290 : vector<8x128xf32>
    %464 = arith.mulf %452, %463 : vector<8x128xf32>
    %465 = arith.addf %461, %464 : vector<8x128xf32>
    %466 = math.tanh %465 : vector<8x128xf32>
    %cst_99 = arith.constant 1.000000e+00 : f32
    %467 = vector.broadcast %cst_99 : f32 to vector<8x128xf32>
    %468 = arith.subf %467, %460 : vector<8x128xf32>
    %469 = arith.mulf %468, %466 : vector<8x128xf32>
    %470 = arith.mulf %460, %441 : vector<8x128xf32>
    %471 = arith.addf %469, %470 : vector<8x128xf32>
    %472 = vector.extract_strided_slice %286 {offsets = [6, 0, 0], sizes = [1, 8, 384], strides = [1, 1, 1]} : vector<8x8x384xf32> to vector<1x8x384xf32>
    %473 = vector.shape_cast %472 : vector<1x8x384xf32> to vector<8x384xf32>
    %cst_100 = arith.constant dense<0.000000e+00> : vector<8x384xf32>
    %474 = tpu.matmul %471, %287, %cst_100 {dimension_numbers = #tpu.dot_dimension_numbers<[1], [0], [0], [1], [0, 0, 1, 1], [], []>} : vector<8x128xf32>, vector<128x384xf32>, vector<8x384xf32> -> vector<8x384xf32>
    %475 = vector.extract_strided_slice %473 {offsets = [0, 0], sizes = [8, 128], strides = [1, 1]} : vector<8x384xf32> to vector<8x128xf32>
    %476 = vector.extract_strided_slice %474 {offsets = [0, 0], sizes = [8, 128], strides = [1, 1]} : vector<8x384xf32> to vector<8x128xf32>
    %477 = arith.addf %475, %476 : vector<8x128xf32>
    %478 = arith.negf %477 : vector<8x128xf32>
    %479 = math.exp %478 : vector<8x128xf32>
    %cst_101 = arith.constant 1.000000e+00 : f32
    %480 = vector.broadcast %cst_101 : f32 to vector<8x128xf32>
    %481 = arith.addf %480, %479 : vector<8x128xf32>
    %482 = arith.divf %480, %481 : vector<8x128xf32>
    %483 = vector.extract_strided_slice %473 {offsets = [0, 128], sizes = [8, 128], strides = [1, 1]} : vector<8x384xf32> to vector<8x128xf32>
    %484 = vector.extract_strided_slice %474 {offsets = [0, 128], sizes = [8, 128], strides = [1, 1]} : vector<8x384xf32> to vector<8x128xf32>
    %485 = arith.addf %483, %484 : vector<8x128xf32>
    %486 = arith.negf %485 : vector<8x128xf32>
    %487 = math.exp %486 : vector<8x128xf32>
    %cst_102 = arith.constant 1.000000e+00 : f32
    %488 = vector.broadcast %cst_102 : f32 to vector<8x128xf32>
    %489 = arith.addf %488, %487 : vector<8x128xf32>
    %490 = arith.divf %488, %489 : vector<8x128xf32>
    %491 = vector.extract_strided_slice %473 {offsets = [0, 256], sizes = [8, 128], strides = [1, 1]} : vector<8x384xf32> to vector<8x128xf32>
    %492 = vector.extract_strided_slice %474 {offsets = [0, 256], sizes = [8, 128], strides = [1, 1]} : vector<8x384xf32> to vector<8x128xf32>
    %493 = arith.addf %492, %290 : vector<8x128xf32>
    %494 = arith.mulf %482, %493 : vector<8x128xf32>
    %495 = arith.addf %491, %494 : vector<8x128xf32>
    %496 = math.tanh %495 : vector<8x128xf32>
    %cst_103 = arith.constant 1.000000e+00 : f32
    %497 = vector.broadcast %cst_103 : f32 to vector<8x128xf32>
    %498 = arith.subf %497, %490 : vector<8x128xf32>
    %499 = arith.mulf %498, %496 : vector<8x128xf32>
    %500 = arith.mulf %490, %471 : vector<8x128xf32>
    %501 = arith.addf %499, %500 : vector<8x128xf32>
    %502 = vector.extract_strided_slice %286 {offsets = [7, 0, 0], sizes = [1, 8, 384], strides = [1, 1, 1]} : vector<8x8x384xf32> to vector<1x8x384xf32>
    %503 = vector.shape_cast %502 : vector<1x8x384xf32> to vector<8x384xf32>
    %cst_104 = arith.constant dense<0.000000e+00> : vector<8x384xf32>
    %504 = tpu.matmul %501, %287, %cst_104 {dimension_numbers = #tpu.dot_dimension_numbers<[1], [0], [0], [1], [0, 0, 1, 1], [], []>} : vector<8x128xf32>, vector<128x384xf32>, vector<8x384xf32> -> vector<8x384xf32>
    %505 = vector.extract_strided_slice %503 {offsets = [0, 0], sizes = [8, 128], strides = [1, 1]} : vector<8x384xf32> to vector<8x128xf32>
    %506 = vector.extract_strided_slice %504 {offsets = [0, 0], sizes = [8, 128], strides = [1, 1]} : vector<8x384xf32> to vector<8x128xf32>
    %507 = arith.addf %505, %506 : vector<8x128xf32>
    %508 = arith.negf %507 : vector<8x128xf32>
    %509 = math.exp %508 : vector<8x128xf32>
    %cst_105 = arith.constant 1.000000e+00 : f32
    %510 = vector.broadcast %cst_105 : f32 to vector<8x128xf32>
    %511 = arith.addf %510, %509 : vector<8x128xf32>
    %512 = arith.divf %510, %511 : vector<8x128xf32>
    %513 = vector.extract_strided_slice %503 {offsets = [0, 128], sizes = [8, 128], strides = [1, 1]} : vector<8x384xf32> to vector<8x128xf32>
    %514 = vector.extract_strided_slice %504 {offsets = [0, 128], sizes = [8, 128], strides = [1, 1]} : vector<8x384xf32> to vector<8x128xf32>
    %515 = arith.addf %513, %514 : vector<8x128xf32>
    %516 = arith.negf %515 : vector<8x128xf32>
    %517 = math.exp %516 : vector<8x128xf32>
    %cst_106 = arith.constant 1.000000e+00 : f32
    %518 = vector.broadcast %cst_106 : f32 to vector<8x128xf32>
    %519 = arith.addf %518, %517 : vector<8x128xf32>
    %520 = arith.divf %518, %519 : vector<8x128xf32>
    %521 = vector.extract_strided_slice %503 {offsets = [0, 256], sizes = [8, 128], strides = [1, 1]} : vector<8x384xf32> to vector<8x128xf32>
    %522 = vector.extract_strided_slice %504 {offsets = [0, 256], sizes = [8, 128], strides = [1, 1]} : vector<8x384xf32> to vector<8x128xf32>
    %523 = arith.addf %522, %290 : vector<8x128xf32>
    %524 = arith.mulf %512, %523 : vector<8x128xf32>
    %525 = arith.addf %521, %524 : vector<8x128xf32>
    %526 = math.tanh %525 : vector<8x128xf32>
    %cst_107 = arith.constant 1.000000e+00 : f32
    %527 = vector.broadcast %cst_107 : f32 to vector<8x128xf32>
    %528 = arith.subf %527, %520 : vector<8x128xf32>
    %529 = arith.mulf %528, %526 : vector<8x128xf32>
    %530 = arith.mulf %520, %501 : vector<8x128xf32>
    %531 = arith.addf %529, %530 : vector<8x128xf32>
    %c0_108 = arith.constant 0 : index
    %c0_109 = arith.constant 0 : index
    %532 = vector.load %arg10[%c0_108, %c0_109] : memref<256x128xf32, #tpu.memory_space<vmem>>, vector<128x128xf32>
    %cst_110 = arith.constant dense<0.000000e+00> : vector<8x128xf32>
    %533 = tpu.matmul %275, %532, %cst_110 {dimension_numbers = #tpu.dot_dimension_numbers<[1], [0], [0], [1], [0, 0, 1, 1], [], []>} : vector<8x128xf32>, vector<128x128xf32>, vector<8x128xf32> -> vector<8x128xf32>
    %c128 = arith.constant 128 : index
    %c0_111 = arith.constant 0 : index
    %534 = vector.load %arg10[%c128, %c0_111] : memref<256x128xf32, #tpu.memory_space<vmem>>, vector<128x128xf32>
    %cst_112 = arith.constant dense<0.000000e+00> : vector<8x128xf32>
    %535 = tpu.matmul %531, %534, %cst_112 {dimension_numbers = #tpu.dot_dimension_numbers<[1], [0], [0], [1], [0, 0, 1, 1], [], []>} : vector<8x128xf32>, vector<128x128xf32>, vector<8x128xf32> -> vector<8x128xf32>
    %536 = arith.addf %533, %535 : vector<8x128xf32>
    %c0_113 = arith.constant 0 : index
    %c0_114 = arith.constant 0 : index
    %537 = vector.load %arg11[%c0_113, %c0_114] : memref<1x128xf32, #tpu.memory_space<vmem>>, vector<1x128xf32>
    %538 = vector.broadcast %537 : vector<1x128xf32> to vector<8x128xf32>
    %539 = arith.addf %536, %538 : vector<8x128xf32>
    %cst_115 = arith.constant 0.000000e+00 : f32
    %540 = vector.broadcast %cst_115 : f32 to vector<8x128xf32>
    %541 = arith.maximumf %539, %540 : vector<8x128xf32>
    %c0_116 = arith.constant 0 : index
    %c0_117 = arith.constant 0 : index
    %542 = vector.load %arg12[%c0_116, %c0_117] : memref<128x5xf32, #tpu.memory_space<vmem>>, vector<128x5xf32>
    %cst_118 = arith.constant dense<0.000000e+00> : vector<8x5xf32>
    %543 = tpu.matmul %541, %542, %cst_118 {dimension_numbers = #tpu.dot_dimension_numbers<[1], [0], [0], [1], [0, 0, 1, 1], [], []>} : vector<8x128xf32>, vector<128x5xf32>, vector<8x5xf32> -> vector<8x5xf32>
    %c0_119 = arith.constant 0 : index
    %c0_120 = arith.constant 0 : index
    %544 = vector.load %arg13[%c0_119, %c0_120] : memref<1x5xf32, #tpu.memory_space<vmem>>, vector<1x5xf32>
    %545 = vector.broadcast %544 : vector<1x5xf32> to vector<8x5xf32>
    %546 = arith.addf %543, %545 : vector<8x5xf32>
    %547 = vector.extract_strided_slice %546 {offsets = [0, 0], sizes = [2, 5], strides = [1, 1]} : vector<8x5xf32> to vector<2x5xf32>
    %c0_121 = arith.constant 0 : index
    %c0_122 = arith.constant 0 : index
    %548 = vector.load %arg14[%c0_121, %c0_122] : memref<2x5xf32, #tpu.memory_space<vmem>>, vector<2x5xf32>
    tpu.vector_store %arg14[%c0_121, %c0_122], %547 {strides = array<i32>} : memref<2x5xf32, #tpu.memory_space<vmem>>, vector<2x5xf32>,
    return
  }
}

</mosaic_0001>

<llo_original>
// kernel: gru_module_forward.1
$region0: #{gru_module_forward.1}
  #allocation0 [shape = 'u32[]', space=smem, size = 0x4, offset = 0x4, fixed_abs, tag = 'smem constant byte address 0x4 - core index']
  #allocation1 [shape = 'u32[144,128]{1,0:T(1,128)}', space=vmem, size = 0x12000, scoped, tag = 'internal scratch']
  #allocation2 [shape = 'f32[8,8,128]{2,1,0:T(8,128)}', space=vmem, size = 0x8000, scoped, tag = 'scratch operand']
  %s0 = inlined_call_operand.vmem [shape: f32[64,16], index: 0, kind: input, shape index: {}]
  %s1 = inlined_call_operand.vmem [shape: f32[2,8,4], index: 1, kind: input, shape index: {}]
  %s2 = inlined_call_operand.vmem [shape: f32[4,384], index: 2, kind: input, shape index: {}]
  %s3 = inlined_call_operand.vmem [shape: f32[128,384], index: 3, kind: input, shape index: {}]
  %s4 = inlined_call_operand.vmem [shape: f32[1,384], index: 4, kind: input, shape index: {}]
  %s5 = inlined_call_operand.vmem [shape: f32[1,128], index: 5, kind: input, shape index: {}]
  %s6 = inlined_call_operand.vmem [shape: f32[128,384], index: 6, kind: input, shape index: {}]
  %s7 = inlined_call_operand.vmem [shape: f32[128,384], index: 7, kind: input, shape index: {}]
  %s8 = inlined_call_operand.vmem [shape: f32[1,384], index: 8, kind: input, shape index: {}]
  %s9 = inlined_call_operand.vmem [shape: f32[1,128], index: 9, kind: input, shape index: {}]
  %s10 = inlined_call_operand.vmem [shape: f32[256,128], index: 10, kind: input, shape index: {}]
  %s11 = inlined_call_operand.vmem [shape: f32[1,128], index: 11, kind: input, shape index: {}]
  %s12 = inlined_call_operand.vmem [shape: f32[128,5], index: 12, kind: input, shape index: {}]
  %s13 = inlined_call_operand.vmem [shape: f32[1,5], index: 13, kind: input, shape index: {}]
  %s14 = inlined_call_operand.hbm [shape: f32[2,5], index: 14, kind: output, shape index: {}]
  %s15 = sld [smem:[#allocation0]]
  $region66: #{gru_module_forward.1} parent=0
    _
  %s17 = ssub.s32 1, %s15
  %s18 = scalar_select 0, %s17, %s15
  $region1: #{gru_module_forward.1} parent=0
    #allocation3 [shape = 'u8[1024]{0}', space=vmem, size = 0x400, scoped, tag = 'output window, operand 0, single buffered']
    #allocation4 [shape = 's32[1]{0}', space=sflag, size = 0x4, scoped, tag = 'scoped memory for gru_module_forward.1']
    %19 = vsyncpa [#allocation4], 0
    // Predicated region
    $region2: #{gru_module_forward.1} parent=1 // pred_check
      _
    $region3: #{gru_module_forward.1} parent=1 // pred_check_branch
      %21 = sbr.rel (0) target = $region5
    $region4: #{gru_module_forward.1} parent=1 // pred_region
      _
    $region5: #{gru_module_forward.1} parent=1 // pred_fallthru
      _
    // Predicated region
    $region6: #{gru_module_forward.1} parent=1 // pred_check
      _
    $region7: #{gru_module_forward.1} parent=1 // pred_check_branch
      %23 = sbr.rel (0) target = $region9
    $region8: #{gru_module_forward.1} parent=1 // pred_region
      _
    $region9: #{gru_module_forward.1} parent=1 // pred_fallthru
      _
    // Predicated region
    $region10: #{gru_module_forward.1} parent=1 // pred_check
      _
    $region11: #{gru_module_forward.1} parent=1 // pred_check_branch
      %25 = sbr.rel (0) target = $region13
    $region12: #{gru_module_forward.1} parent=1 // pred_region
      _
    $region13: #{gru_module_forward.1} parent=1 // pred_fallthru
      _
    // Predicated region
    $region14: #{gru_module_forward.1} parent=1 // pred_check
      _
    $region15: #{gru_module_forward.1} parent=1 // pred_check_branch
      %27 = sbr.rel (0) target = $region17
    $region16: #{gru_module_forward.1} parent=1 // pred_region
      _
    $region17: #{gru_module_forward.1} parent=1 // pred_fallthru
      _
    // Predicated region
    $region18: #{gru_module_forward.1} parent=1 // pred_check
      _
    $region19: #{gru_module_forward.1} parent=1 // pred_check_branch
      %29 = sbr.rel (0) target = $region21
    $region20: #{gru_module_forward.1} parent=1 // pred_region
      _
    $region21: #{gru_module_forward.1} parent=1 // pred_fallthru
      _
    // Predicated region
    $region22: #{gru_module_forward.1} parent=1 // pred_check
      _
    $region23: #{gru_module_forward.1} parent=1 // pred_check_branch
      %31 = sbr.rel (0) target = $region25
    $region24: #{gru_module_forward.1} parent=1 // pred_region
      _
    $region25: #{gru_module_forward.1} parent=1 // pred_fallthru
      _
    // Predicated region
    $region26: #{gru_module_forward.1} parent=1 // pred_check
      _
    $region27: #{gru_module_forward.1} parent=1 // pred_check_branch
      %33 = sbr.rel (0) target = $region29
    $region28: #{gru_module_forward.1} parent=1 // pred_region
      _
    $region29: #{gru_module_forward.1} parent=1 // pred_fallthru
      _
    // Predicated region
    $region30: #{gru_module_forward.1} parent=1 // pred_check
      _
    $region31: #{gru_module_forward.1} parent=1 // pred_check_branch
      %35 = sbr.rel (0) target = $region33
    $region32: #{gru_module_forward.1} parent=1 // pred_region
      _
    $region33: #{gru_module_forward.1} parent=1 // pred_fallthru
      _
    // Predicated region
    $region34: #{gru_module_forward.1} parent=1 // pred_check
      _
    $region35: #{gru_module_forward.1} parent=1 // pred_check_branch
      %37 = sbr.rel (0) target = $region37
    $region36: #{gru_module_forward.1} parent=1 // pred_region
      _
    $region37: #{gru_module_forward.1} parent=1 // pred_fallthru
      _
    // Predicated region
    $region38: #{gru_module_forward.1} parent=1 // pred_check
      _
    $region39: #{gru_module_forward.1} parent=1 // pred_check_branch
      %39 = sbr.rel (0) target = $region41
    $region40: #{gru_module_forward.1} parent=1 // pred_region
      _
    $region41: #{gru_module_forward.1} parent=1 // pred_fallthru
      _
    // Predicated region
    $region42: #{gru_module_forward.1} parent=1 // pred_check
      _
    $region43: #{gru_module_forward.1} parent=1 // pred_check_branch
      %41 = sbr.rel (0) target = $region45
    $region44: #{gru_module_forward.1} parent=1 // pred_region
      _
    $region45: #{gru_module_forward.1} parent=1 // pred_fallthru
      _
    // Predicated region
    $region46: #{gru_module_forward.1} parent=1 // pred_check
      _
    $region47: #{gru_module_forward.1} parent=1 // pred_check_branch
      %43 = sbr.rel (0) target = $region49
    $region48: #{gru_module_forward.1} parent=1 // pred_region
      _
    $region49: #{gru_module_forward.1} parent=1 // pred_fallthru
      _
    // Predicated region
    $region50: #{gru_module_forward.1} parent=1 // pred_check
      _
    $region51: #{gru_module_forward.1} parent=1 // pred_check_branch
      %45 = sbr.rel (0) target = $region53
    $region52: #{gru_module_forward.1} parent=1 // pred_region
      _
    $region53: #{gru_module_forward.1} parent=1 // pred_fallthru
      _
    // Predicated region
    $region54: #{gru_module_forward.1} parent=1 // pred_check
      _
    $region55: #{gru_module_forward.1} parent=1 // pred_check_branch
      %47 = sbr.rel (0) target = $region57
    $region56: #{gru_module_forward.1} parent=1 // pred_region
      _
    $region57: #{gru_module_forward.1} parent=1 // pred_fallthru
      _
    %v48 = vld [vmem:[%s1] sm:$0xff]
    %v49 = vld [vmem:[%s1 + $0x8] sm:$0xff]
    %v50 = vld [vmem:[%s0] sm:$0xff]
    %v51 = vld [vmem:[%s0 + $0x8] sm:$0xff]
    %v52 = vld [vmem:[%s0 + $0x10] sm:$0xff]
    %v53 = vld [vmem:[%s0 + $0x18] sm:$0xff]
    %v54 = vld [vmem:[%s0 + $0x20] sm:$0xff]
    %v55 = vld [vmem:[%s0 + $0x28] sm:$0xff]
    %v56 = vld [vmem:[%s0 + $0x30] sm:$0xff]
    %v57 = vld [vmem:[%s0 + $0x38] sm:$0xff]
    %vm58 = vcmask 130048
    %v60 = vsel %vm58, %v50, 0
    %v63 = vsel %vm58, %v51, 0
    %v66 = vsel %vm58, %v52, 0
    %v69 = vsel %vm58, %v53, 0
    %v72 = vsel %vm58, %v54, 0
    %v75 = vsel %vm58, %v55, 0
    %v78 = vsel %vm58, %v56, 0
    %v81 = vsel %vm58, %v57, 0
    %83 = vmatprep.subr.mxu0 0.0
    %84 = vmatpush1.msra.mxu0 0.0
    %85 = vmatprep.subr.mxu0 0.0
    %86 = vmatpush1.msra.mxu0 0.0
    %87 = vmatprep.subr.mxu0 0.0
    %88 = vmatpush1.msra.mxu0 0.0
    %89 = vmatprep.subr.mxu0 0.0
    %90 = vmatpush1.msra.mxu0 0.0
    %91 = vmatprep.subr.mxu0 0.0
    %92 = vmatpush1.msra.mxu0 0.0
    %93 = vmatprep.subr.mxu0 0.0
    %94 = vmatpush1.msra.mxu0 0.0
    %95 = vmatprep.subr.mxu0 0.0
    %96 = vmatpush1.msra.mxu0 0.0
    %97 = vmatprep.subr.mxu0 0.0
    %98 = vmatpush1.msra.mxu0 0.0
    %99 = vmatprep.subr.mxu0 0.0
    %100 = vmatpush1.msra.mxu0 0.0
    %101 = vmatprep.subr.mxu0 0.0
    %102 = vmatpush1.msra.mxu0 0.0
    %103 = vmatprep.subr.mxu0 0.0
    %104 = vmatpush1.msra.mxu0 0.0
    %105 = vmatprep.subr.mxu0 0.0
    %106 = vmatpush1.msra.mxu0 0.0
    %107 = vmatprep.subr.mxu0 0.0
    %108 = vmatpush1.msra.mxu0 0.0
    %109 = vmatprep.subr.mxu0 0.0
    %110 = vmatpush1.msra.mxu0 0.0
    %111 = vmatprep.subr.mxu0 0.0
    %112 = vmatpush1.msra.mxu0 %v49
    %113 = vmatprep.subr.mxu0 0.0
    %114 = vmatpush1.msra.mxu0 %v48
    %115 = vmatprep.subr.mxu0 0.0
    %116 = vmatpush2.msra.mxu0 0.0
    %117 = vmatprep.subr.mxu0 0.0
    %118 = vmatpush2.msra.mxu0 0.0
    %119 = vmatprep.subr.mxu0 0.0
    %120 = vmatpush2.msra.mxu0 0.0
    %121 = vmatprep.subr.mxu0 0.0
    %122 = vmatpush2.msra.mxu0 0.0
    %123 = vmatprep.subr.mxu0 0.0
    %124 = vmatpush2.msra.mxu0 0.0
    %125 = vmatprep.subr.mxu0 0.0
    %126 = vmatpush2.msra.mxu0 0.0
    %127 = vmatprep.subr.mxu0 0.0
    %128 = vmatpush2.msra.mxu0 0.0
    %129 = vmatprep.subr.mxu0 0.0
    %130 = vmatpush2.msra.mxu0 0.0
    %131 = vmatprep.subr.mxu0 0.0
    %132 = vmatpush2.msra.mxu0 0.0
    %133 = vmatprep.subr.mxu0 0.0
    %134 = vmatpush2.msra.mxu0 0.0
    %135 = vmatprep.subr.mxu0 0.0
    %136 = vmatpush2.msra.mxu0 0.0
    %137 = vmatprep.subr.mxu0 0.0
    %138 = vmatpush2.msra.mxu0 0.0
    %139 = vmatprep.subr.mxu0 0.0
    %140 = vmatpush2.msra.mxu0 0.0
    %141 = vmatprep.subr.mxu0 0.0
    %142 = vmatpush2.msra.mxu0 0.0
    %143 = vmatprep.subr.mxu0 0.0
    %144 = vmatpush2.msra.mxu0 0.0
    %145 = vmatprep.subr.mxu0 0.0
    %146 = vmatpush2.msra.mxu0 0.0
    %147 = vmatprep.mubr.f32.mxu0 0.0
    %148 = vmatmul.mubr.f32.gmra.mxu0 %v60
    %v149 = vpop.f32.mrf.mxu0
    %v150 = vadd.f32 0.0, %v149
    %v151 = vpop.f32.mrf.mxu0
    %152 = vmatprep.mubr.f32.mxu0 0.0
    %153 = vmatmul.mubr.f32.gmra.mxu0 %v63
    %v154 = vpop.f32.mrf.mxu0
    %v155 = vadd.f32 0.0, %v154
    %v156 = vpop.f32.mrf.mxu0
    %157 = vmatprep.mubr.f32.mxu0 0.0
    %158 = vmatmul.mubr.f32.gmra.mxu0 %v66
    %v159 = vpop.f32.mrf.mxu0
    %v160 = vadd.f32 0.0, %v159
    %v161 = vpop.f32.mrf.mxu0
    %162 = vmatprep.mubr.f32.mxu0 0.0
    %163 = vmatmul.mubr.f32.gmra.mxu0 %v69
    %v164 = vpop.f32.mrf.mxu0
    %v165 = vadd.f32 0.0, %v164
    %v166 = vpop.f32.mrf.mxu0
    %167 = vmatprep.mubr.f32.mxu0 0.0
    %168 = vmatmul.mubr.f32.gmra.mxu0 %v72
    %v169 = vpop.f32.mrf.mxu0
    %v170 = vadd.f32 0.0, %v169
    %v171 = vpop.f32.mrf.mxu0
    %172 = vmatprep.mubr.f32.mxu0 0.0
    %173 = vmatmul.mubr.f32.gmra.mxu0 %v75
    %v174 = vpop.f32.mrf.mxu0
    %v175 = vadd.f32 0.0, %v174
    %v176 = vpop.f32.mrf.mxu0
    %177 = vmatprep.mubr.f32.mxu0 0.0
    %178 = vmatmul.mubr.f32.gmra.mxu0 %v78
    %v179 = vpop.f32.mrf.mxu0
    %v180 = vadd.f32 0.0, %v179
    %v181 = vpop.f32.mrf.mxu0
    %182 = vmatprep.mubr.f32.mxu0 0.0
    %183 = vmatmul.mubr.f32.gmra.mxu0 %v81
    %v184 = vpop.f32.mrf.mxu0
    %v185 = vadd.f32 0.0, %v184
    %v186 = vpop.f32.mrf.mxu0
    %187 = vdwg.mxu0
    %v188 = vld [vmem:[%s2] sm:$0xff]
    %v189 = vld [vmem:[%s2 + $0x8] sm:$0xf]
    %v190 = vld [vmem:[%s4] sm:$0x7]
    %v192 = vlaneseq
    %v193 = vshrl.u32 %v192, 7
    %v194 = vsub.s32 0, %v193
    %v195 = vrot.slane %v190, %v194
    %v196 = vlaneseq
    %v197 = vshrl.u32 %v196, 7
    %v198 = vsub.s32 1, %v197
    %v199 = vrot.slane %v190, %v198
    %v200 = vlaneseq
    %v201 = vshrl.u32 %v200, 7
    %v202 = vsub.s32 2, %v201
    %v203 = vrot.slane %v190, %v202
    %v209 = vcombine.high %v188, %v188
    %vm210 = vcmask 31744
    %v212 = vsel %vm210, %v150, 0
    %v215 = vsel %vm210, %v155, 0
    %v218 = vsel %vm210, %v160, 0
    %v221 = vsel %vm210, %v165, 0
    %v224 = vsel %vm210, %v170, 0
    %v227 = vsel %vm210, %v175, 0
    %v230 = vsel %vm210, %v180, 0
    %v233 = vsel %vm210, %v185, 0
    %vm235 = vcmask 1043456
    %v236 = vsel %vm235, %v188, 0
    %v238 = vsel %vm235, %v209, 0
    %v240 = vsel %vm235, %v189, 0
    %242 = vmatprep.subr.mxu0 0.0
    %243 = vmatpush1.msra.mxu0 0.0
    %244 = vmatprep.subr.mxu0 0.0
    %245 = vmatpush1.msra.mxu0 0.0
    %246 = vmatprep.subr.mxu0 0.0
    %247 = vmatpush1.msra.mxu0 0.0
    %248 = vmatprep.subr.mxu0 0.0
    %249 = vmatpush1.msra.mxu0 0.0
    %250 = vmatprep.subr.mxu0 0.0
    %251 = vmatpush1.msra.mxu0 0.0
    %252 = vmatprep.subr.mxu0 0.0
    %253 = vmatpush1.msra.mxu0 0.0
    %254 = vmatprep.subr.mxu0 0.0
    %255 = vmatpush1.msra.mxu0 0.0
    %256 = vmatprep.subr.mxu0 0.0
    %257 = vmatpush1.msra.mxu0 0.0
    %258 = vmatprep.subr.mxu0 0.0
    %259 = vmatpush1.msra.mxu0 0.0
    %260 = vmatprep.subr.mxu0 0.0
    %261 = vmatpush1.msra.mxu0 0.0
    %262 = vmatprep.subr.mxu0 0.0
    %263 = vmatpush1.msra.mxu0 0.0
    %264 = vmatprep.subr.mxu0 0.0
    %265 = vmatpush1.msra.mxu0 0.0
    %266 = vmatprep.subr.mxu0 0.0
    %267 = vmatpush1.msra.mxu0 0.0
    %268 = vmatprep.subr.mxu0 0.0
    %269 = vmatpush1.msra.mxu0 0.0
    %270 = vmatprep.subr.mxu0 0.0
    %271 = vmatpush1.msra.mxu0 0.0
    %272 = vmatprep.subr.mxu0 %v238
    %273 = vmatpush1.msra.mxu0 %v236
    %274 = vmatprep.subr.mxu0 0.0
    %275 = vmatpush2.msra.mxu0 0.0
    %276 = vmatprep.subr.mxu0 0.0
    %277 = vmatpush2.msra.mxu0 0.0
    %278 = vmatprep.subr.mxu0 0.0
    %279 = vmatpush2.msra.mxu0 0.0
    %280 = vmatprep.subr.mxu0 0.0
    %281 = vmatpush2.msra.mxu0 0.0
    %282 = vmatprep.subr.mxu0 0.0
    %283 = vmatpush2.msra.mxu0 0.0
    %284 = vmatprep.subr.mxu0 0.0
    %285 = vmatpush2.msra.mxu0 0.0
    %286 = vmatprep.subr.mxu0 0.0
    %287 = vmatpush2.msra.mxu0 0.0
    %288 = vmatprep.subr.mxu0 0.0
    %289 = vmatpush2.msra.mxu0 0.0
    %290 = vmatprep.subr.mxu0 0.0
    %291 = vmatpush2.msra.mxu0 0.0
    %292 = vmatprep.subr.mxu0 0.0
    %293 = vmatpush2.msra.mxu0 0.0
    %294 = vmatprep.subr.mxu0 0.0
    %295 = vmatpush2.msra.mxu0 0.0
    %296 = vmatprep.subr.mxu0 0.0
    %297 = vmatpush2.msra.mxu0 0.0
    %298 = vmatprep.subr.mxu0 0.0
    %299 = vmatpush2.msra.mxu0 0.0
    %300 = vmatprep.subr.mxu0 0.0
    %301 = vmatpush2.msra.mxu0 0.0
    %302 = vmatprep.subr.mxu0 0.0
    %303 = vmatpush2.msra.mxu0 0.0
    %304 = vmatprep.subr.mxu0 0.0
    %305 = vmatpush2.msra.mxu0 0.0
    %306 = vmatprep.mubr.f32.mxu0 0.0
    %307 = vmatmul.mubr.f32.gmra.mxu0 %v212
    %v308 = vpop.f32.mrf.mxu0
    %v309 = vadd.f32 %v195, %v308
    %v310 = vpop.f32.mrf.mxu0
    %v311 = vadd.f32 %v199, %v310
    %312 = vmatprep.mubr.f32.mxu0 0.0
    %313 = vmatmul.mubr.f32.gmra.mxu0 %v215
    %v314 = vpop.f32.mrf.mxu0
    %v315 = vadd.f32 %v195, %v314
    %v316 = vpop.f32.mrf.mxu0
    %v317 = vadd.f32 %v199, %v316
    %318 = vmatprep.mubr.f32.mxu0 0.0
    %319 = vmatmul.mubr.f32.gmra.mxu0 %v218
    %v320 = vpop.f32.mrf.mxu0
    %v321 = vadd.f32 %v195, %v320
    %v322 = vpop.f32.mrf.mxu0
    %v323 = vadd.f32 %v199, %v322
    %324 = vmatprep.mubr.f32.mxu0 0.0
    %325 = vmatmul.mubr.f32.gmra.mxu0 %v221
    %v326 = vpop.f32.mrf.mxu0
    %v327 = vadd.f32 %v195, %v326
    %v328 = vpop.f32.mrf.mxu0
    %v329 = vadd.f32 %v199, %v328
    %330 = vmatprep.mubr.f32.mxu0 0.0
    %331 = vmatmul.mubr.f32.gmra.mxu0 %v224
    %v332 = vpop.f32.mrf.mxu0
    %v333 = vadd.f32 %v195, %v332
    %v334 = vpop.f32.mrf.mxu0
    %v335 = vadd.f32 %v199, %v334
    %336 = vmatprep.mubr.f32.mxu0 0.0
    %337 = vmatmul.mubr.f32.gmra.mxu0 %v227
    %v338 = vpop.f32.mrf.mxu0
    %v339 = vadd.f32 %v195, %v338
    %v340 = vpop.f32.mrf.mxu0
    %v341 = vadd.f32 %v199, %v340
    %342 = vmatprep.mubr.f32.mxu0 0.0
    %343 = vmatmul.mubr.f32.gmra.mxu0 %v230
    %v344 = vpop.f32.mrf.mxu0
    %v345 = vadd.f32 %v195, %v344
    %v346 = vpop.f32.mrf.mxu0
    %v347 = vadd.f32 %v199, %v346
    %348 = vmatprep.mubr.f32.mxu0 0.0
    %349 = vmatmul.mubr.f32.gmra.mxu0 %v233
    %v350 = vpop.f32.mrf.mxu0
    %v351 = vadd.f32 %v195, %v350
    %v352 = vpop.f32.mrf.mxu0
    %v353 = vadd.f32 %v199, %v352
    %354 = vdwg.mxu0
    %355 = vmatprep.subr.mxu0 0.0
    %356 = vmatpush1.msra.mxu0 0.0
    %357 = vmatprep.subr.mxu0 0.0
    %358 = vmatpush1.msra.mxu0 0.0
    %359 = vmatprep.subr.mxu0 0.0
    %360 = vmatpush1.msra.mxu0 0.0
    %361 = vmatprep.subr.mxu0 0.0
    %362 = vmatpush1.msra.mxu0 0.0
    %363 = vmatprep.subr.mxu0 0.0
    %364 = vmatpush1.msra.mxu0 0.0
    %365 = vmatprep.subr.mxu0 0.0
    %366 = vmatpush1.msra.mxu0 0.0
    %367 = vmatprep.subr.mxu0 0.0
    %368 = vmatpush1.msra.mxu0 0.0
    %369 = vmatprep.subr.mxu0 0.0
    %370 = vmatpush1.msra.mxu0 0.0
    %371 = vmatprep.subr.mxu0 0.0
    %372 = vmatpush1.msra.mxu0 0.0
    %373 = vmatprep.subr.mxu0 0.0
    %374 = vmatpush1.msra.mxu0 0.0
    %375 = vmatprep.subr.mxu0 0.0
    %376 = vmatpush1.msra.mxu0 0.0
    %377 = vmatprep.subr.mxu0 0.0
    %378 = vmatpush1.msra.mxu0 0.0
    %379 = vmatprep.subr.mxu0 0.0
    %380 = vmatpush1.msra.mxu0 0.0
    %381 = vmatprep.subr.mxu0 0.0
    %382 = vmatpush1.msra.mxu0 0.0
    %383 = vmatprep.subr.mxu0 0.0
    %384 = vmatpush1.msra.mxu0 0.0
    %385 = vmatprep.subr.mxu0 0.0
    %386 = vmatpush1.msra.mxu0 %v240
    %387 = vmatprep.subr.mxu0 0.0
    %388 = vmatpush2.msra.mxu0 0.0
    %389 = vmatprep.subr.mxu0 0.0
    %390 = vmatpush2.msra.mxu0 0.0
    %391 = vmatprep.subr.mxu0 0.0
    %392 = vmatpush2.msra.mxu0 0.0
    %393 = vmatprep.subr.mxu0 0.0
    %394 = vmatpush2.msra.mxu0 0.0
    %395 = vmatprep.subr.mxu0 0.0
    %396 = vmatpush2.msra.mxu0 0.0
    %397 = vmatprep.subr.mxu0 0.0
    %398 = vmatpush2.msra.mxu0 0.0
    %399 = vmatprep.subr.mxu0 0.0
    %400 = vmatpush2.msra.mxu0 0.0
    %401 = vmatprep.subr.mxu0 0.0
    %402 = vmatpush2.msra.mxu0 0.0
    %403 = vmatprep.subr.mxu0 0.0
    %404 = vmatpush2.msra.mxu0 0.0
    %405 = vmatprep.subr.mxu0 0.0
    %406 = vmatpush2.msra.mxu0 0.0
    %407 = vmatprep.subr.mxu0 0.0
    %408 = vmatpush2.msra.mxu0 0.0
    %409 = vmatprep.subr.mxu0 0.0
    %410 = vmatpush2.msra.mxu0 0.0
    %411 = vmatprep.subr.mxu0 0.0
    %412 = vmatpush2.msra.mxu0 0.0
    %413 = vmatprep.subr.mxu0 0.0
    %414 = vmatpush2.msra.mxu0 0.0
    %415 = vmatprep.subr.mxu0 0.0
    %416 = vmatpush2.msra.mxu0 0.0
    %417 = vmatprep.subr.mxu0 0.0
    %418 = vmatpush2.msra.mxu0 0.0
    %419 = vmatprep.mubr.f32.mxu0 0.0
    %420 = vmatmul.mubr.f32.gmra.mxu0 %v212
    %v421 = vpop.f32.mrf.mxu0
    %v422 = vadd.f32 %v203, %v421
    %v423 = vpop.f32.mrf.mxu0
    %424 = vmatprep.mubr.f32.mxu0 0.0
    %425 = vmatmul.mubr.f32.gmra.mxu0 %v215
    %v426 = vpop.f32.mrf.mxu0
    %v427 = vadd.f32 %v203, %v426
    %v428 = vpop.f32.mrf.mxu0
    %429 = vmatprep.mubr.f32.mxu0 0.0
    %430 = vmatmul.mubr.f32.gmra.mxu0 %v218
    %v431 = vpop.f32.mrf.mxu0
    %v432 = vadd.f32 %v203, %v431
    %v433 = vpop.f32.mrf.mxu0
    %434 = vmatprep.mubr.f32.mxu0 0.0
    %435 = vmatmul.mubr.f32.gmra.mxu0 %v221
    %v436 = vpop.f32.mrf.mxu0
    %v437 = vadd.f32 %v203, %v436
    %v438 = vpop.f32.mrf.mxu0
    %439 = vmatprep.mubr.f32.mxu0 0.0
    %440 = vmatmul.mubr.f32.gmra.mxu0 %v224
    %v441 = vpop.f32.mrf.mxu0
    %v442 = vadd.f32 %v203, %v441
    %v443 = vpop.f32.mrf.mxu0
    %444 = vmatprep.mubr.f32.mxu0 0.0
    %445 = vmatmul.mubr.f32.gmra.mxu0 %v227
    %v446 = vpop.f32.mrf.mxu0
    %v447 = vadd.f32 %v203, %v446
    %v448 = vpop.f32.mrf.mxu0
    %449 = vmatprep.mubr.f32.mxu0 0.0
    %450 = vmatmul.mubr.f32.gmra.mxu0 %v230
    %v451 = vpop.f32.mrf.mxu0
    %v452 = vadd.f32 %v203, %v451
    %v453 = vpop.f32.mrf.mxu0
    %454 = vmatprep.mubr.f32.mxu0 0.0
    %455 = vmatmul.mubr.f32.gmra.mxu0 %v233
    %v456 = vpop.f32.mrf.mxu0
    %v457 = vadd.f32 %v203, %v456
    %v458 = vpop.f32.mrf.mxu0
    %459 = vdwg.mxu0
    %v460 = vld [vmem:[%s3] sm:$0xff]
    %v461 = vld [vmem:[%s3 + $0x8] sm:$0xff]
    %v462 = vld [vmem:[%s3 + $0x10] sm:$0xff]
    %v463 = vld [vmem:[%s3 + $0x18] sm:$0xff]
    %v464 = vld [vmem:[%s3 + $0x20] sm:$0xff]
    %v465 = vld [vmem:[%s3 + $0x28] sm:$0xff]
    %v466 = vld [vmem:[%s3 + $0x30] sm:$0xff]
    %v467 = vld [vmem:[%s3 + $0x38] sm:$0xff]
    %v468 = vld [vmem:[%s3 + $0x40] sm:$0xff]
    %v469 = vld [vmem:[%s3 + $0x48] sm:$0xff]
    %v470 = vld [vmem:[%s3 + $0x50] sm:$0xff]
    %v471 = vld [vmem:[%s3 + $0x58] sm:$0xff]
    %v472 = vld [vmem:[%s3 + $0x60] sm:$0xff]
    %v473 = vld [vmem:[%s3 + $0x68] sm:$0xff]
    %v474 = vld [vmem:[%s3 + $0x70] sm:$0xff]
    %v475 = vld [vmem:[%s3 + $0x78] sm:$0xff]
    %v476 = vld [vmem:[%s3 + $0x80] sm:$0xff]
    %v477 = vld [vmem:[%s3 + $0x88] sm:$0xff]
    %v478 = vld [vmem:[%s3 + $0x90] sm:$0xff]
    %v479 = vld [vmem:[%s3 + $0x98] sm:$0xff]
    %v480 = vld [vmem:[%s3 + $0xa0] sm:$0xff]
    %v481 = vld [vmem:[%s3 + $0xa8] sm:$0xff]
    %v482 = vld [vmem:[%s3 + $0xb0] sm:$0xff]
    %v483 = vld [vmem:[%s3 + $0xb8] sm:$0xff]
    %v484 = vld [vmem:[%s3 + $0xc0] sm:$0xff]
    %v485 = vld [vmem:[%s3 + $0xc8] sm:$0xff]
    %v486 = vld [vmem:[%s3 + $0xd0] sm:$0xff]
    %v487 = vld [vmem:[%s3 + $0xd8] sm:$0xff]
    %v488 = vld [vmem:[%s3 + $0xe0] sm:$0xff]
    %v489 = vld [vmem:[%s3 + $0xe8] sm:$0xff]
    %v490 = vld [vmem:[%s3 + $0xf0] sm:$0xff]
    %v491 = vld [vmem:[%s3 + $0xf8] sm:$0xff]
    %v492 = vld [vmem:[%s3 + $0x100] sm:$0xff]
    %v493 = vld [vmem:[%s3 + $0x108] sm:$0xff]
    %v494 = vld [vmem:[%s3 + $0x110] sm:$0xff]
    %v495 = vld [vmem:[%s3 + $0x118] sm:$0xff]
    %v496 = vld [vmem:[%s3 + $0x120] sm:$0xff]
    %v497 = vld [vmem:[%s3 + $0x128] sm:$0xff]
    %v498 = vld [vmem:[%s3 + $0x130] sm:$0xff]
    %v499 = vld [vmem:[%s3 + $0x138] sm:$0xff]
    %v500 = vld [vmem:[%s3 + $0x140] sm:$0xff]
    %v501 = vld [vmem:[%s3 + $0x148] sm:$0xff]
    %v502 = vld [vmem:[%s3 + $0x150] sm:$0xff]
    %v503 = vld [vmem:[%s3 + $0x158] sm:$0xff]
    %v504 = vld [vmem:[%s3 + $0x160] sm:$0xff]
    %v505 = vld [vmem:[%s3 + $0x168] sm:$0xff]
    %v506 = vld [vmem:[%s3 + $0x170] sm:$0xff]
    %v507 = vld [vmem:[%s3 + $0x178] sm:$0xff]
    %v508 = vld [vmem:[%s5] sm:$0x1]
    %v510 = vlaneseq
    %v511 = vshrl.u32 %v510, 7
    %v512 = vsub.s32 0, %v511
    %v513 = vrot.slane %v508, %v512
    %515 = vmatprep.subr.mxu0 %v506
    %516 = vmatpush1.msra.mxu0 %v505
    %517 = vmatprep.subr.mxu0 %v503
    %518 = vmatpush1.msra.mxu0 %v502
    %519 = vmatprep.subr.mxu0 %v500
    %520 = vmatpush1.msra.mxu0 %v499
    %521 = vmatprep.subr.mxu0 %v497
    %522 = vmatpush1.msra.mxu0 %v496
    %523 = vmatprep.subr.mxu0 %v494
    %524 = vmatpush1.msra.mxu0 %v493
    %525 = vmatprep.subr.mxu0 %v491
    %526 = vmatpush1.msra.mxu0 %v490
    %527 = vmatprep.subr.mxu0 %v488
    %528 = vmatpush1.msra.mxu0 %v487
    %529 = vmatprep.subr.mxu0 %v485
    %530 = vmatpush1.msra.mxu0 %v484
    %531 = vmatprep.subr.mxu0 %v482
    %532 = vmatpush1.msra.mxu0 %v481
    %533 = vmatprep.subr.mxu0 %v479
    %534 = vmatpush1.msra.mxu0 %v478
    %535 = vmatprep.subr.mxu0 %v476
    %536 = vmatpush1.msra.mxu0 %v475
    %537 = vmatprep.subr.mxu0 %v473
    %538 = vmatpush1.msra.mxu0 %v472
    %539 = vmatprep.subr.mxu0 %v470
    %540 = vmatpush1.msra.mxu0 %v469
    %541 = vmatprep.subr.mxu0 %v467
    %542 = vmatpush1.msra.mxu0 %v466
    %543 = vmatprep.subr.mxu0 %v464
    %544 = vmatpush1.msra.mxu0 %v463
    %545 = vmatprep.subr.mxu0 %v461
    %546 = vmatpush1.msra.mxu0 %v460
    %547 = vmatprep.subr.mxu0 0.0
    %548 = vmatpush2.msra.mxu0 0.0
    %549 = vmatprep.subr.mxu0 0.0
    %550 = vmatpush2.msra.mxu0 0.0
    %551 = vmatprep.subr.mxu0 0.0
    %552 = vmatpush2.msra.mxu0 0.0
    %553 = vmatprep.subr.mxu0 0.0
    %554 = vmatpush2.msra.mxu0 0.0
    %555 = vmatprep.subr.mxu0 0.0
    %556 = vmatpush2.msra.mxu0 0.0
    %557 = vmatprep.subr.mxu0 0.0
    %558 = vmatpush2.msra.mxu0 0.0
    %559 = vmatprep.subr.mxu0 0.0
    %560 = vmatpush2.msra.mxu0 0.0
    %561 = vmatprep.subr.mxu0 0.0
    %562 = vmatpush2.msra.mxu0 0.0
    %563 = vmatprep.subr.mxu0 0.0
    %564 = vmatpush2.msra.mxu0 0.0
    %565 = vmatprep.subr.mxu0 0.0
    %566 = vmatpush2.msra.mxu0 0.0
    %567 = vmatprep.subr.mxu0 0.0
    %568 = vmatpush2.msra.mxu0 0.0
    %569 = vmatprep.subr.mxu0 0.0
    %570 = vmatpush2.msra.mxu0 0.0
    %571 = vmatprep.subr.mxu0 0.0
    %572 = vmatpush2.msra.mxu0 0.0
    %573 = vmatprep.subr.mxu0 0.0
    %574 = vmatpush2.msra.mxu0 0.0
    %575 = vmatprep.subr.mxu0 0.0
    %576 = vmatpush2.msra.mxu0 0.0
    %577 = vmatprep.subr.mxu0 0.0
    %578 = vmatpush2.msra.mxu0 0.0
    %579 = vmatprep.mubr.f32.mxu0 0.0
    %580 = vmatmul.mubr.f32.gmra.mxu0 0.0
    %v581 = vpop.f32.mrf.mxu0
    %v582 = vadd.f32 0.0, %v581
    %v583 = vpop.f32.mrf.mxu0
    %v584 = vadd.f32 0.0, %v583
    %585 = vdwg.mxu0
    %586 = vmatprep.subr.mxu0 0.0
    %587 = vmatpush1.msra.mxu0 %v507
    %588 = vmatprep.subr.mxu0 0.0
    %589 = vmatpush1.msra.mxu0 %v504
    %590 = vmatprep.subr.mxu0 0.0
    %591 = vmatpush1.msra.mxu0 %v501
    %592 = vmatprep.subr.mxu0 0.0
    %593 = vmatpush1.msra.mxu0 %v498
    %594 = vmatprep.subr.mxu0 0.0
    %595 = vmatpush1.msra.mxu0 %v495
    %596 = vmatprep.subr.mxu0 0.0
    %597 = vmatpush1.msra.mxu0 %v492
    %598 = vmatprep.subr.mxu0 0.0
    %599 = vmatpush1.msra.mxu0 %v489
    %600 = vmatprep.subr.mxu0 0.0
    %601 = vmatpush1.msra.mxu0 %v486
    %602 = vmatprep.subr.mxu0 0.0
    %603 = vmatpush1.msra.mxu0 %v483
    %604 = vmatprep.subr.mxu0 0.0
    %605 = vmatpush1.msra.mxu0 %v480
    %606 = vmatprep.subr.mxu0 0.0
    %607 = vmatpush1.msra.mxu0 %v477
    %608 = vmatprep.subr.mxu0 0.0
    %609 = vmatpush1.msra.mxu0 %v474
    %610 = vmatprep.subr.mxu0 0.0
    %611 = vmatpush1.msra.mxu0 %v471
    %612 = vmatprep.subr.mxu0 0.0
    %613 = vmatpush1.msra.mxu0 %v468
    %614 = vmatprep.subr.mxu0 0.0
    %615 = vmatpush1.msra.mxu0 %v465
    %616 = vmatprep.subr.mxu0 0.0
    %617 = vmatpush1.msra.mxu0 %v462
    %618 = vmatprep.subr.mxu0 0.0
    %619 = vmatpush2.msra.mxu0 0.0
    %620 = vmatprep.subr.mxu0 0.0
    %621 = vmatpush2.msra.mxu0 0.0
    %622 = vmatprep.subr.mxu0 0.0
    %623 = vmatpush2.msra.mxu0 0.0
    %624 = vmatprep.subr.mxu0 0.0
    %625 = vmatpush2.msra.mxu0 0.0
    %626 = vmatprep.subr.mxu0 0.0
    %627 = vmatpush2.msra.mxu0 0.0
    %628 = vmatprep.subr.mxu0 0.0
    %629 = vmatpush2.msra.mxu0 0.0
    %630 = vmatprep.subr.mxu0 0.0
    %631 = vmatpush2.msra.mxu0 0.0
    %632 = vmatprep.subr.mxu0 0.0
    %633 = vmatpush2.msra.mxu0 0.0
    %634 = vmatprep.subr.mxu0 0.0
    %635 = vmatpush2.msra.mxu0 0.0
    %636 = vmatprep.subr.mxu0 0.0
    %637 = vmatpush2.msra.mxu0 0.0
    %638 = vmatprep.subr.mxu0 0.0
    %639 = vmatpush2.msra.mxu0 0.0
    %640 = vmatprep.subr.mxu0 0.0
    %641 = vmatpush2.msra.mxu0 0.0
    %642 = vmatprep.subr.mxu0 0.0
    %643 = vmatpush2.msra.mxu0 0.0
    %644 = vmatprep.subr.mxu0 0.0
    %645 = vmatpush2.msra.mxu0 0.0
    %646 = vmatprep.subr.mxu0 0.0
    %647 = vmatpush2.msra.mxu0 0.0
    %648 = vmatprep.subr.mxu0 0.0
    %649 = vmatpush2.msra.mxu0 0.0
    %650 = vmatprep.mubr.f32.mxu0 0.0
    %651 = vmatmul.mubr.f32.gmra.mxu0 0.0
    %v652 = vpop.f32.mrf.mxu0
    %v653 = vadd.f32 0.0, %v652
    %v654 = vpop.f32.mrf.mxu0
    %655 = vdwg.mxu0
    %v656 = vadd.f32 %v309, %v582
    %v657 = vxor.u32 %v656, 2147483648
    %v658 = vmul.f32 %v657, 1.442695
    %v659 = vpow.pop %v658
    %v660 = vadd.f32 %v659, 1.0
    %v661 = vrcp.pop %v660
    %v662 = vmul.f32 1.0, %v661
    %v663 = vadd.f32 %v311, %v584
    %v664 = vxor.u32 %v663, 2147483648
    %v665 = vmul.f32 %v664, 1.442695
    %v666 = vpow.pop %v665
    %v667 = vadd.f32 %v666, 1.0
    %v668 = vrcp.pop %v667
    %v669 = vmul.f32 1.0, %v668
    %v670 = vadd.f32 %v653, %v513
    %v671 = vmul.f32 %v662, %v670
    %v672 = vadd.f32 %v422, %v671
    %v673 = vtanh.pop %v672
    %v674 = vsub.f32 1.0, %v669
    %v675 = vmul.f32 %v674, %v673
    %v676 = vmul.f32 %v669, 0.0
    %v677 = vadd.f32 %v675, %v676
    %678 = vst [vmem:[#allocation2] sm:$0xff] %v677
    %679 = vmatprep.subr.mxu0 %v506
    %680 = vmatpush1.msra.mxu0 %v505
    %681 = vmatprep.subr.mxu0 %v503
    %682 = vmatpush1.msra.mxu0 %v502
    %683 = vmatprep.subr.mxu0 %v500
    %684 = vmatpush1.msra.mxu0 %v499
    %685 = vmatprep.subr.mxu0 %v497
    %686 = vmatpush1.msra.mxu0 %v496
    %687 = vmatprep.subr.mxu0 %v494
    %688 = vmatpush1.msra.mxu0 %v493
    %689 = vmatprep.subr.mxu0 %v491
    %690 = vmatpush1.msra.mxu0 %v490
    %691 = vmatprep.subr.mxu0 %v488
    %692 = vmatpush1.msra.mxu0 %v487
    %693 = vmatprep.subr.mxu0 %v485
    %694 = vmatpush1.msra.mxu0 %v484
    %695 = vmatprep.subr.mxu0 %v482
    %696 = vmatpush1.msra.mxu0 %v481
    %697 = vmatprep.subr.mxu0 %v479
    %698 = vmatpush1.msra.mxu0 %v478
    %699 = vmatprep.subr.mxu0 %v476
    %700 = vmatpush1.msra.mxu0 %v475
    %701 = vmatprep.subr.mxu0 %v473
    %702 = vmatpush1.msra.mxu0 %v472
    %703 = vmatprep.subr.mxu0 %v470
    %704 = vmatpush1.msra.mxu0 %v469
    %705 = vmatprep.subr.mxu0 %v467
    %706 = vmatpush1.msra.mxu0 %v466
    %707 = vmatprep.subr.mxu0 %v464
    %708 = vmatpush1.msra.mxu0 %v463
    %709 = vmatprep.subr.mxu0 %v461
    %710 = vmatpush1.msra.mxu0 %v460
    %711 = vmatprep.subr.mxu0 0.0
    %712 = vmatpush2.msra.mxu0 0.0
    %713 = vmatprep.subr.mxu0 0.0
    %714 = vmatpush2.msra.mxu0 0.0
    %715 = vmatprep.subr.mxu0 0.0
    %716 = vmatpush2.msra.mxu0 0.0
    %717 = vmatprep.subr.mxu0 0.0
    %718 = vmatpush2.msra.mxu0 0.0
    %719 = vmatprep.subr.mxu0 0.0
    %720 = vmatpush2.msra.mxu0 0.0
    %721 = vmatprep.subr.mxu0 0.0
    %722 = vmatpush2.msra.mxu0 0.0
    %723 = vmatprep.subr.mxu0 0.0
    %724 = vmatpush2.msra.mxu0 0.0
    %725 = vmatprep.subr.mxu0 0.0
    %726 = vmatpush2.msra.mxu0 0.0
    %727 = vmatprep.subr.mxu0 0.0
    %728 = vmatpush2.msra.mxu0 0.0
    %729 = vmatprep.subr.mxu0 0.0
    %730 = vmatpush2.msra.mxu0 0.0
    %731 = vmatprep.subr.mxu0 0.0
    %732 = vmatpush2.msra.mxu0 0.0
    %733 = vmatprep.subr.mxu0 0.0
    %734 = vmatpush2.msra.mxu0 0.0
    %735 = vmatprep.subr.mxu0 0.0
    %736 = vmatpush2.msra.mxu0 0.0
    %737 = vmatprep.subr.mxu0 0.0
    %738 = vmatpush2.msra.mxu0 0.0
    %739 = vmatprep.subr.mxu0 0.0
    %740 = vmatpush2.msra.mxu0 0.0
    %741 = vmatprep.subr.mxu0 0.0
    %742 = vmatpush2.msra.mxu0 0.0
    %743 = vmatprep.mubr.f32.mxu0 0.0
    %744 = vmatmul.mubr.f32.gmra.mxu0 %v677
    %v745 = vpop.f32.mrf.mxu0
    %v746 = vadd.f32 0.0, %v745
    %v747 = vpop.f32.mrf.mxu0
    %v748 = vadd.f32 0.0, %v747
    %749 = vdwg.mxu0
    %750 = vmatprep.subr.mxu0 0.0
    %751 = vmatpush1.msra.mxu0 %v507
    %752 = vmatprep.subr.mxu0 0.0
    %753 = vmatpush1.msra.mxu0 %v504
    %754 = vmatprep.subr.mxu0 0.0
    %755 = vmatpush1.msra.mxu0 %v501
    %756 = vmatprep.subr.mxu0 0.0
    %757 = vmatpush1.msra.mxu0 %v498
    %758 = vmatprep.subr.mxu0 0.0
    %759 = vmatpush1.msra.mxu0 %v495
    %760 = vmatprep.subr.mxu0 0.0
    %761 = vmatpush1.msra.mxu0 %v492
    %762 = vmatprep.subr.mxu0 0.0
    %763 = vmatpush1.msra.mxu0 %v489
    %764 = vmatprep.subr.mxu0 0.0
    %765 = vmatpush1.msra.mxu0 %v486
    %766 = vmatprep.subr.mxu0 0.0
    %767 = vmatpush1.msra.mxu0 %v483
    %768 = vmatprep.subr.mxu0 0.0
    %769 = vmatpush1.msra.mxu0 %v480
    %770 = vmatprep.subr.mxu0 0.0
    %771 = vmatpush1.msra.mxu0 %v477
    %772 = vmatprep.subr.mxu0 0.0
    %773 = vmatpush1.msra.mxu0 %v474
    %774 = vmatprep.subr.mxu0 0.0
    %775 = vmatpush1.msra.mxu0 %v471
    %776 = vmatprep.subr.mxu0 0.0
    %777 = vmatpush1.msra.mxu0 %v468
    %778 = vmatprep.subr.mxu0 0.0
    %779 = vmatpush1.msra.mxu0 %v465
    %780 = vmatprep.subr.mxu0 0.0
    %781 = vmatpush1.msra.mxu0 %v462
    %782 = vmatprep.subr.mxu0 0.0
    %783 = vmatpush2.msra.mxu0 0.0
    %784 = vmatprep.subr.mxu0 0.0
    %785 = vmatpush2.msra.mxu0 0.0
    %786 = vmatprep.subr.mxu0 0.0
    %787 = vmatpush2.msra.mxu0 0.0
    %788 = vmatprep.subr.mxu0 0.0
    %789 = vmatpush2.msra.mxu0 0.0
    %790 = vmatprep.subr.mxu0 0.0
    %791 = vmatpush2.msra.mxu0 0.0
    %792 = vmatprep.subr.mxu0 0.0
    %793 = vmatpush2.msra.mxu0 0.0
    %794 = vmatprep.subr.mxu0 0.0
    %795 = vmatpush2.msra.mxu0 0.0
    %796 = vmatprep.subr.mxu0 0.0
    %797 = vmatpush2.msra.mxu0 0.0
    %798 = vmatprep.subr.mxu0 0.0
    %799 = vmatpush2.msra.mxu0 0.0
    %800 = vmatprep.subr.mxu0 0.0
    %801 = vmatpush2.msra.mxu0 0.0
    %802 = vmatprep.subr.mxu0 0.0
    %803 = vmatpush2.msra.mxu0 0.0
    %804 = vmatprep.subr.mxu0 0.0
    %805 = vmatpush2.msra.mxu0 0.0
    %806 = vmatprep.subr.mxu0 0.0
    %807 = vmatpush2.msra.mxu0 0.0
    %808 = vmatprep.subr.mxu0 0.0
    %809 = vmatpush2.msra.mxu0 0.0
    %810 = vmatprep.subr.mxu0 0.0
    %811 = vmatpush2.msra.mxu0 0.0
    %812 = vmatprep.subr.mxu0 0.0
    %813 = vmatpush2.msra.mxu0 0.0
    %814 = vmatprep.mubr.f32.mxu0 0.0
    %815 = vmatmul.mubr.f32.gmra.mxu0 %v677
    %v816 = vpop.f32.mrf.mxu0
    %v817 = vadd.f32 0.0, %v816
    %v818 = vpop.f32.mrf.mxu0
    %819 = vdwg.mxu0
    %v820 = vadd.f32 %v315, %v746
    %v821 = vxor.u32 %v820, 2147483648
    %v822 = vmul.f32 %v821, 1.442695
    %v823 = vpow.pop %v822
    %v824 = vadd.f32 %v823, 1.0
    %v825 = vrcp.pop %v824
    %v826 = vmul.f32 1.0, %v825
    %v827 = vadd.f32 %v317, %v748
    %v828 = vxor.u32 %v827, 2147483648
    %v829 = vmul.f32 %v828, 1.442695
    %v830 = vpow.pop %v829
    %v831 = vadd.f32 %v830, 1.0
    %v832 = vrcp.pop %v831
    %v833 = vmul.f32 1.0, %v832
    %v834 = vadd.f32 %v817, %v513
    %v835 = vmul.f32 %v826, %v834
    %v836 = vadd.f32 %v427, %v835
    %v837 = vtanh.pop %v836
    %v838 = vsub.f32 1.0, %v833
    %v839 = vmul.f32 %v838, %v837
    %v840 = vmul.f32 %v833, %v677
    %v841 = vadd.f32 %v839, %v840
    %s842 = scalar_lea.vmem [#allocation2], 8
    %843 = vst [vmem:[%s842] sm:$0xff] %v841
    %844 = vmatprep.subr.mxu0 %v506
    %845 = vmatpush1.msra.mxu0 %v505
    %846 = vmatprep.subr.mxu0 %v503
    %847 = vmatpush1.msra.mxu0 %v502
    %848 = vmatprep.subr.mxu0 %v500
    %849 = vmatpush1.msra.mxu0 %v499
    %850 = vmatprep.subr.mxu0 %v497
    %851 = vmatpush1.msra.mxu0 %v496
    %852 = vmatprep.subr.mxu0 %v494
    %853 = vmatpush1.msra.mxu0 %v493
    %854 = vmatprep.subr.mxu0 %v491
    %855 = vmatpush1.msra.mxu0 %v490
    %856 = vmatprep.subr.mxu0 %v488
    %857 = vmatpush1.msra.mxu0 %v487
    %858 = vmatprep.subr.mxu0 %v485
    %859 = vmatpush1.msra.mxu0 %v484
    %860 = vmatprep.subr.mxu0 %v482
    %861 = vmatpush1.msra.mxu0 %v481
    %862 = vmatprep.subr.mxu0 %v479
    %863 = vmatpush1.msra.mxu0 %v478
    %864 = vmatprep.subr.mxu0 %v476
    %865 = vmatpush1.msra.mxu0 %v475
    %866 = vmatprep.subr.mxu0 %v473
    %867 = vmatpush1.msra.mxu0 %v472
    %868 = vmatprep.subr.mxu0 %v470
    %869 = vmatpush1.msra.mxu0 %v469
    %870 = vmatprep.subr.mxu0 %v467
    %871 = vmatpush1.msra.mxu0 %v466
    %872 = vmatprep.subr.mxu0 %v464
    %873 = vmatpush1.msra.mxu0 %v463
    %874 = vmatprep.subr.mxu0 %v461
    %875 = vmatpush1.msra.mxu0 %v460
    %876 = vmatprep.subr.mxu0 0.0
    %877 = vmatpush2.msra.mxu0 0.0
    %878 = vmatprep.subr.mxu0 0.0
    %879 = vmatpush2.msra.mxu0 0.0
    %880 = vmatprep.subr.mxu0 0.0
    %881 = vmatpush2.msra.mxu0 0.0
    %882 = vmatprep.subr.mxu0 0.0
    %883 = vmatpush2.msra.mxu0 0.0
    %884 = vmatprep.subr.mxu0 0.0
    %885 = vmatpush2.msra.mxu0 0.0
    %886 = vmatprep.subr.mxu0 0.0
    %887 = vmatpush2.msra.mxu0 0.0
    %888 = vmatprep.subr.mxu0 0.0
    %889 = vmatpush2.msra.mxu0 0.0
    %890 = vmatprep.subr.mxu0 0.0
    %891 = vmatpush2.msra.mxu0 0.0
    %892 = vmatprep.subr.mxu0 0.0
    %893 = vmatpush2.msra.mxu0 0.0
    %894 = vmatprep.subr.mxu0 0.0
    %895 = vmatpush2.msra.mxu0 0.0
    %896 = vmatprep.subr.mxu0 0.0
    %897 = vmatpush2.msra.mxu0 0.0
    %898 = vmatprep.subr.mxu0 0.0
    %899 = vmatpush2.msra.mxu0 0.0
    %900 = vmatprep.subr.mxu0 0.0
    %901 = vmatpush2.msra.mxu0 0.0
    %902 = vmatprep.subr.mxu0 0.0
    %903 = vmatpush2.msra.mxu0 0.0
    %904 = vmatprep.subr.mxu0 0.0
    %905 = vmatpush2.msra.mxu0 0.0
    %906 = vmatprep.subr.mxu0 0.0
    %907 = vmatpush2.msra.mxu0 0.0
    %908 = vmatprep.mubr.f32.mxu0 0.0
    %909 = vmatmul.mubr.f32.gmra.mxu0 %v841
    %v910 = vpop.f32.mrf.mxu0
    %v911 = vadd.f32 0.0, %v910
    %v912 = vpop.f32.mrf.mxu0
    %v913 = vadd.f32 0.0, %v912
    %914 = vdwg.mxu0
    %915 = vmatprep.subr.mxu0 0.0
    %916 = vmatpush1.msra.mxu0 %v507
    %917 = vmatprep.subr.mxu0 0.0
    %918 = vmatpush1.msra.mxu0 %v504
    %919 = vmatprep.subr.mxu0 0.0
    %920 = vmatpush1.msra.mxu0 %v501
    %921 = vmatprep.subr.mxu0 0.0
    %922 = vmatpush1.msra.mxu0 %v498
    %923 = vmatprep.subr.mxu0 0.0
    %924 = vmatpush1.msra.mxu0 %v495
    %925 = vmatprep.subr.mxu0 0.0
    %926 = vmatpush1.msra.mxu0 %v492
    %927 = vmatprep.subr.mxu0 0.0
    %928 = vmatpush1.msra.mxu0 %v489
    %929 = vmatprep.subr.mxu0 0.0
    %930 = vmatpush1.msra.mxu0 %v486
    %931 = vmatprep.subr.mxu0 0.0
    %932 = vmatpush1.msra.mxu0 %v483
    %933 = vmatprep.subr.mxu0 0.0
    %934 = vmatpush1.msra.mxu0 %v480
    %935 = vmatprep.subr.mxu0 0.0
    %936 = vmatpush1.msra.mxu0 %v477
    %937 = vmatprep.subr.mxu0 0.0
    %938 = vmatpush1.msra.mxu0 %v474
    %939 = vmatprep.subr.mxu0 0.0
    %940 = vmatpush1.msra.mxu0 %v471
    %941 = vmatprep.subr.mxu0 0.0
    %942 = vmatpush1.msra.mxu0 %v468
    %943 = vmatprep.subr.mxu0 0.0
    %944 = vmatpush1.msra.mxu0 %v465
    %945 = vmatprep.subr.mxu0 0.0
    %946 = vmatpush1.msra.mxu0 %v462
    %947 = vmatprep.subr.mxu0 0.0
    %948 = vmatpush2.msra.mxu0 0.0
    %949 = vmatprep.subr.mxu0 0.0
    %950 = vmatpush2.msra.mxu0 0.0
    %951 = vmatprep.subr.mxu0 0.0
    %952 = vmatpush2.msra.mxu0 0.0
    %953 = vmatprep.subr.mxu0 0.0
    %954 = vmatpush2.msra.mxu0 0.0
    %955 = vmatprep.subr.mxu0 0.0
    %956 = vmatpush2.msra.mxu0 0.0
    %957 = vmatprep.subr.mxu0 0.0
    %958 = vmatpush2.msra.mxu0 0.0
    %959 = vmatprep.subr.mxu0 0.0
    %960 = vmatpush2.msra.mxu0 0.0
    %961 = vmatprep.subr.mxu0 0.0
    %962 = vmatpush2.msra.mxu0 0.0
    %963 = vmatprep.subr.mxu0 0.0
    %964 = vmatpush2.msra.mxu0 0.0
    %965 = vmatprep.subr.mxu0 0.0
    %966 = vmatpush2.msra.mxu0 0.0
    %967 = vmatprep.subr.mxu0 0.0
    %968 = vmatpush2.msra.mxu0 0.0
    %969 = vmatprep.subr.mxu0 0.0
    %970 = vmatpush2.msra.mxu0 0.0
    %971 = vmatprep.subr.mxu0 0.0
    %972 = vmatpush2.msra.mxu0 0.0
    %973 = vmatprep.subr.mxu0 0.0
    %974 = vmatpush2.msra.mxu0 0.0
    %975 = vmatprep.subr.mxu0 0.0
    %976 = vmatpush2.msra.mxu0 0.0
    %977 = vmatprep.subr.mxu0 0.0
    %978 = vmatpush2.msra.mxu0 0.0
    %979 = vmatprep.mubr.f32.mxu0 0.0
    %980 = vmatmul.mubr.f32.gmra.mxu0 %v841
    %v981 = vpop.f32.mrf.mxu0
    %v982 = vadd.f32 0.0, %v981
    %v983 = vpop.f32.mrf.mxu0
    %984 = vdwg.mxu0
    %v985 = vadd.f32 %v321, %v911
    %v986 = vxor.u32 %v985, 2147483648
    %v987 = vmul.f32 %v986, 1.442695
    %v988 = vpow.pop %v987
    %v989 = vadd.f32 %v988, 1.0
    %v990 = vrcp.pop %v989
    %v991 = vmul.f32 1.0, %v990
    %v992 = vadd.f32 %v323, %v913
    %v993 = vxor.u32 %v992, 2147483648
    %v994 = vmul.f32 %v993, 1.442695
    %v995 = vpow.pop %v994
    %v996 = vadd.f32 %v995, 1.0
    %v997 = vrcp.pop %v996
    %v998 = vmul.f32 1.0, %v997
    %v999 = vadd.f32 %v982, %v513
    %v1000 = vmul.f32 %v991, %v999
    %v1001 = vadd.f32 %v432, %v1000
    %v1002 = vtanh.pop %v1001
    %v1003 = vsub.f32 1.0, %v998
    %v1004 = vmul.f32 %v1003, %v1002
    %v1005 = vmul.f32 %v998, %v841
    %v1006 = vadd.f32 %v1004, %v1005
    %s1007 = scalar_lea.vmem [#allocation2], 16
    %1008 = vst [vmem:[%s1007] sm:$0xff] %v1006
    %1009 = vmatprep.subr.mxu0 %v506
    %1010 = vmatpush1.msra.mxu0 %v505
    %1011 = vmatprep.subr.mxu0 %v503
    %1012 = vmatpush1.msra.mxu0 %v502
    %1013 = vmatprep.subr.mxu0 %v500
    %1014 = vmatpush1.msra.mxu0 %v499
    %1015 = vmatprep.subr.mxu0 %v497
    %1016 = vmatpush1.msra.mxu0 %v496
    %1017 = vmatprep.subr.mxu0 %v494
    %1018 = vmatpush1.msra.mxu0 %v493
    %1019 = vmatprep.subr.mxu0 %v491
    %1020 = vmatpush1.msra.mxu0 %v490
    %1021 = vmatprep.subr.mxu0 %v488
    %1022 = vmatpush1.msra.mxu0 %v487
    %1023 = vmatprep.subr.mxu0 %v485
    %1024 = vmatpush1.msra.mxu0 %v484
    %1025 = vmatprep.subr.mxu0 %v482
    %1026 = vmatpush1.msra.mxu0 %v481
    %1027 = vmatprep.subr.mxu0 %v479
    %1028 = vmatpush1.msra.mxu0 %v478
    %1029 = vmatprep.subr.mxu0 %v476
    %1030 = vmatpush1.msra.mxu0 %v475
    %1031 = vmatprep.subr.mxu0 %v473
    %1032 = vmatpush1.msra.mxu0 %v472
    %1033 = vmatprep.subr.mxu0 %v470
    %1034 = vmatpush1.msra.mxu0 %v469
    %1035 = vmatprep.subr.mxu0 %v467
    %1036 = vmatpush1.msra.mxu0 %v466
    %1037 = vmatprep.subr.mxu0 %v464
    %1038 = vmatpush1.msra.mxu0 %v463
    %1039 = vmatprep.subr.mxu0 %v461
    %1040 = vmatpush1.msra.mxu0 %v460
    %1041 = vmatprep.subr.mxu0 0.0
    %1042 = vmatpush2.msra.mxu0 0.0
    %1043 = vmatprep.subr.mxu0 0.0
    %1044 = vmatpush2.msra.mxu0 0.0
    %1045 = vmatprep.subr.mxu0 0.0
    %1046 = vmatpush2.msra.mxu0 0.0
    %1047 = vmatprep.subr.mxu0 0.0
    %1048 = vmatpush2.msra.mxu0 0.0
    %1049 = vmatprep.subr.mxu0 0.0
    %1050 = vmatpush2.msra.mxu0 0.0
    %1051 = vmatprep.subr.mxu0 0.0
    %1052 = vmatpush2.msra.mxu0 0.0
    %1053 = vmatprep.subr.mxu0 0.0
    %1054 = vmatpush2.msra.mxu0 0.0
    %1055 = vmatprep.subr.mxu0 0.0
    %1056 = vmatpush2.msra.mxu0 0.0
    %1057 = vmatprep.subr.mxu0 0.0
    %1058 = vmatpush2.msra.mxu0 0.0
    %1059 = vmatprep.subr.mxu0 0.0
    %1060 = vmatpush2.msra.mxu0 0.0
    %1061 = vmatprep.subr.mxu0 0.0
    %1062 = vmatpush2.msra.mxu0 0.0
    %1063 = vmatprep.subr.mxu0 0.0
    %1064 = vmatpush2.msra.mxu0 0.0
    %1065 = vmatprep.subr.mxu0 0.0
    %1066 = vmatpush2.msra.mxu0 0.0
    %1067 = vmatprep.subr.mxu0 0.0
    %1068 = vmatpush2.msra.mxu0 0.0
    %1069 = vmatprep.subr.mxu0 0.0
    %1070 = vmatpush2.msra.mxu0 0.0
    %1071 = vmatprep.subr.mxu0 0.0
    %1072 = vmatpush2.msra.mxu0 0.0
    %1073 = vmatprep.mubr.f32.mxu0 0.0
    %1074 = vmatmul.mubr.f32.gmra.mxu0 %v1006
    %v1075 = vpop.f32.mrf.mxu0
    %v1076 = vadd.f32 0.0, %v1075
    %v1077 = vpop.f32.mrf.mxu0
    %v1078 = vadd.f32 0.0, %v1077
    %1079 = vdwg.mxu0
    %1080 = vmatprep.subr.mxu0 0.0
    %1081 = vmatpush1.msra.mxu0 %v507
    %1082 = vmatprep.subr.mxu0 0.0
    %1083 = vmatpush1.msra.mxu0 %v504
    %1084 = vmatprep.subr.mxu0 0.0
    %1085 = vmatpush1.msra.mxu0 %v501
    %1086 = vmatprep.subr.mxu0 0.0
    %1087 = vmatpush1.msra.mxu0 %v498
    %1088 = vmatprep.subr.mxu0 0.0
    %1089 = vmatpush1.msra.mxu0 %v495
    %1090 = vmatprep.subr.mxu0 0.0
    %1091 = vmatpush1.msra.mxu0 %v492
    %1092 = vmatprep.subr.mxu0 0.0
    %1093 = vmatpush1.msra.mxu0 %v489
    %1094 = vmatprep.subr.mxu0 0.0
    %1095 = vmatpush1.msra.mxu0 %v486
    %1096 = vmatprep.subr.mxu0 0.0
    %1097 = vmatpush1.msra.mxu0 %v483
    %1098 = vmatprep.subr.mxu0 0.0
    %1099 = vmatpush1.msra.mxu0 %v480
    %1100 = vmatprep.subr.mxu0 0.0
    %1101 = vmatpush1.msra.mxu0 %v477
    %1102 = vmatprep.subr.mxu0 0.0
    %1103 = vmatpush1.msra.mxu0 %v474
    %1104 = vmatprep.subr.mxu0 0.0
    %1105 = vmatpush1.msra.mxu0 %v471
    %1106 = vmatprep.subr.mxu0 0.0
    %1107 = vmatpush1.msra.mxu0 %v468
    %1108 = vmatprep.subr.mxu0 0.0
    %1109 = vmatpush1.msra.mxu0 %v465
    %1110 = vmatprep.subr.mxu0 0.0
    %1111 = vmatpush1.msra.mxu0 %v462
    %1112 = vmatprep.subr.mxu0 0.0
    %1113 = vmatpush2.msra.mxu0 0.0
    %1114 = vmatprep.subr.mxu0 0.0
    %1115 = vmatpush2.msra.mxu0 0.0
    %1116 = vmatprep.subr.mxu0 0.0
    %1117 = vmatpush2.msra.mxu0 0.0
    %1118 = vmatprep.subr.mxu0 0.0
    %1119 = vmatpush2.msra.mxu0 0.0
    %1120 = vmatprep.subr.mxu0 0.0
    %1121 = vmatpush2.msra.mxu0 0.0
    %1122 = vmatprep.subr.mxu0 0.0
    %1123 = vmatpush2.msra.mxu0 0.0
    %1124 = vmatprep.subr.mxu0 0.0
    %1125 = vmatpush2.msra.mxu0 0.0
    %1126 = vmatprep.subr.mxu0 0.0
    %1127 = vmatpush2.msra.mxu0 0.0
    %1128 = vmatprep.subr.mxu0 0.0
    %1129 = vmatpush2.msra.mxu0 0.0
    %1130 = vmatprep.subr.mxu0 0.0
    %1131 = vmatpush2.msra.mxu0 0.0
    %1132 = vmatprep.subr.mxu0 0.0
    %1133 = vmatpush2.msra.mxu0 0.0
    %1134 = vmatprep.subr.mxu0 0.0
    %1135 = vmatpush2.msra.mxu0 0.0
    %1136 = vmatprep.subr.mxu0 0.0
    %1137 = vmatpush2.msra.mxu0 0.0
    %1138 = vmatprep.subr.mxu0 0.0
    %1139 = vmatpush2.msra.mxu0 0.0
    %1140 = vmatprep.subr.mxu0 0.0
    %1141 = vmatpush2.msra.mxu0 0.0
    %1142 = vmatprep.subr.mxu0 0.0
    %1143 = vmatpush2.msra.mxu0 0.0
    %1144 = vmatprep.mubr.f32.mxu0 0.0
    %1145 = vmatmul.mubr.f32.gmra.mxu0 %v1006
    %v1146 = vpop.f32.mrf.mxu0
    %v1147 = vadd.f32 0.0, %v1146
    %v1148 = vpop.f32.mrf.mxu0
    %1149 = vdwg.mxu0
    %v1150 = vadd.f32 %v327, %v1076
    %v1151 = vxor.u32 %v1150, 2147483648
    %v1152 = vmul.f32 %v1151, 1.442695
    %v1153 = vpow.pop %v1152
    %v1154 = vadd.f32 %v1153, 1.0
    %v1155 = vrcp.pop %v1154
    %v1156 = vmul.f32 1.0, %v1155
    %v1157 = vadd.f32 %v329, %v1078
    %v1158 = vxor.u32 %v1157, 2147483648
    %v1159 = vmul.f32 %v1158, 1.442695
    %v1160 = vpow.pop %v1159
    %v1161 = vadd.f32 %v1160, 1.0
    %v1162 = vrcp.pop %v1161
    %v1163 = vmul.f32 1.0, %v1162
    %v1164 = vadd.f32 %v1147, %v513
    %v1165 = vmul.f32 %v1156, %v1164
    %v1166 = vadd.f32 %v437, %v1165
    %v1167 = vtanh.pop %v1166
    %v1168 = vsub.f32 1.0, %v1163
    %v1169 = vmul.f32 %v1168, %v1167
    %v1170 = vmul.f32 %v1163, %v1006
    %v1171 = vadd.f32 %v1169, %v1170
    %s1172 = scalar_lea.vmem [#allocation2], 24
    %1173 = vst [vmem:[%s1172] sm:$0xff] %v1171
    %1174 = vmatprep.subr.mxu0 %v506
    %1175 = vmatpush1.msra.mxu0 %v505
    %1176 = vmatprep.subr.mxu0 %v503
    %1177 = vmatpush1.msra.mxu0 %v502
    %1178 = vmatprep.subr.mxu0 %v500
    %1179 = vmatpush1.msra.mxu0 %v499
    %1180 = vmatprep.subr.mxu0 %v497
    %1181 = vmatpush1.msra.mxu0 %v496
    %1182 = vmatprep.subr.mxu0 %v494
    %1183 = vmatpush1.msra.mxu0 %v493
    %1184 = vmatprep.subr.mxu0 %v491
    %1185 = vmatpush1.msra.mxu0 %v490
    %1186 = vmatprep.subr.mxu0 %v488
    %1187 = vmatpush1.msra.mxu0 %v487
    %1188 = vmatprep.subr.mxu0 %v485
    %1189 = vmatpush1.msra.mxu0 %v484
    %1190 = vmatprep.subr.mxu0 %v482
    %1191 = vmatpush1.msra.mxu0 %v481
    %1192 = vmatprep.subr.mxu0 %v479
    %1193 = vmatpush1.msra.mxu0 %v478
    %1194 = vmatprep.subr.mxu0 %v476
    %1195 = vmatpush1.msra.mxu0 %v475
    %1196 = vmatprep.subr.mxu0 %v473
    %1197 = vmatpush1.msra.mxu0 %v472
    %1198 = vmatprep.subr.mxu0 %v470
    %1199 = vmatpush1.msra.mxu0 %v469
    %1200 = vmatprep.subr.mxu0 %v467
    %1201 = vmatpush1.msra.mxu0 %v466
    %1202 = vmatprep.subr.mxu0 %v464
    %1203 = vmatpush1.msra.mxu0 %v463
    %1204 = vmatprep.subr.mxu0 %v461
    %1205 = vmatpush1.msra.mxu0 %v460
    %1206 = vmatprep.subr.mxu0 0.0
    %1207 = vmatpush2.msra.mxu0 0.0
    %1208 = vmatprep.subr.mxu0 0.0
    %1209 = vmatpush2.msra.mxu0 0.0
    %1210 = vmatprep.subr.mxu0 0.0
    %1211 = vmatpush2.msra.mxu0 0.0
    %1212 = vmatprep.subr.mxu0 0.0
    %1213 = vmatpush2.msra.mxu0 0.0
    %1214 = vmatprep.subr.mxu0 0.0
    %1215 = vmatpush2.msra.mxu0 0.0
    %1216 = vmatprep.subr.mxu0 0.0
    %1217 = vmatpush2.msra.mxu0 0.0
    %1218 = vmatprep.subr.mxu0 0.0
    %1219 = vmatpush2.msra.mxu0 0.0
    %1220 = vmatprep.subr.mxu0 0.0
    %1221 = vmatpush2.msra.mxu0 0.0
    %1222 = vmatprep.subr.mxu0 0.0
    %1223 = vmatpush2.msra.mxu0 0.0
    %1224 = vmatprep.subr.mxu0 0.0
    %1225 = vmatpush2.msra.mxu0 0.0
    %1226 = vmatprep.subr.mxu0 0.0
    %1227 = vmatpush2.msra.mxu0 0.0
    %1228 = vmatprep.subr.mxu0 0.0
    %1229 = vmatpush2.msra.mxu0 0.0
    %1230 = vmatprep.subr.mxu0 0.0
    %1231 = vmatpush2.msra.mxu0 0.0
    %1232 = vmatprep.subr.mxu0 0.0
    %1233 = vmatpush2.msra.mxu0 0.0
    %1234 = vmatprep.subr.mxu0 0.0
    %1235 = vmatpush2.msra.mxu0 0.0
    %1236 = vmatprep.subr.mxu0 0.0
    %1237 = vmatpush2.msra.mxu0 0.0
    %1238 = vmatprep.mubr.f32.mxu0 0.0
    %1239 = vmatmul.mubr.f32.gmra.mxu0 %v1171
    %v1240 = vpop.f32.mrf.mxu0
    %v1241 = vadd.f32 0.0, %v1240
    %v1242 = vpop.f32.mrf.mxu0
    %v1243 = vadd.f32 0.0, %v1242
    %1244 = vdwg.mxu0
    %1245 = vmatprep.subr.mxu0 0.0
    %1246 = vmatpush1.msra.mxu0 %v507
    %1247 = vmatprep.subr.mxu0 0.0
    %1248 = vmatpush1.msra.mxu0 %v504
    %1249 = vmatprep.subr.mxu0 0.0
    %1250 = vmatpush1.msra.mxu0 %v501
    %1251 = vmatprep.subr.mxu0 0.0
    %1252 = vmatpush1.msra.mxu0 %v498
    %1253 = vmatprep.subr.mxu0 0.0
    %1254 = vmatpush1.msra.mxu0 %v495
    %1255 = vmatprep.subr.mxu0 0.0
    %1256 = vmatpush1.msra.mxu0 %v492
    %1257 = vmatprep.subr.mxu0 0.0
    %1258 = vmatpush1.msra.mxu0 %v489
    %1259 = vmatprep.subr.mxu0 0.0
    %1260 = vmatpush1.msra.mxu0 %v486
    %1261 = vmatprep.subr.mxu0 0.0
    %1262 = vmatpush1.msra.mxu0 %v483
    %1263 = vmatprep.subr.mxu0 0.0
    %1264 = vmatpush1.msra.mxu0 %v480
    %1265 = vmatprep.subr.mxu0 0.0
    %1266 = vmatpush1.msra.mxu0 %v477
    %1267 = vmatprep.subr.mxu0 0.0
    %1268 = vmatpush1.msra.mxu0 %v474
    %1269 = vmatprep.subr.mxu0 0.0
    %1270 = vmatpush1.msra.mxu0 %v471
    %1271 = vmatprep.subr.mxu0 0.0
    %1272 = vmatpush1.msra.mxu0 %v468
    %1273 = vmatprep.subr.mxu0 0.0
    %1274 = vmatpush1.msra.mxu0 %v465
    %1275 = vmatprep.subr.mxu0 0.0
    %1276 = vmatpush1.msra.mxu0 %v462
    %1277 = vmatprep.subr.mxu0 0.0
    %1278 = vmatpush2.msra.mxu0 0.0
    %1279 = vmatprep.subr.mxu0 0.0
    %1280 = vmatpush2.msra.mxu0 0.0
    %1281 = vmatprep.subr.mxu0 0.0
    %1282 = vmatpush2.msra.mxu0 0.0
    %1283 = vmatprep.subr.mxu0 0.0
    %1284 = vmatpush2.msra.mxu0 0.0
    %1285 = vmatprep.subr.mxu0 0.0
    %1286 = vmatpush2.msra.mxu0 0.0
    %1287 = vmatprep.subr.mxu0 0.0
    %1288 = vmatpush2.msra.mxu0 0.0
    %1289 = vmatprep.subr.mxu0 0.0
    %1290 = vmatpush2.msra.mxu0 0.0
    %1291 = vmatprep.subr.mxu0 0.0
    %1292 = vmatpush2.msra.mxu0 0.0
    %1293 = vmatprep.subr.mxu0 0.0
    %1294 = vmatpush2.msra.mxu0 0.0
    %1295 = vmatprep.subr.mxu0 0.0
    %1296 = vmatpush2.msra.mxu0 0.0
    %1297 = vmatprep.subr.mxu0 0.0
    %1298 = vmatpush2.msra.mxu0 0.0
    %1299 = vmatprep.subr.mxu0 0.0
    %1300 = vmatpush2.msra.mxu0 0.0
    %1301 = vmatprep.subr.mxu0 0.0
    %1302 = vmatpush2.msra.mxu0 0.0
    %1303 = vmatprep.subr.mxu0 0.0
    %1304 = vmatpush2.msra.mxu0 0.0
    %1305 = vmatprep.subr.mxu0 0.0
    %1306 = vmatpush2.msra.mxu0 0.0
    %1307 = vmatprep.subr.mxu0 0.0
    %1308 = vmatpush2.msra.mxu0 0.0
    %1309 = vmatprep.mubr.f32.mxu0 0.0
    %1310 = vmatmul.mubr.f32.gmra.mxu0 %v1171
    %v1311 = vpop.f32.mrf.mxu0
    %v1312 = vadd.f32 0.0, %v1311
    %v1313 = vpop.f32.mrf.mxu0
    %1314 = vdwg.mxu0
    %v1315 = vadd.f32 %v333, %v1241
    %v1316 = vxor.u32 %v1315, 2147483648
    %v1317 = vmul.f32 %v1316, 1.442695
    %v1318 = vpow.pop %v1317
    %v1319 = vadd.f32 %v1318, 1.0
    %v1320 = vrcp.pop %v1319
    %v1321 = vmul.f32 1.0, %v1320
    %v1322 = vadd.f32 %v335, %v1243
    %v1323 = vxor.u32 %v1322, 2147483648
    %v1324 = vmul.f32 %v1323, 1.442695
    %v1325 = vpow.pop %v1324
    %v1326 = vadd.f32 %v1325, 1.0
    %v1327 = vrcp.pop %v1326
    %v1328 = vmul.f32 1.0, %v1327
    %v1329 = vadd.f32 %v1312, %v513
    %v1330 = vmul.f32 %v1321, %v1329
    %v1331 = vadd.f32 %v442, %v1330
    %v1332 = vtanh.pop %v1331
    %v1333 = vsub.f32 1.0, %v1328
    %v1334 = vmul.f32 %v1333, %v1332
    %v1335 = vmul.f32 %v1328, %v1171
    %v1336 = vadd.f32 %v1334, %v1335
    %s1337 = scalar_lea.vmem [#allocation2], 32
    %1338 = vst [vmem:[%s1337] sm:$0xff] %v1336
    %1339 = vmatprep.subr.mxu0 %v506
    %1340 = vmatpush1.msra.mxu0 %v505
    %1341 = vmatprep.subr.mxu0 %v503
    %1342 = vmatpush1.msra.mxu0 %v502
    %1343 = vmatprep.subr.mxu0 %v500
    %1344 = vmatpush1.msra.mxu0 %v499
    %1345 = vmatprep.subr.mxu0 %v497
    %1346 = vmatpush1.msra.mxu0 %v496
    %1347 = vmatprep.subr.mxu0 %v494
    %1348 = vmatpush1.msra.mxu0 %v493
    %1349 = vmatprep.subr.mxu0 %v491
    %1350 = vmatpush1.msra.mxu0 %v490
    %1351 = vmatprep.subr.mxu0 %v488
    %1352 = vmatpush1.msra.mxu0 %v487
    %1353 = vmatprep.subr.mxu0 %v485
    %1354 = vmatpush1.msra.mxu0 %v484
    %1355 = vmatprep.subr.mxu0 %v482
    %1356 = vmatpush1.msra.mxu0 %v481
    %1357 = vmatprep.subr.mxu0 %v479
    %1358 = vmatpush1.msra.mxu0 %v478
    %1359 = vmatprep.subr.mxu0 %v476
    %1360 = vmatpush1.msra.mxu0 %v475
    %1361 = vmatprep.subr.mxu0 %v473
    %1362 = vmatpush1.msra.mxu0 %v472
    %1363 = vmatprep.subr.mxu0 %v470
    %1364 = vmatpush1.msra.mxu0 %v469
    %1365 = vmatprep.subr.mxu0 %v467
    %1366 = vmatpush1.msra.mxu0 %v466
    %1367 = vmatprep.subr.mxu0 %v464
    %1368 = vmatpush1.msra.mxu0 %v463
    %1369 = vmatprep.subr.mxu0 %v461
    %1370 = vmatpush1.msra.mxu0 %v460
    %1371 = vmatprep.subr.mxu0 0.0
    %1372 = vmatpush2.msra.mxu0 0.0
    %1373 = vmatprep.subr.mxu0 0.0
    %1374 = vmatpush2.msra.mxu0 0.0
    %1375 = vmatprep.subr.mxu0 0.0
    %1376 = vmatpush2.msra.mxu0 0.0
    %1377 = vmatprep.subr.mxu0 0.0
    %1378 = vmatpush2.msra.mxu0 0.0
    %1379 = vmatprep.subr.mxu0 0.0
    %1380 = vmatpush2.msra.mxu0 0.0
    %1381 = vmatprep.subr.mxu0 0.0
    %1382 = vmatpush2.msra.mxu0 0.0
    %1383 = vmatprep.subr.mxu0 0.0
    %1384 = vmatpush2.msra.mxu0 0.0
    %1385 = vmatprep.subr.mxu0 0.0
    %1386 = vmatpush2.msra.mxu0 0.0
    %1387 = vmatprep.subr.mxu0 0.0
    %1388 = vmatpush2.msra.mxu0 0.0
    %1389 = vmatprep.subr.mxu0 0.0
    %1390 = vmatpush2.msra.mxu0 0.0
    %1391 = vmatprep.subr.mxu0 0.0
    %1392 = vmatpush2.msra.mxu0 0.0
    %1393 = vmatprep.subr.mxu0 0.0
    %1394 = vmatpush2.msra.mxu0 0.0
    %1395 = vmatprep.subr.mxu0 0.0
    %1396 = vmatpush2.msra.mxu0 0.0
    %1397 = vmatprep.subr.mxu0 0.0
    %1398 = vmatpush2.msra.mxu0 0.0
    %1399 = vmatprep.subr.mxu0 0.0
    %1400 = vmatpush2.msra.mxu0 0.0
    %1401 = vmatprep.subr.mxu0 0.0
    %1402 = vmatpush2.msra.mxu0 0.0
    %1403 = vmatprep.mubr.f32.mxu0 0.0
    %1404 = vmatmul.mubr.f32.gmra.mxu0 %v1336
    %v1405 = vpop.f32.mrf.mxu0
    %v1406 = vadd.f32 0.0, %v1405
    %v1407 = vpop.f32.mrf.mxu0
    %v1408 = vadd.f32 0.0, %v1407
    %1409 = vdwg.mxu0
    %1410 = vmatprep.subr.mxu0 0.0
    %1411 = vmatpush1.msra.mxu0 %v507
    %1412 = vmatprep.subr.mxu0 0.0
    %1413 = vmatpush1.msra.mxu0 %v504
    %1414 = vmatprep.subr.mxu0 0.0
    %1415 = vmatpush1.msra.mxu0 %v501
    %1416 = vmatprep.subr.mxu0 0.0
    %1417 = vmatpush1.msra.mxu0 %v498
    %1418 = vmatprep.subr.mxu0 0.0
    %1419 = vmatpush1.msra.mxu0 %v495
    %1420 = vmatprep.subr.mxu0 0.0
    %1421 = vmatpush1.msra.mxu0 %v492
    %1422 = vmatprep.subr.mxu0 0.0
    %1423 = vmatpush1.msra.mxu0 %v489
    %1424 = vmatprep.subr.mxu0 0.0
    %1425 = vmatpush1.msra.mxu0 %v486
    %1426 = vmatprep.subr.mxu0 0.0
    %1427 = vmatpush1.msra.mxu0 %v483
    %1428 = vmatprep.subr.mxu0 0.0
    %1429 = vmatpush1.msra.mxu0 %v480
    %1430 = vmatprep.subr.mxu0 0.0
    %1431 = vmatpush1.msra.mxu0 %v477
    %1432 = vmatprep.subr.mxu0 0.0
    %1433 = vmatpush1.msra.mxu0 %v474
    %1434 = vmatprep.subr.mxu0 0.0
    %1435 = vmatpush1.msra.mxu0 %v471
    %1436 = vmatprep.subr.mxu0 0.0
    %1437 = vmatpush1.msra.mxu0 %v468
    %1438 = vmatprep.subr.mxu0 0.0
    %1439 = vmatpush1.msra.mxu0 %v465
    %1440 = vmatprep.subr.mxu0 0.0
    %1441 = vmatpush1.msra.mxu0 %v462
    %1442 = vmatprep.subr.mxu0 0.0
    %1443 = vmatpush2.msra.mxu0 0.0
    %1444 = vmatprep.subr.mxu0 0.0
    %1445 = vmatpush2.msra.mxu0 0.0
    %1446 = vmatprep.subr.mxu0 0.0
    %1447 = vmatpush2.msra.mxu0 0.0
    %1448 = vmatprep.subr.mxu0 0.0
    %1449 = vmatpush2.msra.mxu0 0.0
    %1450 = vmatprep.subr.mxu0 0.0
    %1451 = vmatpush2.msra.mxu0 0.0
    %1452 = vmatprep.subr.mxu0 0.0
    %1453 = vmatpush2.msra.mxu0 0.0
    %1454 = vmatprep.subr.mxu0 0.0
    %1455 = vmatpush2.msra.mxu0 0.0
    %1456 = vmatprep.subr.mxu0 0.0
    %1457 = vmatpush2.msra.mxu0 0.0
    %1458 = vmatprep.subr.mxu0 0.0
    %1459 = vmatpush2.msra.mxu0 0.0
    %1460 = vmatprep.subr.mxu0 0.0
    %1461 = vmatpush2.msra.mxu0 0.0
    %1462 = vmatprep.subr.mxu0 0.0
    %1463 = vmatpush2.msra.mxu0 0.0
    %1464 = vmatprep.subr.mxu0 0.0
    %1465 = vmatpush2.msra.mxu0 0.0
    %1466 = vmatprep.subr.mxu0 0.0
    %1467 = vmatpush2.msra.mxu0 0.0
    %1468 = vmatprep.subr.mxu0 0.0
    %1469 = vmatpush2.msra.mxu0 0.0
    %1470 = vmatprep.subr.mxu0 0.0
    %1471 = vmatpush2.msra.mxu0 0.0
    %1472 = vmatprep.subr.mxu0 0.0
    %1473 = vmatpush2.msra.mxu0 0.0
    %1474 = vmatprep.mubr.f32.mxu0 0.0
    %1475 = vmatmul.mubr.f32.gmra.mxu0 %v1336
    %v1476 = vpop.f32.mrf.mxu0
    %v1477 = vadd.f32 0.0, %v1476
    %v1478 = vpop.f32.mrf.mxu0
    %1479 = vdwg.mxu0
    %v1480 = vadd.f32 %v339, %v1406
    %v1481 = vxor.u32 %v1480, 2147483648
    %v1482 = vmul.f32 %v1481, 1.442695
    %v1483 = vpow.pop %v1482
    %v1484 = vadd.f32 %v1483, 1.0
    %v1485 = vrcp.pop %v1484
    %v1486 = vmul.f32 1.0, %v1485
    %v1487 = vadd.f32 %v341, %v1408
    %v1488 = vxor.u32 %v1487, 2147483648
    %v1489 = vmul.f32 %v1488, 1.442695
    %v1490 = vpow.pop %v1489
    %v1491 = vadd.f32 %v1490, 1.0
    %v1492 = vrcp.pop %v1491
    %v1493 = vmul.f32 1.0, %v1492
    %v1494 = vadd.f32 %v1477, %v513
    %v1495 = vmul.f32 %v1486, %v1494
    %v1496 = vadd.f32 %v447, %v1495
    %v1497 = vtanh.pop %v1496
    %v1498 = vsub.f32 1.0, %v1493
    %v1499 = vmul.f32 %v1498, %v1497
    %v1500 = vmul.f32 %v1493, %v1336
    %v1501 = vadd.f32 %v1499, %v1500
    %s1502 = scalar_lea.vmem [#allocation2], 40
    %1503 = vst [vmem:[%s1502] sm:$0xff] %v1501
    %1504 = vmatprep.subr.mxu0 %v506
    %1505 = vmatpush1.msra.mxu0 %v505
    %1506 = vmatprep.subr.mxu0 %v503
    %1507 = vmatpush1.msra.mxu0 %v502
    %1508 = vmatprep.subr.mxu0 %v500
    %1509 = vmatpush1.msra.mxu0 %v499
    %1510 = vmatprep.subr.mxu0 %v497
    %1511 = vmatpush1.msra.mxu0 %v496
    %1512 = vmatprep.subr.mxu0 %v494
    %1513 = vmatpush1.msra.mxu0 %v493
    %1514 = vmatprep.subr.mxu0 %v491
    %1515 = vmatpush1.msra.mxu0 %v490
    %1516 = vmatprep.subr.mxu0 %v488
    %1517 = vmatpush1.msra.mxu0 %v487
    %1518 = vmatprep.subr.mxu0 %v485
    %1519 = vmatpush1.msra.mxu0 %v484
    %1520 = vmatprep.subr.mxu0 %v482
    %1521 = vmatpush1.msra.mxu0 %v481
    %1522 = vmatprep.subr.mxu0 %v479
    %1523 = vmatpush1.msra.mxu0 %v478
    %1524 = vmatprep.subr.mxu0 %v476
    %1525 = vmatpush1.msra.mxu0 %v475
    %1526 = vmatprep.subr.mxu0 %v473
    %1527 = vmatpush1.msra.mxu0 %v472
    %1528 = vmatprep.subr.mxu0 %v470
    %1529 = vmatpush1.msra.mxu0 %v469
    %1530 = vmatprep.subr.mxu0 %v467
    %1531 = vmatpush1.msra.mxu0 %v466
    %1532 = vmatprep.subr.mxu0 %v464
    %1533 = vmatpush1.msra.mxu0 %v463
    %1534 = vmatprep.subr.mxu0 %v461
    %1535 = vmatpush1.msra.mxu0 %v460
    %1536 = vmatprep.subr.mxu0 0.0
    %1537 = vmatpush2.msra.mxu0 0.0
    %1538 = vmatprep.subr.mxu0 0.0
    %1539 = vmatpush2.msra.mxu0 0.0
    %1540 = vmatprep.subr.mxu0 0.0
    %1541 = vmatpush2.msra.mxu0 0.0
    %1542 = vmatprep.subr.mxu0 0.0
    %1543 = vmatpush2.msra.mxu0 0.0
    %1544 = vmatprep.subr.mxu0 0.0
    %1545 = vmatpush2.msra.mxu0 0.0
    %1546 = vmatprep.subr.mxu0 0.0
    %1547 = vmatpush2.msra.mxu0 0.0
    %1548 = vmatprep.subr.mxu0 0.0
    %1549 = vmatpush2.msra.mxu0 0.0
    %1550 = vmatprep.subr.mxu0 0.0
    %1551 = vmatpush2.msra.mxu0 0.0
    %1552 = vmatprep.subr.mxu0 0.0
    %1553 = vmatpush2.msra.mxu0 0.0
    %1554 = vmatprep.subr.mxu0 0.0
    %1555 = vmatpush2.msra.mxu0 0.0
    %1556 = vmatprep.subr.mxu0 0.0
    %1557 = vmatpush2.msra.mxu0 0.0
    %1558 = vmatprep.subr.mxu0 0.0
    %1559 = vmatpush2.msra.mxu0 0.0
    %1560 = vmatprep.subr.mxu0 0.0
    %1561 = vmatpush2.msra.mxu0 0.0
    %1562 = vmatprep.subr.mxu0 0.0
    %1563 = vmatpush2.msra.mxu0 0.0
    %1564 = vmatprep.subr.mxu0 0.0
    %1565 = vmatpush2.msra.mxu0 0.0
    %1566 = vmatprep.subr.mxu0 0.0
    %1567 = vmatpush2.msra.mxu0 0.0
    %1568 = vmatprep.mubr.f32.mxu0 0.0
    %1569 = vmatmul.mubr.f32.gmra.mxu0 %v1501
    %v1570 = vpop.f32.mrf.mxu0
    %v1571 = vadd.f32 0.0, %v1570
    %v1572 = vpop.f32.mrf.mxu0
    %v1573 = vadd.f32 0.0, %v1572
    %1574 = vdwg.mxu0
    %1575 = vmatprep.subr.mxu0 0.0
    %1576 = vmatpush1.msra.mxu0 %v507
    %1577 = vmatprep.subr.mxu0 0.0
    %1578 = vmatpush1.msra.mxu0 %v504
    %1579 = vmatprep.subr.mxu0 0.0
    %1580 = vmatpush1.msra.mxu0 %v501
    %1581 = vmatprep.subr.mxu0 0.0
    %1582 = vmatpush1.msra.mxu0 %v498
    %1583 = vmatprep.subr.mxu0 0.0
    %1584 = vmatpush1.msra.mxu0 %v495
    %1585 = vmatprep.subr.mxu0 0.0
    %1586 = vmatpush1.msra.mxu0 %v492
    %1587 = vmatprep.subr.mxu0 0.0
    %1588 = vmatpush1.msra.mxu0 %v489
    %1589 = vmatprep.subr.mxu0 0.0
    %1590 = vmatpush1.msra.mxu0 %v486
    %1591 = vmatprep.subr.mxu0 0.0
    %1592 = vmatpush1.msra.mxu0 %v483
    %1593 = vmatprep.subr.mxu0 0.0
    %1594 = vmatpush1.msra.mxu0 %v480
    %1595 = vmatprep.subr.mxu0 0.0
    %1596 = vmatpush1.msra.mxu0 %v477
    %1597 = vmatprep.subr.mxu0 0.0
    %1598 = vmatpush1.msra.mxu0 %v474
    %1599 = vmatprep.subr.mxu0 0.0
    %1600 = vmatpush1.msra.mxu0 %v471
    %1601 = vmatprep.subr.mxu0 0.0
    %1602 = vmatpush1.msra.mxu0 %v468
    %1603 = vmatprep.subr.mxu0 0.0
    %1604 = vmatpush1.msra.mxu0 %v465
    %1605 = vmatprep.subr.mxu0 0.0
    %1606 = vmatpush1.msra.mxu0 %v462
    %1607 = vmatprep.subr.mxu0 0.0
    %1608 = vmatpush2.msra.mxu0 0.0
    %1609 = vmatprep.subr.mxu0 0.0
    %1610 = vmatpush2.msra.mxu0 0.0
    %1611 = vmatprep.subr.mxu0 0.0
    %1612 = vmatpush2.msra.mxu0 0.0
    %1613 = vmatprep.subr.mxu0 0.0
    %1614 = vmatpush2.msra.mxu0 0.0
    %1615 = vmatprep.subr.mxu0 0.0
    %1616 = vmatpush2.msra.mxu0 0.0
    %1617 = vmatprep.subr.mxu0 0.0
    %1618 = vmatpush2.msra.mxu0 0.0
    %1619 = vmatprep.subr.mxu0 0.0
    %1620 = vmatpush2.msra.mxu0 0.0
    %1621 = vmatprep.subr.mxu0 0.0
    %1622 = vmatpush2.msra.mxu0 0.0
    %1623 = vmatprep.subr.mxu0 0.0
    %1624 = vmatpush2.msra.mxu0 0.0
    %1625 = vmatprep.subr.mxu0 0.0
    %1626 = vmatpush2.msra.mxu0 0.0
    %1627 = vmatprep.subr.mxu0 0.0
    %1628 = vmatpush2.msra.mxu0 0.0
    %1629 = vmatprep.subr.mxu0 0.0
    %1630 = vmatpush2.msra.mxu0 0.0
    %1631 = vmatprep.subr.mxu0 0.0
    %1632 = vmatpush2.msra.mxu0 0.0
    %1633 = vmatprep.subr.mxu0 0.0
    %1634 = vmatpush2.msra.mxu0 0.0
    %1635 = vmatprep.subr.mxu0 0.0
    %1636 = vmatpush2.msra.mxu0 0.0
    %1637 = vmatprep.subr.mxu0 0.0
    %1638 = vmatpush2.msra.mxu0 0.0
    %1639 = vmatprep.mubr.f32.mxu0 0.0
    %1640 = vmatmul.mubr.f32.gmra.mxu0 %v1501
    %v1641 = vpop.f32.mrf.mxu0
    %v1642 = vadd.f32 0.0, %v1641
    %v1643 = vpop.f32.mrf.mxu0
    %1644 = vdwg.mxu0
    %v1645 = vadd.f32 %v345, %v1571
    %v1646 = vxor.u32 %v1645, 2147483648
    %v1647 = vmul.f32 %v1646, 1.442695
    %v1648 = vpow.pop %v1647
    %v1649 = vadd.f32 %v1648, 1.0
    %v1650 = vrcp.pop %v1649
    %v1651 = vmul.f32 1.0, %v1650
    %v1652 = vadd.f32 %v347, %v1573
    %v1653 = vxor.u32 %v1652, 2147483648
    %v1654 = vmul.f32 %v1653, 1.442695
    %v1655 = vpow.pop %v1654
    %v1656 = vadd.f32 %v1655, 1.0
    %v1657 = vrcp.pop %v1656
    %v1658 = vmul.f32 1.0, %v1657
    %v1659 = vadd.f32 %v1642, %v513
    %v1660 = vmul.f32 %v1651, %v1659
    %v1661 = vadd.f32 %v452, %v1660
    %v1662 = vtanh.pop %v1661
    %v1663 = vsub.f32 1.0, %v1658
    %v1664 = vmul.f32 %v1663, %v1662
    %v1665 = vmul.f32 %v1658, %v1501
    %v1666 = vadd.f32 %v1664, %v1665
    %s1667 = scalar_lea.vmem [#allocation2], 48
    %1668 = vst [vmem:[%s1667] sm:$0xff] %v1666
    %1669 = vmatprep.subr.mxu0 %v506
    %1670 = vmatpush1.msra.mxu0 %v505
    %1671 = vmatprep.subr.mxu0 %v503
    %1672 = vmatpush1.msra.mxu0 %v502
    %1673 = vmatprep.subr.mxu0 %v500
    %1674 = vmatpush1.msra.mxu0 %v499
    %1675 = vmatprep.subr.mxu0 %v497
    %1676 = vmatpush1.msra.mxu0 %v496
    %1677 = vmatprep.subr.mxu0 %v494
    %1678 = vmatpush1.msra.mxu0 %v493
    %1679 = vmatprep.subr.mxu0 %v491
    %1680 = vmatpush1.msra.mxu0 %v490
    %1681 = vmatprep.subr.mxu0 %v488
    %1682 = vmatpush1.msra.mxu0 %v487
    %1683 = vmatprep.subr.mxu0 %v485
    %1684 = vmatpush1.msra.mxu0 %v484
    %1685 = vmatprep.subr.mxu0 %v482
    %1686 = vmatpush1.msra.mxu0 %v481
    %1687 = vmatprep.subr.mxu0 %v479
    %1688 = vmatpush1.msra.mxu0 %v478
    %1689 = vmatprep.subr.mxu0 %v476
    %1690 = vmatpush1.msra.mxu0 %v475
    %1691 = vmatprep.subr.mxu0 %v473
    %1692 = vmatpush1.msra.mxu0 %v472
    %1693 = vmatprep.subr.mxu0 %v470
    %1694 = vmatpush1.msra.mxu0 %v469
    %1695 = vmatprep.subr.mxu0 %v467
    %1696 = vmatpush1.msra.mxu0 %v466
    %1697 = vmatprep.subr.mxu0 %v464
    %1698 = vmatpush1.msra.mxu0 %v463
    %1699 = vmatprep.subr.mxu0 %v461
    %1700 = vmatpush1.msra.mxu0 %v460
    %1701 = vmatprep.subr.mxu0 0.0
    %1702 = vmatpush2.msra.mxu0 0.0
    %1703 = vmatprep.subr.mxu0 0.0
    %1704 = vmatpush2.msra.mxu0 0.0
    %1705 = vmatprep.subr.mxu0 0.0
    %1706 = vmatpush2.msra.mxu0 0.0
    %1707 = vmatprep.subr.mxu0 0.0
    %1708 = vmatpush2.msra.mxu0 0.0
    %1709 = vmatprep.subr.mxu0 0.0
    %1710 = vmatpush2.msra.mxu0 0.0
    %1711 = vmatprep.subr.mxu0 0.0
    %1712 = vmatpush2.msra.mxu0 0.0
    %1713 = vmatprep.subr.mxu0 0.0
    %1714 = vmatpush2.msra.mxu0 0.0
    %1715 = vmatprep.subr.mxu0 0.0
    %1716 = vmatpush2.msra.mxu0 0.0
    %1717 = vmatprep.subr.mxu0 0.0
    %1718 = vmatpush2.msra.mxu0 0.0
    %1719 = vmatprep.subr.mxu0 0.0
    %1720 = vmatpush2.msra.mxu0 0.0
    %1721 = vmatprep.subr.mxu0 0.0
    %1722 = vmatpush2.msra.mxu0 0.0
    %1723 = vmatprep.subr.mxu0 0.0
    %1724 = vmatpush2.msra.mxu0 0.0
    %1725 = vmatprep.subr.mxu0 0.0
    %1726 = vmatpush2.msra.mxu0 0.0
    %1727 = vmatprep.subr.mxu0 0.0
    %1728 = vmatpush2.msra.mxu0 0.0
    %1729 = vmatprep.subr.mxu0 0.0
    %1730 = vmatpush2.msra.mxu0 0.0
    %1731 = vmatprep.subr.mxu0 0.0
    %1732 = vmatpush2.msra.mxu0 0.0
    %1733 = vmatprep.mubr.f32.mxu0 0.0
    %1734 = vmatmul.mubr.f32.gmra.mxu0 %v1666
    %v1735 = vpop.f32.mrf.mxu0
    %v1736 = vadd.f32 0.0, %v1735
    %v1737 = vpop.f32.mrf.mxu0
    %v1738 = vadd.f32 0.0, %v1737
    %1739 = vdwg.mxu0
    %1740 = vmatprep.subr.mxu0 0.0
    %1741 = vmatpush1.msra.mxu0 %v507
    %1742 = vmatprep.subr.mxu0 0.0
    %1743 = vmatpush1.msra.mxu0 %v504
    %1744 = vmatprep.subr.mxu0 0.0
    %1745 = vmatpush1.msra.mxu0 %v501
    %1746 = vmatprep.subr.mxu0 0.0
    %1747 = vmatpush1.msra.mxu0 %v498
    %1748 = vmatprep.subr.mxu0 0.0
    %1749 = vmatpush1.msra.mxu0 %v495
    %1750 = vmatprep.subr.mxu0 0.0
    %1751 = vmatpush1.msra.mxu0 %v492
    %1752 = vmatprep.subr.mxu0 0.0
    %1753 = vmatpush1.msra.mxu0 %v489
    %1754 = vmatprep.subr.mxu0 0.0
    %1755 = vmatpush1.msra.mxu0 %v486
    %1756 = vmatprep.subr.mxu0 0.0
    %1757 = vmatpush1.msra.mxu0 %v483
    %1758 = vmatprep.subr.mxu0 0.0
    %1759 = vmatpush1.msra.mxu0 %v480
    %1760 = vmatprep.subr.mxu0 0.0
    %1761 = vmatpush1.msra.mxu0 %v477
    %1762 = vmatprep.subr.mxu0 0.0
    %1763 = vmatpush1.msra.mxu0 %v474
    %1764 = vmatprep.subr.mxu0 0.0
    %1765 = vmatpush1.msra.mxu0 %v471
    %1766 = vmatprep.subr.mxu0 0.0
    %1767 = vmatpush1.msra.mxu0 %v468
    %1768 = vmatprep.subr.mxu0 0.0
    %1769 = vmatpush1.msra.mxu0 %v465
    %1770 = vmatprep.subr.mxu0 0.0
    %1771 = vmatpush1.msra.mxu0 %v462
    %1772 = vmatprep.subr.mxu0 0.0
    %1773 = vmatpush2.msra.mxu0 0.0
    %1774 = vmatprep.subr.mxu0 0.0
    %1775 = vmatpush2.msra.mxu0 0.0
    %1776 = vmatprep.subr.mxu0 0.0
    %1777 = vmatpush2.msra.mxu0 0.0
    %1778 = vmatprep.subr.mxu0 0.0
    %1779 = vmatpush2.msra.mxu0 0.0
    %1780 = vmatprep.subr.mxu0 0.0
    %1781 = vmatpush2.msra.mxu0 0.0
    %1782 = vmatprep.subr.mxu0 0.0
    %1783 = vmatpush2.msra.mxu0 0.0
    %1784 = vmatprep.subr.mxu0 0.0
    %1785 = vmatpush2.msra.mxu0 0.0
    %1786 = vmatprep.subr.mxu0 0.0
    %1787 = vmatpush2.msra.mxu0 0.0
    %1788 = vmatprep.subr.mxu0 0.0
    %1789 = vmatpush2.msra.mxu0 0.0
    %1790 = vmatprep.subr.mxu0 0.0
    %1791 = vmatpush2.msra.mxu0 0.0
    %1792 = vmatprep.subr.mxu0 0.0
    %1793 = vmatpush2.msra.mxu0 0.0
    %1794 = vmatprep.subr.mxu0 0.0
    %1795 = vmatpush2.msra.mxu0 0.0
    %1796 = vmatprep.subr.mxu0 0.0
    %1797 = vmatpush2.msra.mxu0 0.0
    %1798 = vmatprep.subr.mxu0 0.0
    %1799 = vmatpush2.msra.mxu0 0.0
    %1800 = vmatprep.subr.mxu0 0.0
    %1801 = vmatpush2.msra.mxu0 0.0
    %1802 = vmatprep.subr.mxu0 0.0
    %1803 = vmatpush2.msra.mxu0 0.0
    %1804 = vmatprep.mubr.f32.mxu0 0.0
    %1805 = vmatmul.mubr.f32.gmra.mxu0 %v1666
    %v1806 = vpop.f32.mrf.mxu0
    %v1807 = vadd.f32 0.0, %v1806
    %v1808 = vpop.f32.mrf.mxu0
    %1809 = vdwg.mxu0
    %v1810 = vadd.f32 %v351, %v1736
    %v1811 = vxor.u32 %v1810, 2147483648
    %v1812 = vmul.f32 %v1811, 1.442695
    %v1813 = vpow.pop %v1812
    %v1814 = vadd.f32 %v1813, 1.0
    %v1815 = vrcp.pop %v1814
    %v1816 = vmul.f32 1.0, %v1815
    %v1817 = vadd.f32 %v353, %v1738
    %v1818 = vxor.u32 %v1817, 2147483648
    %v1819 = vmul.f32 %v1818, 1.442695
    %v1820 = vpow.pop %v1819
    %v1821 = vadd.f32 %v1820, 1.0
    %v1822 = vrcp.pop %v1821
    %v1823 = vmul.f32 1.0, %v1822
    %v1824 = vadd.f32 %v1807, %v513
    %v1825 = vmul.f32 %v1816, %v1824
    %v1826 = vadd.f32 %v457, %v1825
    %v1827 = vtanh.pop %v1826
    %v1828 = vsub.f32 1.0, %v1823
    %v1829 = vmul.f32 %v1828, %v1827
    %v1830 = vmul.f32 %v1823, %v1666
    %v1831 = vadd.f32 %v1829, %v1830
    %s1832 = scalar_lea.vmem [#allocation2], 56
    %1833 = vst [vmem:[%s1832] sm:$0xff] %v1831
    %v1834 = vld [vmem:[#allocation2] sm:$0xff]
    %v1835 = vld [vmem:[#allocation2 + $0x8] sm:$0xff]
    %v1836 = vld [vmem:[#allocation2 + $0x10] sm:$0xff]
    %v1837 = vld [vmem:[#allocation2 + $0x18] sm:$0xff]
    %v1838 = vld [vmem:[#allocation2 + $0x20] sm:$0xff]
    %v1839 = vld [vmem:[#allocation2 + $0x28] sm:$0xff]
    %v1840 = vld [vmem:[#allocation2 + $0x30] sm:$0xff]
    %v1841 = vld [vmem:[#allocation2 + $0x38] sm:$0xff]
    %v1842 = vld [vmem:[%s6] sm:$0xff]
    %v1843 = vld [vmem:[%s6 + $0x8] sm:$0xff]
    %v1844 = vld [vmem:[%s6 + $0x10] sm:$0xff]
    %v1845 = vld [vmem:[%s6 + $0x18] sm:$0xff]
    %v1846 = vld [vmem:[%s6 + $0x20] sm:$0xff]
    %v1847 = vld [vmem:[%s6 + $0x28] sm:$0xff]
    %v1848 = vld [vmem:[%s6 + $0x30] sm:$0xff]
    %v1849 = vld [vmem:[%s6 + $0x38] sm:$0xff]
    %v1850 = vld [vmem:[%s6 + $0x40] sm:$0xff]
    %v1851 = vld [vmem:[%s6 + $0x48] sm:$0xff]
    %v1852 = vld [vmem:[%s6 + $0x50] sm:$0xff]
    %v1853 = vld [vmem:[%s6 + $0x58] sm:$0xff]
    %v1854 = vld [vmem:[%s6 + $0x60] sm:$0xff]
    %v1855 = vld [vmem:[%s6 + $0x68] sm:$0xff]
    %v1856 = vld [vmem:[%s6 + $0x70] sm:$0xff]
    %v1857 = vld [vmem:[%s6 + $0x78] sm:$0xff]
    %v1858 = vld [vmem:[%s6 + $0x80] sm:$0xff]
    %v1859 = vld [vmem:[%s6 + $0x88] sm:$0xff]
    %v1860 = vld [vmem:[%s6 + $0x90] sm:$0xff]
    %v1861 = vld [vmem:[%s6 + $0x98] sm:$0xff]
    %v1862 = vld [vmem:[%s6 + $0xa0] sm:$0xff]
    %v1863 = vld [vmem:[%s6 + $0xa8] sm:$0xff]
    %v1864 = vld [vmem:[%s6 + $0xb0] sm:$0xff]
    %v1865 = vld [vmem:[%s6 + $0xb8] sm:$0xff]
    %v1866 = vld [vmem:[%s6 + $0xc0] sm:$0xff]
    %v1867 = vld [vmem:[%s6 + $0xc8] sm:$0xff]
    %v1868 = vld [vmem:[%s6 + $0xd0] sm:$0xff]
    %v1869 = vld [vmem:[%s6 + $0xd8] sm:$0xff]
    %v1870 = vld [vmem:[%s6 + $0xe0] sm:$0xff]
    %v1871 = vld [vmem:[%s6 + $0xe8] sm:$0xff]
    %v1872 = vld [vmem:[%s6 + $0xf0] sm:$0xff]
    %v1873 = vld [vmem:[%s6 + $0xf8] sm:$0xff]
    %v1874 = vld [vmem:[%s6 + $0x100] sm:$0xff]
    %v1875 = vld [vmem:[%s6 + $0x108] sm:$0xff]
    %v1876 = vld [vmem:[%s6 + $0x110] sm:$0xff]
    %v1877 = vld [vmem:[%s6 + $0x118] sm:$0xff]
    %v1878 = vld [vmem:[%s6 + $0x120] sm:$0xff]
    %v1879 = vld [vmem:[%s6 + $0x128] sm:$0xff]
    %v1880 = vld [vmem:[%s6 + $0x130] sm:$0xff]
    %v1881 = vld [vmem:[%s6 + $0x138] sm:$0xff]
    %v1882 = vld [vmem:[%s6 + $0x140] sm:$0xff]
    %v1883 = vld [vmem:[%s6 + $0x148] sm:$0xff]
    %v1884 = vld [vmem:[%s6 + $0x150] sm:$0xff]
    %v1885 = vld [vmem:[%s6 + $0x158] sm:$0xff]
    %v1886 = vld [vmem:[%s6 + $0x160] sm:$0xff]
    %v1887 = vld [vmem:[%s6 + $0x168] sm:$0xff]
    %v1888 = vld [vmem:[%s6 + $0x170] sm:$0xff]
    %v1889 = vld [vmem:[%s6 + $0x178] sm:$0xff]
    %v1890 = vld [vmem:[%s8] sm:$0x7]
    %v1892 = vlaneseq
    %v1893 = vshrl.u32 %v1892, 7
    %v1894 = vsub.s32 0, %v1893
    %v1895 = vrot.slane %v1890, %v1894
    %v1896 = vlaneseq
    %v1897 = vshrl.u32 %v1896, 7
    %v1898 = vsub.s32 1, %v1897
    %v1899 = vrot.slane %v1890, %v1898
    %v1900 = vlaneseq
    %v1901 = vshrl.u32 %v1900, 7
    %v1902 = vsub.s32 2, %v1901
    %v1903 = vrot.slane %v1890, %v1902
    %1907 = vmatprep.subr.mxu0 %v1888
    %1908 = vmatpush1.msra.mxu0 %v1887
    %1909 = vmatprep.subr.mxu0 %v1885
    %1910 = vmatpush1.msra.mxu0 %v1884
    %1911 = vmatprep.subr.mxu0 %v1882
    %1912 = vmatpush1.msra.mxu0 %v1881
    %1913 = vmatprep.subr.mxu0 %v1879
    %1914 = vmatpush1.msra.mxu0 %v1878
    %1915 = vmatprep.subr.mxu0 %v1876
    %1916 = vmatpush1.msra.mxu0 %v1875
    %1917 = vmatprep.subr.mxu0 %v1873
    %1918 = vmatpush1.msra.mxu0 %v1872
    %1919 = vmatprep.subr.mxu0 %v1870
    %1920 = vmatpush1.msra.mxu0 %v1869
    %1921 = vmatprep.subr.mxu0 %v1867
    %1922 = vmatpush1.msra.mxu0 %v1866
    %1923 = vmatprep.subr.mxu0 %v1864
    %1924 = vmatpush1.msra.mxu0 %v1863
    %1925 = vmatprep.subr.mxu0 %v1861
    %1926 = vmatpush1.msra.mxu0 %v1860
    %1927 = vmatprep.subr.mxu0 %v1858
    %1928 = vmatpush1.msra.mxu0 %v1857
    %1929 = vmatprep.subr.mxu0 %v1855
    %1930 = vmatpush1.msra.mxu0 %v1854
    %1931 = vmatprep.subr.mxu0 %v1852
    %1932 = vmatpush1.msra.mxu0 %v1851
    %1933 = vmatprep.subr.mxu0 %v1849
    %1934 = vmatpush1.msra.mxu0 %v1848
    %1935 = vmatprep.subr.mxu0 %v1846
    %1936 = vmatpush1.msra.mxu0 %v1845
    %1937 = vmatprep.subr.mxu0 %v1843
    %1938 = vmatpush1.msra.mxu0 %v1842
    %1939 = vmatprep.subr.mxu0 0.0
    %1940 = vmatpush2.msra.mxu0 0.0
    %1941 = vmatprep.subr.mxu0 0.0
    %1942 = vmatpush2.msra.mxu0 0.0
    %1943 = vmatprep.subr.mxu0 0.0
    %1944 = vmatpush2.msra.mxu0 0.0
    %1945 = vmatprep.subr.mxu0 0.0
    %1946 = vmatpush2.msra.mxu0 0.0
    %1947 = vmatprep.subr.mxu0 0.0
    %1948 = vmatpush2.msra.mxu0 0.0
    %1949 = vmatprep.subr.mxu0 0.0
    %1950 = vmatpush2.msra.mxu0 0.0
    %1951 = vmatprep.subr.mxu0 0.0
    %1952 = vmatpush2.msra.mxu0 0.0
    %1953 = vmatprep.subr.mxu0 0.0
    %1954 = vmatpush2.msra.mxu0 0.0
    %1955 = vmatprep.subr.mxu0 0.0
    %1956 = vmatpush2.msra.mxu0 0.0
    %1957 = vmatprep.subr.mxu0 0.0
    %1958 = vmatpush2.msra.mxu0 0.0
    %1959 = vmatprep.subr.mxu0 0.0
    %1960 = vmatpush2.msra.mxu0 0.0
    %1961 = vmatprep.subr.mxu0 0.0
    %1962 = vmatpush2.msra.mxu0 0.0
    %1963 = vmatprep.subr.mxu0 0.0
    %1964 = vmatpush2.msra.mxu0 0.0
    %1965 = vmatprep.subr.mxu0 0.0
    %1966 = vmatpush2.msra.mxu0 0.0
    %1967 = vmatprep.subr.mxu0 0.0
    %1968 = vmatpush2.msra.mxu0 0.0
    %1969 = vmatprep.subr.mxu0 0.0
    %1970 = vmatpush2.msra.mxu0 0.0
    %1971 = vmatprep.mubr.f32.mxu0 0.0
    %1972 = vmatmul.mubr.f32.gmra.mxu0 %v1834
    %v1973 = vpop.f32.mrf.mxu0
    %v1974 = vadd.f32 %v1895, %v1973
    %v1975 = vpop.f32.mrf.mxu0
    %v1976 = vadd.f32 %v1899, %v1975
    %1977 = vmatprep.mubr.f32.mxu0 0.0
    %1978 = vmatmul.mubr.f32.gmra.mxu0 %v1835
    %v1979 = vpop.f32.mrf.mxu0
    %v1980 = vadd.f32 %v1895, %v1979
    %v1981 = vpop.f32.mrf.mxu0
    %v1982 = vadd.f32 %v1899, %v1981
    %1983 = vmatprep.mubr.f32.mxu0 0.0
    %1984 = vmatmul.mubr.f32.gmra.mxu0 %v1836
    %v1985 = vpop.f32.mrf.mxu0
    %v1986 = vadd.f32 %v1895, %v1985
    %v1987 = vpop.f32.mrf.mxu0
    %v1988 = vadd.f32 %v1899, %v1987
    %1989 = vmatprep.mubr.f32.mxu0 0.0
    %1990 = vmatmul.mubr.f32.gmra.mxu0 %v1837
    %v1991 = vpop.f32.mrf.mxu0
    %v1992 = vadd.f32 %v1895, %v1991
    %v1993 = vpop.f32.mrf.mxu0
    %v1994 = vadd.f32 %v1899, %v1993
    %1995 = vmatprep.mubr.f32.mxu0 0.0
    %1996 = vmatmul.mubr.f32.gmra.mxu0 %v1838
    %v1997 = vpop.f32.mrf.mxu0
    %v1998 = vadd.f32 %v1895, %v1997
    %v1999 = vpop.f32.mrf.mxu0
    %v2000 = vadd.f32 %v1899, %v1999
    %2001 = vmatprep.mubr.f32.mxu0 0.0
    %2002 = vmatmul.mubr.f32.gmra.mxu0 %v1839
    %v2003 = vpop.f32.mrf.mxu0
    %v2004 = vadd.f32 %v1895, %v2003
    %v2005 = vpop.f32.mrf.mxu0
    %v2006 = vadd.f32 %v1899, %v2005
    %2007 = vmatprep.mubr.f32.mxu0 0.0
    %2008 = vmatmul.mubr.f32.gmra.mxu0 %v1840
    %v2009 = vpop.f32.mrf.mxu0
    %v2010 = vadd.f32 %v1895, %v2009
    %v2011 = vpop.f32.mrf.mxu0
    %v2012 = vadd.f32 %v1899, %v2011
    %2013 = vmatprep.mubr.f32.mxu0 0.0
    %2014 = vmatmul.mubr.f32.gmra.mxu0 %v1841
    %v2015 = vpop.f32.mrf.mxu0
    %v2016 = vadd.f32 %v1895, %v2015
    %v2017 = vpop.f32.mrf.mxu0
    %v2018 = vadd.f32 %v1899, %v2017
    %2019 = vdwg.mxu0
    %2020 = vmatprep.subr.mxu0 0.0
    %2021 = vmatpush1.msra.mxu0 %v1889
    %2022 = vmatprep.subr.mxu0 0.0
    %2023 = vmatpush1.msra.mxu0 %v1886
    %2024 = vmatprep.subr.mxu0 0.0
    %2025 = vmatpush1.msra.mxu0 %v1883
    %2026 = vmatprep.subr.mxu0 0.0
    %2027 = vmatpush1.msra.mxu0 %v1880
    %2028 = vmatprep.subr.mxu0 0.0
    %2029 = vmatpush1.msra.mxu0 %v1877
    %2030 = vmatprep.subr.mxu0 0.0
    %2031 = vmatpush1.msra.mxu0 %v1874
    %2032 = vmatprep.subr.mxu0 0.0
    %2033 = vmatpush1.msra.mxu0 %v1871
    %2034 = vmatprep.subr.mxu0 0.0
    %2035 = vmatpush1.msra.mxu0 %v1868
    %2036 = vmatprep.subr.mxu0 0.0
    %2037 = vmatpush1.msra.mxu0 %v1865
    %2038 = vmatprep.subr.mxu0 0.0
    %2039 = vmatpush1.msra.mxu0 %v1862
    %2040 = vmatprep.subr.mxu0 0.0
    %2041 = vmatpush1.msra.mxu0 %v1859
    %2042 = vmatprep.subr.mxu0 0.0
    %2043 = vmatpush1.msra.mxu0 %v1856
    %2044 = vmatprep.subr.mxu0 0.0
    %2045 = vmatpush1.msra.mxu0 %v1853
    %2046 = vmatprep.subr.mxu0 0.0
    %2047 = vmatpush1.msra.mxu0 %v1850
    %2048 = vmatprep.subr.mxu0 0.0
    %2049 = vmatpush1.msra.mxu0 %v1847
    %2050 = vmatprep.subr.mxu0 0.0
    %2051 = vmatpush1.msra.mxu0 %v1844
    %2052 = vmatprep.subr.mxu0 0.0
    %2053 = vmatpush2.msra.mxu0 0.0
    %2054 = vmatprep.subr.mxu0 0.0
    %2055 = vmatpush2.msra.mxu0 0.0
    %2056 = vmatprep.subr.mxu0 0.0
    %2057 = vmatpush2.msra.mxu0 0.0
    %2058 = vmatprep.subr.mxu0 0.0
    %2059 = vmatpush2.msra.mxu0 0.0
    %2060 = vmatprep.subr.mxu0 0.0
    %2061 = vmatpush2.msra.mxu0 0.0
    %2062 = vmatprep.subr.mxu0 0.0
    %2063 = vmatpush2.msra.mxu0 0.0
    %2064 = vmatprep.subr.mxu0 0.0
    %2065 = vmatpush2.msra.mxu0 0.0
    %2066 = vmatprep.subr.mxu0 0.0
    %2067 = vmatpush2.msra.mxu0 0.0
    %2068 = vmatprep.subr.mxu0 0.0
    %2069 = vmatpush2.msra.mxu0 0.0
    %2070 = vmatprep.subr.mxu0 0.0
    %2071 = vmatpush2.msra.mxu0 0.0
    %2072 = vmatprep.subr.mxu0 0.0
    %2073 = vmatpush2.msra.mxu0 0.0
    %2074 = vmatprep.subr.mxu0 0.0
    %2075 = vmatpush2.msra.mxu0 0.0
    %2076 = vmatprep.subr.mxu0 0.0
    %2077 = vmatpush2.msra.mxu0 0.0
    %2078 = vmatprep.subr.mxu0 0.0
    %2079 = vmatpush2.msra.mxu0 0.0
    %2080 = vmatprep.subr.mxu0 0.0
    %2081 = vmatpush2.msra.mxu0 0.0
    %2082 = vmatprep.subr.mxu0 0.0
    %2083 = vmatpush2.msra.mxu0 0.0
    %2084 = vmatprep.mubr.f32.mxu0 0.0
    %2085 = vmatmul.mubr.f32.gmra.mxu0 %v1834
    %v2086 = vpop.f32.mrf.mxu0
    %v2087 = vadd.f32 %v1903, %v2086
    %v2088 = vpop.f32.mrf.mxu0
    %2089 = vmatprep.mubr.f32.mxu0 0.0
    %2090 = vmatmul.mubr.f32.gmra.mxu0 %v1835
    %v2091 = vpop.f32.mrf.mxu0
    %v2092 = vadd.f32 %v1903, %v2091
    %v2093 = vpop.f32.mrf.mxu0
    %2094 = vmatprep.mubr.f32.mxu0 0.0
    %2095 = vmatmul.mubr.f32.gmra.mxu0 %v1836
    %v2096 = vpop.f32.mrf.mxu0
    %v2097 = vadd.f32 %v1903, %v2096
    %v2098 = vpop.f32.mrf.mxu0
    %2099 = vmatprep.mubr.f32.mxu0 0.0
    %2100 = vmatmul.mubr.f32.gmra.mxu0 %v1837
    %v2101 = vpop.f32.mrf.mxu0
    %v2102 = vadd.f32 %v1903, %v2101
    %v2103 = vpop.f32.mrf.mxu0
    %2104 = vmatprep.mubr.f32.mxu0 0.0
    %2105 = vmatmul.mubr.f32.gmra.mxu0 %v1838
    %v2106 = vpop.f32.mrf.mxu0
    %v2107 = vadd.f32 %v1903, %v2106
    %v2108 = vpop.f32.mrf.mxu0
    %2109 = vmatprep.mubr.f32.mxu0 0.0
    %2110 = vmatmul.mubr.f32.gmra.mxu0 %v1839
    %v2111 = vpop.f32.mrf.mxu0
    %v2112 = vadd.f32 %v1903, %v2111
    %v2113 = vpop.f32.mrf.mxu0
    %2114 = vmatprep.mubr.f32.mxu0 0.0
    %2115 = vmatmul.mubr.f32.gmra.mxu0 %v1840
    %v2116 = vpop.f32.mrf.mxu0
    %v2117 = vadd.f32 %v1903, %v2116
    %v2118 = vpop.f32.mrf.mxu0
    %2119 = vmatprep.mubr.f32.mxu0 0.0
    %2120 = vmatmul.mubr.f32.gmra.mxu0 %v1841
    %v2121 = vpop.f32.mrf.mxu0
    %v2122 = vadd.f32 %v1903, %v2121
    %v2123 = vpop.f32.mrf.mxu0
    %2124 = vdwg.mxu0
    %v2125 = vld [vmem:[%s7] sm:$0xff]
    %v2126 = vld [vmem:[%s7 + $0x8] sm:$0xff]
    %v2127 = vld [vmem:[%s7 + $0x10] sm:$0xff]
    %v2128 = vld [vmem:[%s7 + $0x18] sm:$0xff]
    %v2129 = vld [vmem:[%s7 + $0x20] sm:$0xff]
    %v2130 = vld [vmem:[%s7 + $0x28] sm:$0xff]
    %v2131 = vld [vmem:[%s7 + $0x30] sm:$0xff]
    %v2132 = vld [vmem:[%s7 + $0x38] sm:$0xff]
    %v2133 = vld [vmem:[%s7 + $0x40] sm:$0xff]
    %v2134 = vld [vmem:[%s7 + $0x48] sm:$0xff]
    %v2135 = vld [vmem:[%s7 + $0x50] sm:$0xff]
    %v2136 = vld [vmem:[%s7 + $0x58] sm:$0xff]
    %v2137 = vld [vmem:[%s7 + $0x60] sm:$0xff]
    %v2138 = vld [vmem:[%s7 + $0x68] sm:$0xff]
    %v2139 = vld [vmem:[%s7 + $0x70] sm:$0xff]
    %v2140 = vld [vmem:[%s7 + $0x78] sm:$0xff]
    %v2141 = vld [vmem:[%s7 + $0x80] sm:$0xff]
    %v2142 = vld [vmem:[%s7 + $0x88] sm:$0xff]
    %v2143 = vld [vmem:[%s7 + $0x90] sm:$0xff]
    %v2144 = vld [vmem:[%s7 + $0x98] sm:$0xff]
    %v2145 = vld [vmem:[%s7 + $0xa0] sm:$0xff]
    %v2146 = vld [vmem:[%s7 + $0xa8] sm:$0xff]
    %v2147 = vld [vmem:[%s7 + $0xb0] sm:$0xff]
    %v2148 = vld [vmem:[%s7 + $0xb8] sm:$0xff]
    %v2149 = vld [vmem:[%s7 + $0xc0] sm:$0xff]
    %v2150 = vld [vmem:[%s7 + $0xc8] sm:$0xff]
    %v2151 = vld [vmem:[%s7 + $0xd0] sm:$0xff]
    %v2152 = vld [vmem:[%s7 + $0xd8] sm:$0xff]
    %v2153 = vld [vmem:[%s7 + $0xe0] sm:$0xff]
    %v2154 = vld [vmem:[%s7 + $0xe8] sm:$0xff]
    %v2155 = vld [vmem:[%s7 + $0xf0] sm:$0xff]
    %v2156 = vld [vmem:[%s7 + $0xf8] sm:$0xff]
    %v2157 = vld [vmem:[%s7 + $0x100] sm:$0xff]
    %v2158 = vld [vmem:[%s7 + $0x108] sm:$0xff]
    %v2159 = vld [vmem:[%s7 + $0x110] sm:$0xff]
    %v2160 = vld [vmem:[%s7 + $0x118] sm:$0xff]
    %v2161 = vld [vmem:[%s7 + $0x120] sm:$0xff]
    %v2162 = vld [vmem:[%s7 + $0x128] sm:$0xff]
    %v2163 = vld [vmem:[%s7 + $0x130] sm:$0xff]
    %v2164 = vld [vmem:[%s7 + $0x138] sm:$0xff]
    %v2165 = vld [vmem:[%s7 + $0x140] sm:$0xff]
    %v2166 = vld [vmem:[%s7 + $0x148] sm:$0xff]
    %v2167 = vld [vmem:[%s7 + $0x150] sm:$0xff]
    %v2168 = vld [vmem:[%s7 + $0x158] sm:$0xff]
    %v2169 = vld [vmem:[%s7 + $0x160] sm:$0xff]
    %v2170 = vld [vmem:[%s7 + $0x168] sm:$0xff]
    %v2171 = vld [vmem:[%s7 + $0x170] sm:$0xff]
    %v2172 = vld [vmem:[%s7 + $0x178] sm:$0xff]
    %v2173 = vld [vmem:[%s9] sm:$0x1]
    %v2175 = vlaneseq
    %v2176 = vshrl.u32 %v2175, 7
    %v2177 = vsub.s32 0, %v2176
    %v2178 = vrot.slane %v2173, %v2177
    %2180 = vmatprep.subr.mxu0 %v2171
    %2181 = vmatpush1.msra.mxu0 %v2170
    %2182 = vmatprep.subr.mxu0 %v2168
    %2183 = vmatpush1.msra.mxu0 %v2167
    %2184 = vmatprep.subr.mxu0 %v2165
    %2185 = vmatpush1.msra.mxu0 %v2164
    %2186 = vmatprep.subr.mxu0 %v2162
    %2187 = vmatpush1.msra.mxu0 %v2161
    %2188 = vmatprep.subr.mxu0 %v2159
    %2189 = vmatpush1.msra.mxu0 %v2158
    %2190 = vmatprep.subr.mxu0 %v2156
    %2191 = vmatpush1.msra.mxu0 %v2155
    %2192 = vmatprep.subr.mxu0 %v2153
    %2193 = vmatpush1.msra.mxu0 %v2152
    %2194 = vmatprep.subr.mxu0 %v2150
    %2195 = vmatpush1.msra.mxu0 %v2149
    %2196 = vmatprep.subr.mxu0 %v2147
    %2197 = vmatpush1.msra.mxu0 %v2146
    %2198 = vmatprep.subr.mxu0 %v2144
    %2199 = vmatpush1.msra.mxu0 %v2143
    %2200 = vmatprep.subr.mxu0 %v2141
    %2201 = vmatpush1.msra.mxu0 %v2140
    %2202 = vmatprep.subr.mxu0 %v2138
    %2203 = vmatpush1.msra.mxu0 %v2137
    %2204 = vmatprep.subr.mxu0 %v2135
    %2205 = vmatpush1.msra.mxu0 %v2134
    %2206 = vmatprep.subr.mxu0 %v2132
    %2207 = vmatpush1.msra.mxu0 %v2131
    %2208 = vmatprep.subr.mxu0 %v2129
    %2209 = vmatpush1.msra.mxu0 %v2128
    %2210 = vmatprep.subr.mxu0 %v2126
    %2211 = vmatpush1.msra.mxu0 %v2125
    %2212 = vmatprep.subr.mxu0 0.0
    %2213 = vmatpush2.msra.mxu0 0.0
    %2214 = vmatprep.subr.mxu0 0.0
    %2215 = vmatpush2.msra.mxu0 0.0
    %2216 = vmatprep.subr.mxu0 0.0
    %2217 = vmatpush2.msra.mxu0 0.0
    %2218 = vmatprep.subr.mxu0 0.0
    %2219 = vmatpush2.msra.mxu0 0.0
    %2220 = vmatprep.subr.mxu0 0.0
    %2221 = vmatpush2.msra.mxu0 0.0
    %2222 = vmatprep.subr.mxu0 0.0
    %2223 = vmatpush2.msra.mxu0 0.0
    %2224 = vmatprep.subr.mxu0 0.0
    %2225 = vmatpush2.msra.mxu0 0.0
    %2226 = vmatprep.subr.mxu0 0.0
    %2227 = vmatpush2.msra.mxu0 0.0
    %2228 = vmatprep.subr.mxu0 0.0
    %2229 = vmatpush2.msra.mxu0 0.0
    %2230 = vmatprep.subr.mxu0 0.0
    %2231 = vmatpush2.msra.mxu0 0.0
    %2232 = vmatprep.subr.mxu0 0.0
    %2233 = vmatpush2.msra.mxu0 0.0
    %2234 = vmatprep.subr.mxu0 0.0
    %2235 = vmatpush2.msra.mxu0 0.0
    %2236 = vmatprep.subr.mxu0 0.0
    %2237 = vmatpush2.msra.mxu0 0.0
    %2238 = vmatprep.subr.mxu0 0.0
    %2239 = vmatpush2.msra.mxu0 0.0
    %2240 = vmatprep.subr.mxu0 0.0
    %2241 = vmatpush2.msra.mxu0 0.0
    %2242 = vmatprep.subr.mxu0 0.0
    %2243 = vmatpush2.msra.mxu0 0.0
    %2244 = vmatprep.mubr.f32.mxu0 0.0
    %2245 = vmatmul.mubr.f32.gmra.mxu0 0.0
    %v2246 = vpop.f32.mrf.mxu0
    %v2247 = vadd.f32 0.0, %v2246
    %v2248 = vpop.f32.mrf.mxu0
    %v2249 = vadd.f32 0.0, %v2248
    %2250 = vdwg.mxu0
    %2251 = vmatprep.subr.mxu0 0.0
    %2252 = vmatpush1.msra.mxu0 %v2172
    %2253 = vmatprep.subr.mxu0 0.0
    %2254 = vmatpush1.msra.mxu0 %v2169
    %2255 = vmatprep.subr.mxu0 0.0
    %2256 = vmatpush1.msra.mxu0 %v2166
    %2257 = vmatprep.subr.mxu0 0.0
    %2258 = vmatpush1.msra.mxu0 %v2163
    %2259 = vmatprep.subr.mxu0 0.0
    %2260 = vmatpush1.msra.mxu0 %v2160
    %2261 = vmatprep.subr.mxu0 0.0
    %2262 = vmatpush1.msra.mxu0 %v2157
    %2263 = vmatprep.subr.mxu0 0.0
    %2264 = vmatpush1.msra.mxu0 %v2154
    %2265 = vmatprep.subr.mxu0 0.0
    %2266 = vmatpush1.msra.mxu0 %v2151
    %2267 = vmatprep.subr.mxu0 0.0
    %2268 = vmatpush1.msra.mxu0 %v2148
    %2269 = vmatprep.subr.mxu0 0.0
    %2270 = vmatpush1.msra.mxu0 %v2145
    %2271 = vmatprep.subr.mxu0 0.0
    %2272 = vmatpush1.msra.mxu0 %v2142
    %2273 = vmatprep.subr.mxu0 0.0
    %2274 = vmatpush1.msra.mxu0 %v2139
    %2275 = vmatprep.subr.mxu0 0.0
    %2276 = vmatpush1.msra.mxu0 %v2136
    %2277 = vmatprep.subr.mxu0 0.0
    %2278 = vmatpush1.msra.mxu0 %v2133
    %2279 = vmatprep.subr.mxu0 0.0
    %2280 = vmatpush1.msra.mxu0 %v2130
    %2281 = vmatprep.subr.mxu0 0.0
    %2282 = vmatpush1.msra.mxu0 %v2127
    %2283 = vmatprep.subr.mxu0 0.0
    %2284 = vmatpush2.msra.mxu0 0.0
    %2285 = vmatprep.subr.mxu0 0.0
    %2286 = vmatpush2.msra.mxu0 0.0
    %2287 = vmatprep.subr.mxu0 0.0
    %2288 = vmatpush2.msra.mxu0 0.0
    %2289 = vmatprep.subr.mxu0 0.0
    %2290 = vmatpush2.msra.mxu0 0.0
    %2291 = vmatprep.subr.mxu0 0.0
    %2292 = vmatpush2.msra.mxu0 0.0
    %2293 = vmatprep.subr.mxu0 0.0
    %2294 = vmatpush2.msra.mxu0 0.0
    %2295 = vmatprep.subr.mxu0 0.0
    %2296 = vmatpush2.msra.mxu0 0.0
    %2297 = vmatprep.subr.mxu0 0.0
    %2298 = vmatpush2.msra.mxu0 0.0
    %2299 = vmatprep.subr.mxu0 0.0
    %2300 = vmatpush2.msra.mxu0 0.0
    %2301 = vmatprep.subr.mxu0 0.0
    %2302 = vmatpush2.msra.mxu0 0.0
    %2303 = vmatprep.subr.mxu0 0.0
    %2304 = vmatpush2.msra.mxu0 0.0
    %2305 = vmatprep.subr.mxu0 0.0
    %2306 = vmatpush2.msra.mxu0 0.0
    %2307 = vmatprep.subr.mxu0 0.0
    %2308 = vmatpush2.msra.mxu0 0.0
    %2309 = vmatprep.subr.mxu0 0.0
    %2310 = vmatpush2.msra.mxu0 0.0
    %2311 = vmatprep.subr.mxu0 0.0
    %2312 = vmatpush2.msra.mxu0 0.0
    %2313 = vmatprep.subr.mxu0 0.0
    %2314 = vmatpush2.msra.mxu0 0.0
    %2315 = vmatprep.mubr.f32.mxu0 0.0
    %2316 = vmatmul.mubr.f32.gmra.mxu0 0.0
    %v2317 = vpop.f32.mrf.mxu0
    %v2318 = vadd.f32 0.0, %v2317
    %v2319 = vpop.f32.mrf.mxu0
    %2320 = vdwg.mxu0
    %v2321 = vadd.f32 %v1974, %v2247
    %v2322 = vxor.u32 %v2321, 2147483648
    %v2323 = vmul.f32 %v2322, 1.442695
    %v2324 = vpow.pop %v2323
    %v2325 = vadd.f32 %v2324, 1.0
    %v2326 = vrcp.pop %v2325
    %v2327 = vmul.f32 1.0, %v2326
    %v2328 = vadd.f32 %v1976, %v2249
    %v2329 = vxor.u32 %v2328, 2147483648
    %v2330 = vmul.f32 %v2329, 1.442695
    %v2331 = vpow.pop %v2330
    %v2332 = vadd.f32 %v2331, 1.0
    %v2333 = vrcp.pop %v2332
    %v2334 = vmul.f32 1.0, %v2333
    %v2335 = vadd.f32 %v2318, %v2178
    %v2336 = vmul.f32 %v2327, %v2335
    %v2337 = vadd.f32 %v2087, %v2336
    %v2338 = vtanh.pop %v2337
    %v2339 = vsub.f32 1.0, %v2334
    %v2340 = vmul.f32 %v2339, %v2338
    %v2341 = vmul.f32 %v2334, 0.0
    %v2342 = vadd.f32 %v2340, %v2341
    %2343 = vmatprep.subr.mxu0 %v2171
    %2344 = vmatpush1.msra.mxu0 %v2170
    %2345 = vmatprep.subr.mxu0 %v2168
    %2346 = vmatpush1.msra.mxu0 %v2167
    %2347 = vmatprep.subr.mxu0 %v2165
    %2348 = vmatpush1.msra.mxu0 %v2164
    %2349 = vmatprep.subr.mxu0 %v2162
    %2350 = vmatpush1.msra.mxu0 %v2161
    %2351 = vmatprep.subr.mxu0 %v2159
    %2352 = vmatpush1.msra.mxu0 %v2158
    %2353 = vmatprep.subr.mxu0 %v2156
    %2354 = vmatpush1.msra.mxu0 %v2155
    %2355 = vmatprep.subr.mxu0 %v2153
    %2356 = vmatpush1.msra.mxu0 %v2152
    %2357 = vmatprep.subr.mxu0 %v2150
    %2358 = vmatpush1.msra.mxu0 %v2149
    %2359 = vmatprep.subr.mxu0 %v2147
    %2360 = vmatpush1.msra.mxu0 %v2146
    %2361 = vmatprep.subr.mxu0 %v2144
    %2362 = vmatpush1.msra.mxu0 %v2143
    %2363 = vmatprep.subr.mxu0 %v2141
    %2364 = vmatpush1.msra.mxu0 %v2140
    %2365 = vmatprep.subr.mxu0 %v2138
    %2366 = vmatpush1.msra.mxu0 %v2137
    %2367 = vmatprep.subr.mxu0 %v2135
    %2368 = vmatpush1.msra.mxu0 %v2134
    %2369 = vmatprep.subr.mxu0 %v2132
    %2370 = vmatpush1.msra.mxu0 %v2131
    %2371 = vmatprep.subr.mxu0 %v2129
    %2372 = vmatpush1.msra.mxu0 %v2128
    %2373 = vmatprep.subr.mxu0 %v2126
    %2374 = vmatpush1.msra.mxu0 %v2125
    %2375 = vmatprep.subr.mxu0 0.0
    %2376 = vmatpush2.msra.mxu0 0.0
    %2377 = vmatprep.subr.mxu0 0.0
    %2378 = vmatpush2.msra.mxu0 0.0
    %2379 = vmatprep.subr.mxu0 0.0
    %2380 = vmatpush2.msra.mxu0 0.0
    %2381 = vmatprep.subr.mxu0 0.0
    %2382 = vmatpush2.msra.mxu0 0.0
    %2383 = vmatprep.subr.mxu0 0.0
    %2384 = vmatpush2.msra.mxu0 0.0
    %2385 = vmatprep.subr.mxu0 0.0
    %2386 = vmatpush2.msra.mxu0 0.0
    %2387 = vmatprep.subr.mxu0 0.0
    %2388 = vmatpush2.msra.mxu0 0.0
    %2389 = vmatprep.subr.mxu0 0.0
    %2390 = vmatpush2.msra.mxu0 0.0
    %2391 = vmatprep.subr.mxu0 0.0
    %2392 = vmatpush2.msra.mxu0 0.0
    %2393 = vmatprep.subr.mxu0 0.0
    %2394 = vmatpush2.msra.mxu0 0.0
    %2395 = vmatprep.subr.mxu0 0.0
    %2396 = vmatpush2.msra.mxu0 0.0
    %2397 = vmatprep.subr.mxu0 0.0
    %2398 = vmatpush2.msra.mxu0 0.0
    %2399 = vmatprep.subr.mxu0 0.0
    %2400 = vmatpush2.msra.mxu0 0.0
    %2401 = vmatprep.subr.mxu0 0.0
    %2402 = vmatpush2.msra.mxu0 0.0
    %2403 = vmatprep.subr.mxu0 0.0
    %2404 = vmatpush2.msra.mxu0 0.0
    %2405 = vmatprep.subr.mxu0 0.0
    %2406 = vmatpush2.msra.mxu0 0.0
    %2407 = vmatprep.mubr.f32.mxu0 0.0
    %2408 = vmatmul.mubr.f32.gmra.mxu0 %v2342
    %v2409 = vpop.f32.mrf.mxu0
    %v2410 = vadd.f32 0.0, %v2409
    %v2411 = vpop.f32.mrf.mxu0
    %v2412 = vadd.f32 0.0, %v2411
    %2413 = vdwg.mxu0
    %2414 = vmatprep.subr.mxu0 0.0
    %2415 = vmatpush1.msra.mxu0 %v2172
    %2416 = vmatprep.subr.mxu0 0.0
    %2417 = vmatpush1.msra.mxu0 %v2169
    %2418 = vmatprep.subr.mxu0 0.0
    %2419 = vmatpush1.msra.mxu0 %v2166
    %2420 = vmatprep.subr.mxu0 0.0
    %2421 = vmatpush1.msra.mxu0 %v2163
    %2422 = vmatprep.subr.mxu0 0.0
    %2423 = vmatpush1.msra.mxu0 %v2160
    %2424 = vmatprep.subr.mxu0 0.0
    %2425 = vmatpush1.msra.mxu0 %v2157
    %2426 = vmatprep.subr.mxu0 0.0
    %2427 = vmatpush1.msra.mxu0 %v2154
    %2428 = vmatprep.subr.mxu0 0.0
    %2429 = vmatpush1.msra.mxu0 %v2151
    %2430 = vmatprep.subr.mxu0 0.0
    %2431 = vmatpush1.msra.mxu0 %v2148
    %2432 = vmatprep.subr.mxu0 0.0
    %2433 = vmatpush1.msra.mxu0 %v2145
    %2434 = vmatprep.subr.mxu0 0.0
    %2435 = vmatpush1.msra.mxu0 %v2142
    %2436 = vmatprep.subr.mxu0 0.0
    %2437 = vmatpush1.msra.mxu0 %v2139
    %2438 = vmatprep.subr.mxu0 0.0
    %2439 = vmatpush1.msra.mxu0 %v2136
    %2440 = vmatprep.subr.mxu0 0.0
    %2441 = vmatpush1.msra.mxu0 %v2133
    %2442 = vmatprep.subr.mxu0 0.0
    %2443 = vmatpush1.msra.mxu0 %v2130
    %2444 = vmatprep.subr.mxu0 0.0
    %2445 = vmatpush1.msra.mxu0 %v2127
    %2446 = vmatprep.subr.mxu0 0.0
    %2447 = vmatpush2.msra.mxu0 0.0
    %2448 = vmatprep.subr.mxu0 0.0
    %2449 = vmatpush2.msra.mxu0 0.0
    %2450 = vmatprep.subr.mxu0 0.0
    %2451 = vmatpush2.msra.mxu0 0.0
    %2452 = vmatprep.subr.mxu0 0.0
    %2453 = vmatpush2.msra.mxu0 0.0
    %2454 = vmatprep.subr.mxu0 0.0
    %2455 = vmatpush2.msra.mxu0 0.0
    %2456 = vmatprep.subr.mxu0 0.0
    %2457 = vmatpush2.msra.mxu0 0.0
    %2458 = vmatprep.subr.mxu0 0.0
    %2459 = vmatpush2.msra.mxu0 0.0
    %2460 = vmatprep.subr.mxu0 0.0
    %2461 = vmatpush2.msra.mxu0 0.0
    %2462 = vmatprep.subr.mxu0 0.0
    %2463 = vmatpush2.msra.mxu0 0.0
    %2464 = vmatprep.subr.mxu0 0.0
    %2465 = vmatpush2.msra.mxu0 0.0
    %2466 = vmatprep.subr.mxu0 0.0
    %2467 = vmatpush2.msra.mxu0 0.0
    %2468 = vmatprep.subr.mxu0 0.0
    %2469 = vmatpush2.msra.mxu0 0.0
    %2470 = vmatprep.subr.mxu0 0.0
    %2471 = vmatpush2.msra.mxu0 0.0
    %2472 = vmatprep.subr.mxu0 0.0
    %2473 = vmatpush2.msra.mxu0 0.0
    %2474 = vmatprep.subr.mxu0 0.0
    %2475 = vmatpush2.msra.mxu0 0.0
    %2476 = vmatprep.subr.mxu0 0.0
    %2477 = vmatpush2.msra.mxu0 0.0
    %2478 = vmatprep.mubr.f32.mxu0 0.0
    %2479 = vmatmul.mubr.f32.gmra.mxu0 %v2342
    %v2480 = vpop.f32.mrf.mxu0
    %v2481 = vadd.f32 0.0, %v2480
    %v2482 = vpop.f32.mrf.mxu0
    %2483 = vdwg.mxu0
    %v2484 = vadd.f32 %v1980, %v2410
    %v2485 = vxor.u32 %v2484, 2147483648
    %v2486 = vmul.f32 %v2485, 1.442695
    %v2487 = vpow.pop %v2486
    %v2488 = vadd.f32 %v2487, 1.0
    %v2489 = vrcp.pop %v2488
    %v2490 = vmul.f32 1.0, %v2489
    %v2491 = vadd.f32 %v1982, %v2412
    %v2492 = vxor.u32 %v2491, 2147483648
    %v2493 = vmul.f32 %v2492, 1.442695
    %v2494 = vpow.pop %v2493
    %v2495 = vadd.f32 %v2494, 1.0
    %v2496 = vrcp.pop %v2495
    %v2497 = vmul.f32 1.0, %v2496
    %v2498 = vadd.f32 %v2481, %v2178
    %v2499 = vmul.f32 %v2490, %v2498
    %v2500 = vadd.f32 %v2092, %v2499
    %v2501 = vtanh.pop %v2500
    %v2502 = vsub.f32 1.0, %v2497
    %v2503 = vmul.f32 %v2502, %v2501
    %v2504 = vmul.f32 %v2497, %v2342
    %v2505 = vadd.f32 %v2503, %v2504
    %2506 = vmatprep.subr.mxu0 %v2171
    %2507 = vmatpush1.msra.mxu0 %v2170
    %2508 = vmatprep.subr.mxu0 %v2168
    %2509 = vmatpush1.msra.mxu0 %v2167
    %2510 = vmatprep.subr.mxu0 %v2165
    %2511 = vmatpush1.msra.mxu0 %v2164
    %2512 = vmatprep.subr.mxu0 %v2162
    %2513 = vmatpush1.msra.mxu0 %v2161
    %2514 = vmatprep.subr.mxu0 %v2159
    %2515 = vmatpush1.msra.mxu0 %v2158
    %2516 = vmatprep.subr.mxu0 %v2156
    %2517 = vmatpush1.msra.mxu0 %v2155
    %2518 = vmatprep.subr.mxu0 %v2153
    %2519 = vmatpush1.msra.mxu0 %v2152
    %2520 = vmatprep.subr.mxu0 %v2150
    %2521 = vmatpush1.msra.mxu0 %v2149
    %2522 = vmatprep.subr.mxu0 %v2147
    %2523 = vmatpush1.msra.mxu0 %v2146
    %2524 = vmatprep.subr.mxu0 %v2144
    %2525 = vmatpush1.msra.mxu0 %v2143
    %2526 = vmatprep.subr.mxu0 %v2141
    %2527 = vmatpush1.msra.mxu0 %v2140
    %2528 = vmatprep.subr.mxu0 %v2138
    %2529 = vmatpush1.msra.mxu0 %v2137
    %2530 = vmatprep.subr.mxu0 %v2135
    %2531 = vmatpush1.msra.mxu0 %v2134
    %2532 = vmatprep.subr.mxu0 %v2132
    %2533 = vmatpush1.msra.mxu0 %v2131
    %2534 = vmatprep.subr.mxu0 %v2129
    %2535 = vmatpush1.msra.mxu0 %v2128
    %2536 = vmatprep.subr.mxu0 %v2126
    %2537 = vmatpush1.msra.mxu0 %v2125
    %2538 = vmatprep.subr.mxu0 0.0
    %2539 = vmatpush2.msra.mxu0 0.0
    %2540 = vmatprep.subr.mxu0 0.0
    %2541 = vmatpush2.msra.mxu0 0.0
    %2542 = vmatprep.subr.mxu0 0.0
    %2543 = vmatpush2.msra.mxu0 0.0
    %2544 = vmatprep.subr.mxu0 0.0
    %2545 = vmatpush2.msra.mxu0 0.0
    %2546 = vmatprep.subr.mxu0 0.0
    %2547 = vmatpush2.msra.mxu0 0.0
    %2548 = vmatprep.subr.mxu0 0.0
    %2549 = vmatpush2.msra.mxu0 0.0
    %2550 = vmatprep.subr.mxu0 0.0
    %2551 = vmatpush2.msra.mxu0 0.0
    %2552 = vmatprep.subr.mxu0 0.0
    %2553 = vmatpush2.msra.mxu0 0.0
    %2554 = vmatprep.subr.mxu0 0.0
    %2555 = vmatpush2.msra.mxu0 0.0
    %2556 = vmatprep.subr.mxu0 0.0
    %2557 = vmatpush2.msra.mxu0 0.0
    %2558 = vmatprep.subr.mxu0 0.0
    %2559 = vmatpush2.msra.mxu0 0.0
    %2560 = vmatprep.subr.mxu0 0.0
    %2561 = vmatpush2.msra.mxu0 0.0
    %2562 = vmatprep.subr.mxu0 0.0
    %2563 = vmatpush2.msra.mxu0 0.0
    %2564 = vmatprep.subr.mxu0 0.0
    %2565 = vmatpush2.msra.mxu0 0.0
    %2566 = vmatprep.subr.mxu0 0.0
    %2567 = vmatpush2.msra.mxu0 0.0
    %2568 = vmatprep.subr.mxu0 0.0
    %2569 = vmatpush2.msra.mxu0 0.0
    %2570 = vmatprep.mubr.f32.mxu0 0.0
    %2571 = vmatmul.mubr.f32.gmra.mxu0 %v2505
    %v2572 = vpop.f32.mrf.mxu0
    %v2573 = vadd.f32 0.0, %v2572
    %v2574 = vpop.f32.mrf.mxu0
    %v2575 = vadd.f32 0.0, %v2574
    %2576 = vdwg.mxu0
    %2577 = vmatprep.subr.mxu0 0.0
    %2578 = vmatpush1.msra.mxu0 %v2172
    %2579 = vmatprep.subr.mxu0 0.0
    %2580 = vmatpush1.msra.mxu0 %v2169
    %2581 = vmatprep.subr.mxu0 0.0
    %2582 = vmatpush1.msra.mxu0 %v2166
    %2583 = vmatprep.subr.mxu0 0.0
    %2584 = vmatpush1.msra.mxu0 %v2163
    %2585 = vmatprep.subr.mxu0 0.0
    %2586 = vmatpush1.msra.mxu0 %v2160
    %2587 = vmatprep.subr.mxu0 0.0
    %2588 = vmatpush1.msra.mxu0 %v2157
    %2589 = vmatprep.subr.mxu0 0.0
    %2590 = vmatpush1.msra.mxu0 %v2154
    %2591 = vmatprep.subr.mxu0 0.0
    %2592 = vmatpush1.msra.mxu0 %v2151
    %2593 = vmatprep.subr.mxu0 0.0
    %2594 = vmatpush1.msra.mxu0 %v2148
    %2595 = vmatprep.subr.mxu0 0.0
    %2596 = vmatpush1.msra.mxu0 %v2145
    %2597 = vmatprep.subr.mxu0 0.0
    %2598 = vmatpush1.msra.mxu0 %v2142
    %2599 = vmatprep.subr.mxu0 0.0
    %2600 = vmatpush1.msra.mxu0 %v2139
    %2601 = vmatprep.subr.mxu0 0.0
    %2602 = vmatpush1.msra.mxu0 %v2136
    %2603 = vmatprep.subr.mxu0 0.0
    %2604 = vmatpush1.msra.mxu0 %v2133
    %2605 = vmatprep.subr.mxu0 0.0
    %2606 = vmatpush1.msra.mxu0 %v2130
    %2607 = vmatprep.subr.mxu0 0.0
    %2608 = vmatpush1.msra.mxu0 %v2127
    %2609 = vmatprep.subr.mxu0 0.0
    %2610 = vmatpush2.msra.mxu0 0.0
    %2611 = vmatprep.subr.mxu0 0.0
    %2612 = vmatpush2.msra.mxu0 0.0
    %2613 = vmatprep.subr.mxu0 0.0
    %2614 = vmatpush2.msra.mxu0 0.0
    %2615 = vmatprep.subr.mxu0 0.0
    %2616 = vmatpush2.msra.mxu0 0.0
    %2617 = vmatprep.subr.mxu0 0.0
    %2618 = vmatpush2.msra.mxu0 0.0
    %2619 = vmatprep.subr.mxu0 0.0
    %2620 = vmatpush2.msra.mxu0 0.0
    %2621 = vmatprep.subr.mxu0 0.0
    %2622 = vmatpush2.msra.mxu0 0.0
    %2623 = vmatprep.subr.mxu0 0.0
    %2624 = vmatpush2.msra.mxu0 0.0
    %2625 = vmatprep.subr.mxu0 0.0
    %2626 = vmatpush2.msra.mxu0 0.0
    %2627 = vmatprep.subr.mxu0 0.0
    %2628 = vmatpush2.msra.mxu0 0.0
    %2629 = vmatprep.subr.mxu0 0.0
    %2630 = vmatpush2.msra.mxu0 0.0
    %2631 = vmatprep.subr.mxu0 0.0
    %2632 = vmatpush2.msra.mxu0 0.0
    %2633 = vmatprep.subr.mxu0 0.0
    %2634 = vmatpush2.msra.mxu0 0.0
    %2635 = vmatprep.subr.mxu0 0.0
    %2636 = vmatpush2.msra.mxu0 0.0
    %2637 = vmatprep.subr.mxu0 0.0
    %2638 = vmatpush2.msra.mxu0 0.0
    %2639 = vmatprep.subr.mxu0 0.0
    %2640 = vmatpush2.msra.mxu0 0.0
    %2641 = vmatprep.mubr.f32.mxu0 0.0
    %2642 = vmatmul.mubr.f32.gmra.mxu0 %v2505
    %v2643 = vpop.f32.mrf.mxu0
    %v2644 = vadd.f32 0.0, %v2643
    %v2645 = vpop.f32.mrf.mxu0
    %2646 = vdwg.mxu0
    %v2647 = vadd.f32 %v1986, %v2573
    %v2648 = vxor.u32 %v2647, 2147483648
    %v2649 = vmul.f32 %v2648, 1.442695
    %v2650 = vpow.pop %v2649
    %v2651 = vadd.f32 %v2650, 1.0
    %v2652 = vrcp.pop %v2651
    %v2653 = vmul.f32 1.0, %v2652
    %v2654 = vadd.f32 %v1988, %v2575
    %v2655 = vxor.u32 %v2654, 2147483648
    %v2656 = vmul.f32 %v2655, 1.442695
    %v2657 = vpow.pop %v2656
    %v2658 = vadd.f32 %v2657, 1.0
    %v2659 = vrcp.pop %v2658
    %v2660 = vmul.f32 1.0, %v2659
    %v2661 = vadd.f32 %v2644, %v2178
    %v2662 = vmul.f32 %v2653, %v2661
    %v2663 = vadd.f32 %v2097, %v2662
    %v2664 = vtanh.pop %v2663
    %v2665 = vsub.f32 1.0, %v2660
    %v2666 = vmul.f32 %v2665, %v2664
    %v2667 = vmul.f32 %v2660, %v2505
    %v2668 = vadd.f32 %v2666, %v2667
    %2669 = vmatprep.subr.mxu0 %v2171
    %2670 = vmatpush1.msra.mxu0 %v2170
    %2671 = vmatprep.subr.mxu0 %v2168
    %2672 = vmatpush1.msra.mxu0 %v2167
    %2673 = vmatprep.subr.mxu0 %v2165
    %2674 = vmatpush1.msra.mxu0 %v2164
    %2675 = vmatprep.subr.mxu0 %v2162
    %2676 = vmatpush1.msra.mxu0 %v2161
    %2677 = vmatprep.subr.mxu0 %v2159
    %2678 = vmatpush1.msra.mxu0 %v2158
    %2679 = vmatprep.subr.mxu0 %v2156
    %2680 = vmatpush1.msra.mxu0 %v2155
    %2681 = vmatprep.subr.mxu0 %v2153
    %2682 = vmatpush1.msra.mxu0 %v2152
    %2683 = vmatprep.subr.mxu0 %v2150
    %2684 = vmatpush1.msra.mxu0 %v2149
    %2685 = vmatprep.subr.mxu0 %v2147
    %2686 = vmatpush1.msra.mxu0 %v2146
    %2687 = vmatprep.subr.mxu0 %v2144
    %2688 = vmatpush1.msra.mxu0 %v2143
    %2689 = vmatprep.subr.mxu0 %v2141
    %2690 = vmatpush1.msra.mxu0 %v2140
    %2691 = vmatprep.subr.mxu0 %v2138
    %2692 = vmatpush1.msra.mxu0 %v2137
    %2693 = vmatprep.subr.mxu0 %v2135
    %2694 = vmatpush1.msra.mxu0 %v2134
    %2695 = vmatprep.subr.mxu0 %v2132
    %2696 = vmatpush1.msra.mxu0 %v2131
    %2697 = vmatprep.subr.mxu0 %v2129
    %2698 = vmatpush1.msra.mxu0 %v2128
    %2699 = vmatprep.subr.mxu0 %v2126
    %2700 = vmatpush1.msra.mxu0 %v2125
    %2701 = vmatprep.subr.mxu0 0.0
    %2702 = vmatpush2.msra.mxu0 0.0
    %2703 = vmatprep.subr.mxu0 0.0
    %2704 = vmatpush2.msra.mxu0 0.0
    %2705 = vmatprep.subr.mxu0 0.0
    %2706 = vmatpush2.msra.mxu0 0.0
    %2707 = vmatprep.subr.mxu0 0.0
    %2708 = vmatpush2.msra.mxu0 0.0
    %2709 = vmatprep.subr.mxu0 0.0
    %2710 = vmatpush2.msra.mxu0 0.0
    %2711 = vmatprep.subr.mxu0 0.0
    %2712 = vmatpush2.msra.mxu0 0.0
    %2713 = vmatprep.subr.mxu0 0.0
    %2714 = vmatpush2.msra.mxu0 0.0
    %2715 = vmatprep.subr.mxu0 0.0
    %2716 = vmatpush2.msra.mxu0 0.0
    %2717 = vmatprep.subr.mxu0 0.0
    %2718 = vmatpush2.msra.mxu0 0.0
    %2719 = vmatprep.subr.mxu0 0.0
    %2720 = vmatpush2.msra.mxu0 0.0
    %2721 = vmatprep.subr.mxu0 0.0
    %2722 = vmatpush2.msra.mxu0 0.0
    %2723 = vmatprep.subr.mxu0 0.0
    %2724 = vmatpush2.msra.mxu0 0.0
    %2725 = vmatprep.subr.mxu0 0.0
    %2726 = vmatpush2.msra.mxu0 0.0
    %2727 = vmatprep.subr.mxu0 0.0
    %2728 = vmatpush2.msra.mxu0 0.0
    %2729 = vmatprep.subr.mxu0 0.0
    %2730 = vmatpush2.msra.mxu0 0.0
    %2731 = vmatprep.subr.mxu0 0.0
    %2732 = vmatpush2.msra.mxu0 0.0
    %2733 = vmatprep.mubr.f32.mxu0 0.0
    %2734 = vmatmul.mubr.f32.gmra.mxu0 %v2668
    %v2735 = vpop.f32.mrf.mxu0
    %v2736 = vadd.f32 0.0, %v2735
    %v2737 = vpop.f32.mrf.mxu0
    %v2738 = vadd.f32 0.0, %v2737
    %2739 = vdwg.mxu0
    %2740 = vmatprep.subr.mxu0 0.0
    %2741 = vmatpush1.msra.mxu0 %v2172
    %2742 = vmatprep.subr.mxu0 0.0
    %2743 = vmatpush1.msra.mxu0 %v2169
    %2744 = vmatprep.subr.mxu0 0.0
    %2745 = vmatpush1.msra.mxu0 %v2166
    %2746 = vmatprep.subr.mxu0 0.0
    %2747 = vmatpush1.msra.mxu0 %v2163
    %2748 = vmatprep.subr.mxu0 0.0
    %2749 = vmatpush1.msra.mxu0 %v2160
    %2750 = vmatprep.subr.mxu0 0.0
    %2751 = vmatpush1.msra.mxu0 %v2157
    %2752 = vmatprep.subr.mxu0 0.0
    %2753 = vmatpush1.msra.mxu0 %v2154
    %2754 = vmatprep.subr.mxu0 0.0
    %2755 = vmatpush1.msra.mxu0 %v2151
    %2756 = vmatprep.subr.mxu0 0.0
    %2757 = vmatpush1.msra.mxu0 %v2148
    %2758 = vmatprep.subr.mxu0 0.0
    %2759 = vmatpush1.msra.mxu0 %v2145
    %2760 = vmatprep.subr.mxu0 0.0
    %2761 = vmatpush1.msra.mxu0 %v2142
    %2762 = vmatprep.subr.mxu0 0.0
    %2763 = vmatpush1.msra.mxu0 %v2139
    %2764 = vmatprep.subr.mxu0 0.0
    %2765 = vmatpush1.msra.mxu0 %v2136
    %2766 = vmatprep.subr.mxu0 0.0
    %2767 = vmatpush1.msra.mxu0 %v2133
    %2768 = vmatprep.subr.mxu0 0.0
    %2769 = vmatpush1.msra.mxu0 %v2130
    %2770 = vmatprep.subr.mxu0 0.0
    %2771 = vmatpush1.msra.mxu0 %v2127
    %2772 = vmatprep.subr.mxu0 0.0
    %2773 = vmatpush2.msra.mxu0 0.0
    %2774 = vmatprep.subr.mxu0 0.0
    %2775 = vmatpush2.msra.mxu0 0.0
    %2776 = vmatprep.subr.mxu0 0.0
    %2777 = vmatpush2.msra.mxu0 0.0
    %2778 = vmatprep.subr.mxu0 0.0
    %2779 = vmatpush2.msra.mxu0 0.0
    %2780 = vmatprep.subr.mxu0 0.0
    %2781 = vmatpush2.msra.mxu0 0.0
    %2782 = vmatprep.subr.mxu0 0.0
    %2783 = vmatpush2.msra.mxu0 0.0
    %2784 = vmatprep.subr.mxu0 0.0
    %2785 = vmatpush2.msra.mxu0 0.0
    %2786 = vmatprep.subr.mxu0 0.0
    %2787 = vmatpush2.msra.mxu0 0.0
    %2788 = vmatprep.subr.mxu0 0.0
    %2789 = vmatpush2.msra.mxu0 0.0
    %2790 = vmatprep.subr.mxu0 0.0
    %2791 = vmatpush2.msra.mxu0 0.0
    %2792 = vmatprep.subr.mxu0 0.0
    %2793 = vmatpush2.msra.mxu0 0.0
    %2794 = vmatprep.subr.mxu0 0.0
    %2795 = vmatpush2.msra.mxu0 0.0
    %2796 = vmatprep.subr.mxu0 0.0
    %2797 = vmatpush2.msra.mxu0 0.0
    %2798 = vmatprep.subr.mxu0 0.0
    %2799 = vmatpush2.msra.mxu0 0.0
    %2800 = vmatprep.subr.mxu0 0.0
    %2801 = vmatpush2.msra.mxu0 0.0
    %2802 = vmatprep.subr.mxu0 0.0
    %2803 = vmatpush2.msra.mxu0 0.0
    %2804 = vmatprep.mubr.f32.mxu0 0.0
    %2805 = vmatmul.mubr.f32.gmra.mxu0 %v2668
    %v2806 = vpop.f32.mrf.mxu0
    %v2807 = vadd.f32 0.0, %v2806
    %v2808 = vpop.f32.mrf.mxu0
    %2809 = vdwg.mxu0
    %v2810 = vadd.f32 %v1992, %v2736
    %v2811 = vxor.u32 %v2810, 2147483648
    %v2812 = vmul.f32 %v2811, 1.442695
    %v2813 = vpow.pop %v2812
    %v2814 = vadd.f32 %v2813, 1.0
    %v2815 = vrcp.pop %v2814
    %v2816 = vmul.f32 1.0, %v2815
    %v2817 = vadd.f32 %v1994, %v2738
    %v2818 = vxor.u32 %v2817, 2147483648
    %v2819 = vmul.f32 %v2818, 1.442695
    %v2820 = vpow.pop %v2819
    %v2821 = vadd.f32 %v2820, 1.0
    %v2822 = vrcp.pop %v2821
    %v2823 = vmul.f32 1.0, %v2822
    %v2824 = vadd.f32 %v2807, %v2178
    %v2825 = vmul.f32 %v2816, %v2824
    %v2826 = vadd.f32 %v2102, %v2825
    %v2827 = vtanh.pop %v2826
    %v2828 = vsub.f32 1.0, %v2823
    %v2829 = vmul.f32 %v2828, %v2827
    %v2830 = vmul.f32 %v2823, %v2668
    %v2831 = vadd.f32 %v2829, %v2830
    %2832 = vmatprep.subr.mxu0 %v2171
    %2833 = vmatpush1.msra.mxu0 %v2170
    %2834 = vmatprep.subr.mxu0 %v2168
    %2835 = vmatpush1.msra.mxu0 %v2167
    %2836 = vmatprep.subr.mxu0 %v2165
    %2837 = vmatpush1.msra.mxu0 %v2164
    %2838 = vmatprep.subr.mxu0 %v2162
    %2839 = vmatpush1.msra.mxu0 %v2161
    %2840 = vmatprep.subr.mxu0 %v2159
    %2841 = vmatpush1.msra.mxu0 %v2158
    %2842 = vmatprep.subr.mxu0 %v2156
    %2843 = vmatpush1.msra.mxu0 %v2155
    %2844 = vmatprep.subr.mxu0 %v2153
    %2845 = vmatpush1.msra.mxu0 %v2152
    %2846 = vmatprep.subr.mxu0 %v2150
    %2847 = vmatpush1.msra.mxu0 %v2149
    %2848 = vmatprep.subr.mxu0 %v2147
    %2849 = vmatpush1.msra.mxu0 %v2146
    %2850 = vmatprep.subr.mxu0 %v2144
    %2851 = vmatpush1.msra.mxu0 %v2143
    %2852 = vmatprep.subr.mxu0 %v2141
    %2853 = vmatpush1.msra.mxu0 %v2140
    %2854 = vmatprep.subr.mxu0 %v2138
    %2855 = vmatpush1.msra.mxu0 %v2137
    %2856 = vmatprep.subr.mxu0 %v2135
    %2857 = vmatpush1.msra.mxu0 %v2134
    %2858 = vmatprep.subr.mxu0 %v2132
    %2859 = vmatpush1.msra.mxu0 %v2131
    %2860 = vmatprep.subr.mxu0 %v2129
    %2861 = vmatpush1.msra.mxu0 %v2128
    %2862 = vmatprep.subr.mxu0 %v2126
    %2863 = vmatpush1.msra.mxu0 %v2125
    %2864 = vmatprep.subr.mxu0 0.0
    %2865 = vmatpush2.msra.mxu0 0.0
    %2866 = vmatprep.subr.mxu0 0.0
    %2867 = vmatpush2.msra.mxu0 0.0
    %2868 = vmatprep.subr.mxu0 0.0
    %2869 = vmatpush2.msra.mxu0 0.0
    %2870 = vmatprep.subr.mxu0 0.0
    %2871 = vmatpush2.msra.mxu0 0.0
    %2872 = vmatprep.subr.mxu0 0.0
    %2873 = vmatpush2.msra.mxu0 0.0
    %2874 = vmatprep.subr.mxu0 0.0
    %2875 = vmatpush2.msra.mxu0 0.0
    %2876 = vmatprep.subr.mxu0 0.0
    %2877 = vmatpush2.msra.mxu0 0.0
    %2878 = vmatprep.subr.mxu0 0.0
    %2879 = vmatpush2.msra.mxu0 0.0
    %2880 = vmatprep.subr.mxu0 0.0
    %2881 = vmatpush2.msra.mxu0 0.0
    %2882 = vmatprep.subr.mxu0 0.0
    %2883 = vmatpush2.msra.mxu0 0.0
    %2884 = vmatprep.subr.mxu0 0.0
    %2885 = vmatpush2.msra.mxu0 0.0
    %2886 = vmatprep.subr.mxu0 0.0
    %2887 = vmatpush2.msra.mxu0 0.0
    %2888 = vmatprep.subr.mxu0 0.0
    %2889 = vmatpush2.msra.mxu0 0.0
    %2890 = vmatprep.subr.mxu0 0.0
    %2891 = vmatpush2.msra.mxu0 0.0
    %2892 = vmatprep.subr.mxu0 0.0
    %2893 = vmatpush2.msra.mxu0 0.0
    %2894 = vmatprep.subr.mxu0 0.0
    %2895 = vmatpush2.msra.mxu0 0.0
    %2896 = vmatprep.mubr.f32.mxu0 0.0
    %2897 = vmatmul.mubr.f32.gmra.mxu0 %v2831
    %v2898 = vpop.f32.mrf.mxu0
    %v2899 = vadd.f32 0.0, %v2898
    %v2900 = vpop.f32.mrf.mxu0
    %v2901 = vadd.f32 0.0, %v2900
    %2902 = vdwg.mxu0
    %2903 = vmatprep.subr.mxu0 0.0
    %2904 = vmatpush1.msra.mxu0 %v2172
    %2905 = vmatprep.subr.mxu0 0.0
    %2906 = vmatpush1.msra.mxu0 %v2169
    %2907 = vmatprep.subr.mxu0 0.0
    %2908 = vmatpush1.msra.mxu0 %v2166
    %2909 = vmatprep.subr.mxu0 0.0
    %2910 = vmatpush1.msra.mxu0 %v2163
    %2911 = vmatprep.subr.mxu0 0.0
    %2912 = vmatpush1.msra.mxu0 %v2160
    %2913 = vmatprep.subr.mxu0 0.0
    %2914 = vmatpush1.msra.mxu0 %v2157
    %2915 = vmatprep.subr.mxu0 0.0
    %2916 = vmatpush1.msra.mxu0 %v2154
    %2917 = vmatprep.subr.mxu0 0.0
    %2918 = vmatpush1.msra.mxu0 %v2151
    %2919 = vmatprep.subr.mxu0 0.0
    %2920 = vmatpush1.msra.mxu0 %v2148
    %2921 = vmatprep.subr.mxu0 0.0
    %2922 = vmatpush1.msra.mxu0 %v2145
    %2923 = vmatprep.subr.mxu0 0.0
    %2924 = vmatpush1.msra.mxu0 %v2142
    %2925 = vmatprep.subr.mxu0 0.0
    %2926 = vmatpush1.msra.mxu0 %v2139
    %2927 = vmatprep.subr.mxu0 0.0
    %2928 = vmatpush1.msra.mxu0 %v2136
    %2929 = vmatprep.subr.mxu0 0.0
    %2930 = vmatpush1.msra.mxu0 %v2133
    %2931 = vmatprep.subr.mxu0 0.0
    %2932 = vmatpush1.msra.mxu0 %v2130
    %2933 = vmatprep.subr.mxu0 0.0
    %2934 = vmatpush1.msra.mxu0 %v2127
    %2935 = vmatprep.subr.mxu0 0.0
    %2936 = vmatpush2.msra.mxu0 0.0
    %2937 = vmatprep.subr.mxu0 0.0
    %2938 = vmatpush2.msra.mxu0 0.0
    %2939 = vmatprep.subr.mxu0 0.0
    %2940 = vmatpush2.msra.mxu0 0.0
    %2941 = vmatprep.subr.mxu0 0.0
    %2942 = vmatpush2.msra.mxu0 0.0
    %2943 = vmatprep.subr.mxu0 0.0
    %2944 = vmatpush2.msra.mxu0 0.0
    %2945 = vmatprep.subr.mxu0 0.0
    %2946 = vmatpush2.msra.mxu0 0.0
    %2947 = vmatprep.subr.mxu0 0.0
    %2948 = vmatpush2.msra.mxu0 0.0
    %2949 = vmatprep.subr.mxu0 0.0
    %2950 = vmatpush2.msra.mxu0 0.0
    %2951 = vmatprep.subr.mxu0 0.0
    %2952 = vmatpush2.msra.mxu0 0.0
    %2953 = vmatprep.subr.mxu0 0.0
    %2954 = vmatpush2.msra.mxu0 0.0
    %2955 = vmatprep.subr.mxu0 0.0
    %2956 = vmatpush2.msra.mxu0 0.0
    %2957 = vmatprep.subr.mxu0 0.0
    %2958 = vmatpush2.msra.mxu0 0.0
    %2959 = vmatprep.subr.mxu0 0.0
    %2960 = vmatpush2.msra.mxu0 0.0
    %2961 = vmatprep.subr.mxu0 0.0
    %2962 = vmatpush2.msra.mxu0 0.0
    %2963 = vmatprep.subr.mxu0 0.0
    %2964 = vmatpush2.msra.mxu0 0.0
    %2965 = vmatprep.subr.mxu0 0.0
    %2966 = vmatpush2.msra.mxu0 0.0
    %2967 = vmatprep.mubr.f32.mxu0 0.0
    %2968 = vmatmul.mubr.f32.gmra.mxu0 %v2831
    %v2969 = vpop.f32.mrf.mxu0
    %v2970 = vadd.f32 0.0, %v2969
    %v2971 = vpop.f32.mrf.mxu0
    %2972 = vdwg.mxu0
    %v2973 = vadd.f32 %v1998, %v2899
    %v2974 = vxor.u32 %v2973, 2147483648
    %v2975 = vmul.f32 %v2974, 1.442695
    %v2976 = vpow.pop %v2975
    %v2977 = vadd.f32 %v2976, 1.0
    %v2978 = vrcp.pop %v2977
    %v2979 = vmul.f32 1.0, %v2978
    %v2980 = vadd.f32 %v2000, %v2901
    %v2981 = vxor.u32 %v2980, 2147483648
    %v2982 = vmul.f32 %v2981, 1.442695
    %v2983 = vpow.pop %v2982
    %v2984 = vadd.f32 %v2983, 1.0
    %v2985 = vrcp.pop %v2984
    %v2986 = vmul.f32 1.0, %v2985
    %v2987 = vadd.f32 %v2970, %v2178
    %v2988 = vmul.f32 %v2979, %v2987
    %v2989 = vadd.f32 %v2107, %v2988
    %v2990 = vtanh.pop %v2989
    %v2991 = vsub.f32 1.0, %v2986
    %v2992 = vmul.f32 %v2991, %v2990
    %v2993 = vmul.f32 %v2986, %v2831
    %v2994 = vadd.f32 %v2992, %v2993
    %2995 = vmatprep.subr.mxu0 %v2171
    %2996 = vmatpush1.msra.mxu0 %v2170
    %2997 = vmatprep.subr.mxu0 %v2168
    %2998 = vmatpush1.msra.mxu0 %v2167
    %2999 = vmatprep.subr.mxu0 %v2165
    %3000 = vmatpush1.msra.mxu0 %v2164
    %3001 = vmatprep.subr.mxu0 %v2162
    %3002 = vmatpush1.msra.mxu0 %v2161
    %3003 = vmatprep.subr.mxu0 %v2159
    %3004 = vmatpush1.msra.mxu0 %v2158
    %3005 = vmatprep.subr.mxu0 %v2156
    %3006 = vmatpush1.msra.mxu0 %v2155
    %3007 = vmatprep.subr.mxu0 %v2153
    %3008 = vmatpush1.msra.mxu0 %v2152
    %3009 = vmatprep.subr.mxu0 %v2150
    %3010 = vmatpush1.msra.mxu0 %v2149
    %3011 = vmatprep.subr.mxu0 %v2147
    %3012 = vmatpush1.msra.mxu0 %v2146
    %3013 = vmatprep.subr.mxu0 %v2144
    %3014 = vmatpush1.msra.mxu0 %v2143
    %3015 = vmatprep.subr.mxu0 %v2141
    %3016 = vmatpush1.msra.mxu0 %v2140
    %3017 = vmatprep.subr.mxu0 %v2138
    %3018 = vmatpush1.msra.mxu0 %v2137
    %3019 = vmatprep.subr.mxu0 %v2135
    %3020 = vmatpush1.msra.mxu0 %v2134
    %3021 = vmatprep.subr.mxu0 %v2132
    %3022 = vmatpush1.msra.mxu0 %v2131
    %3023 = vmatprep.subr.mxu0 %v2129
    %3024 = vmatpush1.msra.mxu0 %v2128
    %3025 = vmatprep.subr.mxu0 %v2126
    %3026 = vmatpush1.msra.mxu0 %v2125
    %3027 = vmatprep.subr.mxu0 0.0
    %3028 = vmatpush2.msra.mxu0 0.0
    %3029 = vmatprep.subr.mxu0 0.0
    %3030 = vmatpush2.msra.mxu0 0.0
    %3031 = vmatprep.subr.mxu0 0.0
    %3032 = vmatpush2.msra.mxu0 0.0
    %3033 = vmatprep.subr.mxu0 0.0
    %3034 = vmatpush2.msra.mxu0 0.0
    %3035 = vmatprep.subr.mxu0 0.0
    %3036 = vmatpush2.msra.mxu0 0.0
    %3037 = vmatprep.subr.mxu0 0.0
    %3038 = vmatpush2.msra.mxu0 0.0
    %3039 = vmatprep.subr.mxu0 0.0
    %3040 = vmatpush2.msra.mxu0 0.0
    %3041 = vmatprep.subr.mxu0 0.0
    %3042 = vmatpush2.msra.mxu0 0.0
    %3043 = vmatprep.subr.mxu0 0.0
    %3044 = vmatpush2.msra.mxu0 0.0
    %3045 = vmatprep.subr.mxu0 0.0
    %3046 = vmatpush2.msra.mxu0 0.0
    %3047 = vmatprep.subr.mxu0 0.0
    %3048 = vmatpush2.msra.mxu0 0.0
    %3049 = vmatprep.subr.mxu0 0.0
    %3050 = vmatpush2.msra.mxu0 0.0
    %3051 = vmatprep.subr.mxu0 0.0
    %3052 = vmatpush2.msra.mxu0 0.0
    %3053 = vmatprep.subr.mxu0 0.0
    %3054 = vmatpush2.msra.mxu0 0.0
    %3055 = vmatprep.subr.mxu0 0.0
    %3056 = vmatpush2.msra.mxu0 0.0
    %3057 = vmatprep.subr.mxu0 0.0
    %3058 = vmatpush2.msra.mxu0 0.0
    %3059 = vmatprep.mubr.f32.mxu0 0.0
    %3060 = vmatmul.mubr.f32.gmra.mxu0 %v2994
    %v3061 = vpop.f32.mrf.mxu0
    %v3062 = vadd.f32 0.0, %v3061
    %v3063 = vpop.f32.mrf.mxu0
    %v3064 = vadd.f32 0.0, %v3063
    %3065 = vdwg.mxu0
    %3066 = vmatprep.subr.mxu0 0.0
    %3067 = vmatpush1.msra.mxu0 %v2172
    %3068 = vmatprep.subr.mxu0 0.0
    %3069 = vmatpush1.msra.mxu0 %v2169
    %3070 = vmatprep.subr.mxu0 0.0
    %3071 = vmatpush1.msra.mxu0 %v2166
    %3072 = vmatprep.subr.mxu0 0.0
    %3073 = vmatpush1.msra.mxu0 %v2163
    %3074 = vmatprep.subr.mxu0 0.0
    %3075 = vmatpush1.msra.mxu0 %v2160
    %3076 = vmatprep.subr.mxu0 0.0
    %3077 = vmatpush1.msra.mxu0 %v2157
    %3078 = vmatprep.subr.mxu0 0.0
    %3079 = vmatpush1.msra.mxu0 %v2154
    %3080 = vmatprep.subr.mxu0 0.0
    %3081 = vmatpush1.msra.mxu0 %v2151
    %3082 = vmatprep.subr.mxu0 0.0
    %3083 = vmatpush1.msra.mxu0 %v2148
    %3084 = vmatprep.subr.mxu0 0.0
    %3085 = vmatpush1.msra.mxu0 %v2145
    %3086 = vmatprep.subr.mxu0 0.0
    %3087 = vmatpush1.msra.mxu0 %v2142
    %3088 = vmatprep.subr.mxu0 0.0
    %3089 = vmatpush1.msra.mxu0 %v2139
    %3090 = vmatprep.subr.mxu0 0.0
    %3091 = vmatpush1.msra.mxu0 %v2136
    %3092 = vmatprep.subr.mxu0 0.0
    %3093 = vmatpush1.msra.mxu0 %v2133
    %3094 = vmatprep.subr.mxu0 0.0
    %3095 = vmatpush1.msra.mxu0 %v2130
    %3096 = vmatprep.subr.mxu0 0.0
    %3097 = vmatpush1.msra.mxu0 %v2127
    %3098 = vmatprep.subr.mxu0 0.0
    %3099 = vmatpush2.msra.mxu0 0.0
    %3100 = vmatprep.subr.mxu0 0.0
    %3101 = vmatpush2.msra.mxu0 0.0
    %3102 = vmatprep.subr.mxu0 0.0
    %3103 = vmatpush2.msra.mxu0 0.0
    %3104 = vmatprep.subr.mxu0 0.0
    %3105 = vmatpush2.msra.mxu0 0.0
    %3106 = vmatprep.subr.mxu0 0.0
    %3107 = vmatpush2.msra.mxu0 0.0
    %3108 = vmatprep.subr.mxu0 0.0
    %3109 = vmatpush2.msra.mxu0 0.0
    %3110 = vmatprep.subr.mxu0 0.0
    %3111 = vmatpush2.msra.mxu0 0.0
    %3112 = vmatprep.subr.mxu0 0.0
    %3113 = vmatpush2.msra.mxu0 0.0
    %3114 = vmatprep.subr.mxu0 0.0
    %3115 = vmatpush2.msra.mxu0 0.0
    %3116 = vmatprep.subr.mxu0 0.0
    %3117 = vmatpush2.msra.mxu0 0.0
    %3118 = vmatprep.subr.mxu0 0.0
    %3119 = vmatpush2.msra.mxu0 0.0
    %3120 = vmatprep.subr.mxu0 0.0
    %3121 = vmatpush2.msra.mxu0 0.0
    %3122 = vmatprep.subr.mxu0 0.0
    %3123 = vmatpush2.msra.mxu0 0.0
    %3124 = vmatprep.subr.mxu0 0.0
    %3125 = vmatpush2.msra.mxu0 0.0
    %3126 = vmatprep.subr.mxu0 0.0
    %3127 = vmatpush2.msra.mxu0 0.0
    %3128 = vmatprep.subr.mxu0 0.0
    %3129 = vmatpush2.msra.mxu0 0.0
    %3130 = vmatprep.mubr.f32.mxu0 0.0
    %3131 = vmatmul.mubr.f32.gmra.mxu0 %v2994
    %v3132 = vpop.f32.mrf.mxu0
    %v3133 = vadd.f32 0.0, %v3132
    %v3134 = vpop.f32.mrf.mxu0
    %3135 = vdwg.mxu0
    %v3136 = vadd.f32 %v2004, %v3062
    %v3137 = vxor.u32 %v3136, 2147483648
    %v3138 = vmul.f32 %v3137, 1.442695
    %v3139 = vpow.pop %v3138
    %v3140 = vadd.f32 %v3139, 1.0
    %v3141 = vrcp.pop %v3140
    %v3142 = vmul.f32 1.0, %v3141
    %v3143 = vadd.f32 %v2006, %v3064
    %v3144 = vxor.u32 %v3143, 2147483648
    %v3145 = vmul.f32 %v3144, 1.442695
    %v3146 = vpow.pop %v3145
    %v3147 = vadd.f32 %v3146, 1.0
    %v3148 = vrcp.pop %v3147
    %v3149 = vmul.f32 1.0, %v3148
    %v3150 = vadd.f32 %v3133, %v2178
    %v3151 = vmul.f32 %v3142, %v3150
    %v3152 = vadd.f32 %v2112, %v3151
    %v3153 = vtanh.pop %v3152
    %v3154 = vsub.f32 1.0, %v3149
    %v3155 = vmul.f32 %v3154, %v3153
    %v3156 = vmul.f32 %v3149, %v2994
    %v3157 = vadd.f32 %v3155, %v3156
    %3158 = vmatprep.subr.mxu0 %v2171
    %3159 = vmatpush1.msra.mxu0 %v2170
    %3160 = vmatprep.subr.mxu0 %v2168
    %3161 = vmatpush1.msra.mxu0 %v2167
    %3162 = vmatprep.subr.mxu0 %v2165
    %3163 = vmatpush1.msra.mxu0 %v2164
    %3164 = vmatprep.subr.mxu0 %v2162
    %3165 = vmatpush1.msra.mxu0 %v2161
    %3166 = vmatprep.subr.mxu0 %v2159
    %3167 = vmatpush1.msra.mxu0 %v2158
    %3168 = vmatprep.subr.mxu0 %v2156
    %3169 = vmatpush1.msra.mxu0 %v2155
    %3170 = vmatprep.subr.mxu0 %v2153
    %3171 = vmatpush1.msra.mxu0 %v2152
    %3172 = vmatprep.subr.mxu0 %v2150
    %3173 = vmatpush1.msra.mxu0 %v2149
    %3174 = vmatprep.subr.mxu0 %v2147
    %3175 = vmatpush1.msra.mxu0 %v2146
    %3176 = vmatprep.subr.mxu0 %v2144
    %3177 = vmatpush1.msra.mxu0 %v2143
    %3178 = vmatprep.subr.mxu0 %v2141
    %3179 = vmatpush1.msra.mxu0 %v2140
    %3180 = vmatprep.subr.mxu0 %v2138
    %3181 = vmatpush1.msra.mxu0 %v2137
    %3182 = vmatprep.subr.mxu0 %v2135
    %3183 = vmatpush1.msra.mxu0 %v2134
    %3184 = vmatprep.subr.mxu0 %v2132
    %3185 = vmatpush1.msra.mxu0 %v2131
    %3186 = vmatprep.subr.mxu0 %v2129
    %3187 = vmatpush1.msra.mxu0 %v2128
    %3188 = vmatprep.subr.mxu0 %v2126
    %3189 = vmatpush1.msra.mxu0 %v2125
    %3190 = vmatprep.subr.mxu0 0.0
    %3191 = vmatpush2.msra.mxu0 0.0
    %3192 = vmatprep.subr.mxu0 0.0
    %3193 = vmatpush2.msra.mxu0 0.0
    %3194 = vmatprep.subr.mxu0 0.0
    %3195 = vmatpush2.msra.mxu0 0.0
    %3196 = vmatprep.subr.mxu0 0.0
    %3197 = vmatpush2.msra.mxu0 0.0
    %3198 = vmatprep.subr.mxu0 0.0
    %3199 = vmatpush2.msra.mxu0 0.0
    %3200 = vmatprep.subr.mxu0 0.0
    %3201 = vmatpush2.msra.mxu0 0.0
    %3202 = vmatprep.subr.mxu0 0.0
    %3203 = vmatpush2.msra.mxu0 0.0
    %3204 = vmatprep.subr.mxu0 0.0
    %3205 = vmatpush2.msra.mxu0 0.0
    %3206 = vmatprep.subr.mxu0 0.0
    %3207 = vmatpush2.msra.mxu0 0.0
    %3208 = vmatprep.subr.mxu0 0.0
    %3209 = vmatpush2.msra.mxu0 0.0
    %3210 = vmatprep.subr.mxu0 0.0
    %3211 = vmatpush2.msra.mxu0 0.0
    %3212 = vmatprep.subr.mxu0 0.0
    %3213 = vmatpush2.msra.mxu0 0.0
    %3214 = vmatprep.subr.mxu0 0.0
    %3215 = vmatpush2.msra.mxu0 0.0
    %3216 = vmatprep.subr.mxu0 0.0
    %3217 = vmatpush2.msra.mxu0 0.0
    %3218 = vmatprep.subr.mxu0 0.0
    %3219 = vmatpush2.msra.mxu0 0.0
    %3220 = vmatprep.subr.mxu0 0.0
    %3221 = vmatpush2.msra.mxu0 0.0
    %3222 = vmatprep.mubr.f32.mxu0 0.0
    %3223 = vmatmul.mubr.f32.gmra.mxu0 %v3157
    %v3224 = vpop.f32.mrf.mxu0
    %v3225 = vadd.f32 0.0, %v3224
    %v3226 = vpop.f32.mrf.mxu0
    %v3227 = vadd.f32 0.0, %v3226
    %3228 = vdwg.mxu0
    %3229 = vmatprep.subr.mxu0 0.0
    %3230 = vmatpush1.msra.mxu0 %v2172
    %3231 = vmatprep.subr.mxu0 0.0
    %3232 = vmatpush1.msra.mxu0 %v2169
    %3233 = vmatprep.subr.mxu0 0.0
    %3234 = vmatpush1.msra.mxu0 %v2166
    %3235 = vmatprep.subr.mxu0 0.0
    %3236 = vmatpush1.msra.mxu0 %v2163
    %3237 = vmatprep.subr.mxu0 0.0
    %3238 = vmatpush1.msra.mxu0 %v2160
    %3239 = vmatprep.subr.mxu0 0.0
    %3240 = vmatpush1.msra.mxu0 %v2157
    %3241 = vmatprep.subr.mxu0 0.0
    %3242 = vmatpush1.msra.mxu0 %v2154
    %3243 = vmatprep.subr.mxu0 0.0
    %3244 = vmatpush1.msra.mxu0 %v2151
    %3245 = vmatprep.subr.mxu0 0.0
    %3246 = vmatpush1.msra.mxu0 %v2148
    %3247 = vmatprep.subr.mxu0 0.0
    %3248 = vmatpush1.msra.mxu0 %v2145
    %3249 = vmatprep.subr.mxu0 0.0
    %3250 = vmatpush1.msra.mxu0 %v2142
    %3251 = vmatprep.subr.mxu0 0.0
    %3252 = vmatpush1.msra.mxu0 %v2139
    %3253 = vmatprep.subr.mxu0 0.0
    %3254 = vmatpush1.msra.mxu0 %v2136
    %3255 = vmatprep.subr.mxu0 0.0
    %3256 = vmatpush1.msra.mxu0 %v2133
    %3257 = vmatprep.subr.mxu0 0.0
    %3258 = vmatpush1.msra.mxu0 %v2130
    %3259 = vmatprep.subr.mxu0 0.0
    %3260 = vmatpush1.msra.mxu0 %v2127
    %3261 = vmatprep.subr.mxu0 0.0
    %3262 = vmatpush2.msra.mxu0 0.0
    %3263 = vmatprep.subr.mxu0 0.0
    %3264 = vmatpush2.msra.mxu0 0.0
    %3265 = vmatprep.subr.mxu0 0.0
    %3266 = vmatpush2.msra.mxu0 0.0
    %3267 = vmatprep.subr.mxu0 0.0
    %3268 = vmatpush2.msra.mxu0 0.0
    %3269 = vmatprep.subr.mxu0 0.0
    %3270 = vmatpush2.msra.mxu0 0.0
    %3271 = vmatprep.subr.mxu0 0.0
    %3272 = vmatpush2.msra.mxu0 0.0
    %3273 = vmatprep.subr.mxu0 0.0
    %3274 = vmatpush2.msra.mxu0 0.0
    %3275 = vmatprep.subr.mxu0 0.0
    %3276 = vmatpush2.msra.mxu0 0.0
    %3277 = vmatprep.subr.mxu0 0.0
    %3278 = vmatpush2.msra.mxu0 0.0
    %3279 = vmatprep.subr.mxu0 0.0
    %3280 = vmatpush2.msra.mxu0 0.0
    %3281 = vmatprep.subr.mxu0 0.0
    %3282 = vmatpush2.msra.mxu0 0.0
    %3283 = vmatprep.subr.mxu0 0.0
    %3284 = vmatpush2.msra.mxu0 0.0
    %3285 = vmatprep.subr.mxu0 0.0
    %3286 = vmatpush2.msra.mxu0 0.0
    %3287 = vmatprep.subr.mxu0 0.0
    %3288 = vmatpush2.msra.mxu0 0.0
    %3289 = vmatprep.subr.mxu0 0.0
    %3290 = vmatpush2.msra.mxu0 0.0
    %3291 = vmatprep.subr.mxu0 0.0
    %3292 = vmatpush2.msra.mxu0 0.0
    %3293 = vmatprep.mubr.f32.mxu0 0.0
    %3294 = vmatmul.mubr.f32.gmra.mxu0 %v3157
    %v3295 = vpop.f32.mrf.mxu0
    %v3296 = vadd.f32 0.0, %v3295
    %v3297 = vpop.f32.mrf.mxu0
    %3298 = vdwg.mxu0
    %v3299 = vadd.f32 %v2010, %v3225
    %v3300 = vxor.u32 %v3299, 2147483648
    %v3301 = vmul.f32 %v3300, 1.442695
    %v3302 = vpow.pop %v3301
    %v3303 = vadd.f32 %v3302, 1.0
    %v3304 = vrcp.pop %v3303
    %v3305 = vmul.f32 1.0, %v3304
    %v3306 = vadd.f32 %v2012, %v3227
    %v3307 = vxor.u32 %v3306, 2147483648
    %v3308 = vmul.f32 %v3307, 1.442695
    %v3309 = vpow.pop %v3308
    %v3310 = vadd.f32 %v3309, 1.0
    %v3311 = vrcp.pop %v3310
    %v3312 = vmul.f32 1.0, %v3311
    %v3313 = vadd.f32 %v3296, %v2178
    %v3314 = vmul.f32 %v3305, %v3313
    %v3315 = vadd.f32 %v2117, %v3314
    %v3316 = vtanh.pop %v3315
    %v3317 = vsub.f32 1.0, %v3312
    %v3318 = vmul.f32 %v3317, %v3316
    %v3319 = vmul.f32 %v3312, %v3157
    %v3320 = vadd.f32 %v3318, %v3319
    %3321 = vmatprep.subr.mxu0 %v2171
    %3322 = vmatpush1.msra.mxu0 %v2170
    %3323 = vmatprep.subr.mxu0 %v2168
    %3324 = vmatpush1.msra.mxu0 %v2167
    %3325 = vmatprep.subr.mxu0 %v2165
    %3326 = vmatpush1.msra.mxu0 %v2164
    %3327 = vmatprep.subr.mxu0 %v2162
    %3328 = vmatpush1.msra.mxu0 %v2161
    %3329 = vmatprep.subr.mxu0 %v2159
    %3330 = vmatpush1.msra.mxu0 %v2158
    %3331 = vmatprep.subr.mxu0 %v2156
    %3332 = vmatpush1.msra.mxu0 %v2155
    %3333 = vmatprep.subr.mxu0 %v2153
    %3334 = vmatpush1.msra.mxu0 %v2152
    %3335 = vmatprep.subr.mxu0 %v2150
    %3336 = vmatpush1.msra.mxu0 %v2149
    %3337 = vmatprep.subr.mxu0 %v2147
    %3338 = vmatpush1.msra.mxu0 %v2146
    %3339 = vmatprep.subr.mxu0 %v2144
    %3340 = vmatpush1.msra.mxu0 %v2143
    %3341 = vmatprep.subr.mxu0 %v2141
    %3342 = vmatpush1.msra.mxu0 %v2140
    %3343 = vmatprep.subr.mxu0 %v2138
    %3344 = vmatpush1.msra.mxu0 %v2137
    %3345 = vmatprep.subr.mxu0 %v2135
    %3346 = vmatpush1.msra.mxu0 %v2134
    %3347 = vmatprep.subr.mxu0 %v2132
    %3348 = vmatpush1.msra.mxu0 %v2131
    %3349 = vmatprep.subr.mxu0 %v2129
    %3350 = vmatpush1.msra.mxu0 %v2128
    %3351 = vmatprep.subr.mxu0 %v2126
    %3352 = vmatpush1.msra.mxu0 %v2125
    %3353 = vmatprep.subr.mxu0 0.0
    %3354 = vmatpush2.msra.mxu0 0.0
    %3355 = vmatprep.subr.mxu0 0.0
    %3356 = vmatpush2.msra.mxu0 0.0
    %3357 = vmatprep.subr.mxu0 0.0
    %3358 = vmatpush2.msra.mxu0 0.0
    %3359 = vmatprep.subr.mxu0 0.0
    %3360 = vmatpush2.msra.mxu0 0.0
    %3361 = vmatprep.subr.mxu0 0.0
    %3362 = vmatpush2.msra.mxu0 0.0
    %3363 = vmatprep.subr.mxu0 0.0
    %3364 = vmatpush2.msra.mxu0 0.0
    %3365 = vmatprep.subr.mxu0 0.0
    %3366 = vmatpush2.msra.mxu0 0.0
    %3367 = vmatprep.subr.mxu0 0.0
    %3368 = vmatpush2.msra.mxu0 0.0
    %3369 = vmatprep.subr.mxu0 0.0
    %3370 = vmatpush2.msra.mxu0 0.0
    %3371 = vmatprep.subr.mxu0 0.0
    %3372 = vmatpush2.msra.mxu0 0.0
    %3373 = vmatprep.subr.mxu0 0.0
    %3374 = vmatpush2.msra.mxu0 0.0
    %3375 = vmatprep.subr.mxu0 0.0
    %3376 = vmatpush2.msra.mxu0 0.0
    %3377 = vmatprep.subr.mxu0 0.0
    %3378 = vmatpush2.msra.mxu0 0.0
    %3379 = vmatprep.subr.mxu0 0.0
    %3380 = vmatpush2.msra.mxu0 0.0
    %3381 = vmatprep.subr.mxu0 0.0
    %3382 = vmatpush2.msra.mxu0 0.0
    %3383 = vmatprep.subr.mxu0 0.0
    %3384 = vmatpush2.msra.mxu0 0.0
    %3385 = vmatprep.mubr.f32.mxu0 0.0
    %3386 = vmatmul.mubr.f32.gmra.mxu0 %v3320
    %v3387 = vpop.f32.mrf.mxu0
    %v3388 = vadd.f32 0.0, %v3387
    %v3389 = vpop.f32.mrf.mxu0
    %v3390 = vadd.f32 0.0, %v3389
    %3391 = vdwg.mxu0
    %3392 = vmatprep.subr.mxu0 0.0
    %3393 = vmatpush1.msra.mxu0 %v2172
    %3394 = vmatprep.subr.mxu0 0.0
    %3395 = vmatpush1.msra.mxu0 %v2169
    %3396 = vmatprep.subr.mxu0 0.0
    %3397 = vmatpush1.msra.mxu0 %v2166
    %3398 = vmatprep.subr.mxu0 0.0
    %3399 = vmatpush1.msra.mxu0 %v2163
    %3400 = vmatprep.subr.mxu0 0.0
    %3401 = vmatpush1.msra.mxu0 %v2160
    %3402 = vmatprep.subr.mxu0 0.0
    %3403 = vmatpush1.msra.mxu0 %v2157
    %3404 = vmatprep.subr.mxu0 0.0
    %3405 = vmatpush1.msra.mxu0 %v2154
    %3406 = vmatprep.subr.mxu0 0.0
    %3407 = vmatpush1.msra.mxu0 %v2151
    %3408 = vmatprep.subr.mxu0 0.0
    %3409 = vmatpush1.msra.mxu0 %v2148
    %3410 = vmatprep.subr.mxu0 0.0
    %3411 = vmatpush1.msra.mxu0 %v2145
    %3412 = vmatprep.subr.mxu0 0.0
    %3413 = vmatpush1.msra.mxu0 %v2142
    %3414 = vmatprep.subr.mxu0 0.0
    %3415 = vmatpush1.msra.mxu0 %v2139
    %3416 = vmatprep.subr.mxu0 0.0
    %3417 = vmatpush1.msra.mxu0 %v2136
    %3418 = vmatprep.subr.mxu0 0.0
    %3419 = vmatpush1.msra.mxu0 %v2133
    %3420 = vmatprep.subr.mxu0 0.0
    %3421 = vmatpush1.msra.mxu0 %v2130
    %3422 = vmatprep.subr.mxu0 0.0
    %3423 = vmatpush1.msra.mxu0 %v2127
    %3424 = vmatprep.subr.mxu0 0.0
    %3425 = vmatpush2.msra.mxu0 0.0
    %3426 = vmatprep.subr.mxu0 0.0
    %3427 = vmatpush2.msra.mxu0 0.0
    %3428 = vmatprep.subr.mxu0 0.0
    %3429 = vmatpush2.msra.mxu0 0.0
    %3430 = vmatprep.subr.mxu0 0.0
    %3431 = vmatpush2.msra.mxu0 0.0
    %3432 = vmatprep.subr.mxu0 0.0
    %3433 = vmatpush2.msra.mxu0 0.0
    %3434 = vmatprep.subr.mxu0 0.0
    %3435 = vmatpush2.msra.mxu0 0.0
    %3436 = vmatprep.subr.mxu0 0.0
    %3437 = vmatpush2.msra.mxu0 0.0
    %3438 = vmatprep.subr.mxu0 0.0
    %3439 = vmatpush2.msra.mxu0 0.0
    %3440 = vmatprep.subr.mxu0 0.0
    %3441 = vmatpush2.msra.mxu0 0.0
    %3442 = vmatprep.subr.mxu0 0.0
    %3443 = vmatpush2.msra.mxu0 0.0
    %3444 = vmatprep.subr.mxu0 0.0
    %3445 = vmatpush2.msra.mxu0 0.0
    %3446 = vmatprep.subr.mxu0 0.0
    %3447 = vmatpush2.msra.mxu0 0.0
    %3448 = vmatprep.subr.mxu0 0.0
    %3449 = vmatpush2.msra.mxu0 0.0
    %3450 = vmatprep.subr.mxu0 0.0
    %3451 = vmatpush2.msra.mxu0 0.0
    %3452 = vmatprep.subr.mxu0 0.0
    %3453 = vmatpush2.msra.mxu0 0.0
    %3454 = vmatprep.subr.mxu0 0.0
    %3455 = vmatpush2.msra.mxu0 0.0
    %3456 = vmatprep.mubr.f32.mxu0 0.0
    %3457 = vmatmul.mubr.f32.gmra.mxu0 %v3320
    %v3458 = vpop.f32.mrf.mxu0
    %v3459 = vadd.f32 0.0, %v3458
    %v3460 = vpop.f32.mrf.mxu0
    %3461 = vdwg.mxu0
    %v3462 = vadd.f32 %v2016, %v3388
    %v3463 = vxor.u32 %v3462, 2147483648
    %v3464 = vmul.f32 %v3463, 1.442695
    %v3465 = vpow.pop %v3464
    %v3466 = vadd.f32 %v3465, 1.0
    %v3467 = vrcp.pop %v3466
    %v3468 = vmul.f32 1.0, %v3467
    %v3469 = vadd.f32 %v2018, %v3390
    %v3470 = vxor.u32 %v3469, 2147483648
    %v3471 = vmul.f32 %v3470, 1.442695
    %v3472 = vpow.pop %v3471
    %v3473 = vadd.f32 %v3472, 1.0
    %v3474 = vrcp.pop %v3473
    %v3475 = vmul.f32 1.0, %v3474
    %v3476 = vadd.f32 %v3459, %v2178
    %v3477 = vmul.f32 %v3468, %v3476
    %v3478 = vadd.f32 %v2122, %v3477
    %v3479 = vtanh.pop %v3478
    %v3480 = vsub.f32 1.0, %v3475
    %v3481 = vmul.f32 %v3480, %v3479
    %v3482 = vmul.f32 %v3475, %v3320
    %v3483 = vadd.f32 %v3481, %v3482
    %v3484 = vld [vmem:[%s10] sm:$0xff]
    %v3485 = vld [vmem:[%s10 + $0x8] sm:$0xff]
    %v3486 = vld [vmem:[%s10 + $0x10] sm:$0xff]
    %v3487 = vld [vmem:[%s10 + $0x18] sm:$0xff]
    %v3488 = vld [vmem:[%s10 + $0x20] sm:$0xff]
    %v3489 = vld [vmem:[%s10 + $0x28] sm:$0xff]
    %v3490 = vld [vmem:[%s10 + $0x30] sm:$0xff]
    %v3491 = vld [vmem:[%s10 + $0x38] sm:$0xff]
    %v3492 = vld [vmem:[%s10 + $0x40] sm:$0xff]
    %v3493 = vld [vmem:[%s10 + $0x48] sm:$0xff]
    %v3494 = vld [vmem:[%s10 + $0x50] sm:$0xff]
    %v3495 = vld [vmem:[%s10 + $0x58] sm:$0xff]
    %v3496 = vld [vmem:[%s10 + $0x60] sm:$0xff]
    %v3497 = vld [vmem:[%s10 + $0x68] sm:$0xff]
    %v3498 = vld [vmem:[%s10 + $0x70] sm:$0xff]
    %v3499 = vld [vmem:[%s10 + $0x78] sm:$0xff]
    %v3500 = vld [vmem:[%s10 + $0x80] sm:$0xff]
    %v3501 = vld [vmem:[%s10 + $0x88] sm:$0xff]
    %v3502 = vld [vmem:[%s10 + $0x90] sm:$0xff]
    %v3503 = vld [vmem:[%s10 + $0x98] sm:$0xff]
    %v3504 = vld [vmem:[%s10 + $0xa0] sm:$0xff]
    %v3505 = vld [vmem:[%s10 + $0xa8] sm:$0xff]
    %v3506 = vld [vmem:[%s10 + $0xb0] sm:$0xff]
    %v3507 = vld [vmem:[%s10 + $0xb8] sm:$0xff]
    %v3508 = vld [vmem:[%s10 + $0xc0] sm:$0xff]
    %v3509 = vld [vmem:[%s10 + $0xc8] sm:$0xff]
    %v3510 = vld [vmem:[%s10 + $0xd0] sm:$0xff]
    %v3511 = vld [vmem:[%s10 + $0xd8] sm:$0xff]
    %v3512 = vld [vmem:[%s10 + $0xe0] sm:$0xff]
    %v3513 = vld [vmem:[%s10 + $0xe8] sm:$0xff]
    %v3514 = vld [vmem:[%s10 + $0xf0] sm:$0xff]
    %v3515 = vld [vmem:[%s10 + $0xf8] sm:$0xff]
    %3516 = vmatprep.subr.mxu0 0.0
    %3517 = vmatpush1.msra.mxu0 %v3515
    %3518 = vmatprep.subr.mxu0 0.0
    %3519 = vmatpush1.msra.mxu0 %v3514
    %3520 = vmatprep.subr.mxu0 0.0
    %3521 = vmatpush1.msra.mxu0 %v3513
    %3522 = vmatprep.subr.mxu0 0.0
    %3523 = vmatpush1.msra.mxu0 %v3512
    %3524 = vmatprep.subr.mxu0 0.0
    %3525 = vmatpush1.msra.mxu0 %v3511
    %3526 = vmatprep.subr.mxu0 0.0
    %3527 = vmatpush1.msra.mxu0 %v3510
    %3528 = vmatprep.subr.mxu0 0.0
    %3529 = vmatpush1.msra.mxu0 %v3509
    %3530 = vmatprep.subr.mxu0 0.0
    %3531 = vmatpush1.msra.mxu0 %v3508
    %3532 = vmatprep.subr.mxu0 0.0
    %3533 = vmatpush1.msra.mxu0 %v3507
    %3534 = vmatprep.subr.mxu0 0.0
    %3535 = vmatpush1.msra.mxu0 %v3506
    %3536 = vmatprep.subr.mxu0 0.0
    %3537 = vmatpush1.msra.mxu0 %v3505
    %3538 = vmatprep.subr.mxu0 0.0
    %3539 = vmatpush1.msra.mxu0 %v3504
    %3540 = vmatprep.subr.mxu0 0.0
    %3541 = vmatpush1.msra.mxu0 %v3503
    %3542 = vmatprep.subr.mxu0 0.0
    %3543 = vmatpush1.msra.mxu0 %v3502
    %3544 = vmatprep.subr.mxu0 0.0
    %3545 = vmatpush1.msra.mxu0 %v3501
    %3546 = vmatprep.subr.mxu0 0.0
    %3547 = vmatpush1.msra.mxu0 %v3500
    %3548 = vmatprep.subr.mxu0 0.0
    %3549 = vmatpush2.msra.mxu0 0.0
    %3550 = vmatprep.subr.mxu0 0.0
    %3551 = vmatpush2.msra.mxu0 0.0
    %3552 = vmatprep.subr.mxu0 0.0
    %3553 = vmatpush2.msra.mxu0 0.0
    %3554 = vmatprep.subr.mxu0 0.0
    %3555 = vmatpush2.msra.mxu0 0.0
    %3556 = vmatprep.subr.mxu0 0.0
    %3557 = vmatpush2.msra.mxu0 0.0
    %3558 = vmatprep.subr.mxu0 0.0
    %3559 = vmatpush2.msra.mxu0 0.0
    %3560 = vmatprep.subr.mxu0 0.0
    %3561 = vmatpush2.msra.mxu0 0.0
    %3562 = vmatprep.subr.mxu0 0.0
    %3563 = vmatpush2.msra.mxu0 0.0
    %3564 = vmatprep.subr.mxu0 0.0
    %3565 = vmatpush2.msra.mxu0 0.0
    %3566 = vmatprep.subr.mxu0 0.0
    %3567 = vmatpush2.msra.mxu0 0.0
    %3568 = vmatprep.subr.mxu0 0.0
    %3569 = vmatpush2.msra.mxu0 0.0
    %3570 = vmatprep.subr.mxu0 0.0
    %3571 = vmatpush2.msra.mxu0 0.0
    %3572 = vmatprep.subr.mxu0 0.0
    %3573 = vmatpush2.msra.mxu0 0.0
    %3574 = vmatprep.subr.mxu0 0.0
    %3575 = vmatpush2.msra.mxu0 0.0
    %3576 = vmatprep.subr.mxu0 0.0
    %3577 = vmatpush2.msra.mxu0 0.0
    %3578 = vmatprep.subr.mxu0 0.0
    %3579 = vmatpush2.msra.mxu0 0.0
    %3580 = vmatprep.mubr.f32.mxu0 0.0
    %3581 = vmatmul.mubr.f32.gmra.mxu0 %v3483
    %v3582 = vpop.f32.mrf.mxu0
    %v3583 = vadd.f32 0.0, %v3582
    %v3584 = vpop.f32.mrf.mxu0
    %3585 = vdwg.mxu0
    %3586 = vmatprep.subr.mxu0 0.0
    %3587 = vmatpush1.msra.mxu0 %v3499
    %3588 = vmatprep.subr.mxu0 0.0
    %3589 = vmatpush1.msra.mxu0 %v3498
    %3590 = vmatprep.subr.mxu0 0.0
    %3591 = vmatpush1.msra.mxu0 %v3497
    %3592 = vmatprep.subr.mxu0 0.0
    %3593 = vmatpush1.msra.mxu0 %v3496
    %3594 = vmatprep.subr.mxu0 0.0
    %3595 = vmatpush1.msra.mxu0 %v3495
    %3596 = vmatprep.subr.mxu0 0.0
    %3597 = vmatpush1.msra.mxu0 %v3494
    %3598 = vmatprep.subr.mxu0 0.0
    %3599 = vmatpush1.msra.mxu0 %v3493
    %3600 = vmatprep.subr.mxu0 0.0
    %3601 = vmatpush1.msra.mxu0 %v3492
    %3602 = vmatprep.subr.mxu0 0.0
    %3603 = vmatpush1.msra.mxu0 %v3491
    %3604 = vmatprep.subr.mxu0 0.0
    %3605 = vmatpush1.msra.mxu0 %v3490
    %3606 = vmatprep.subr.mxu0 0.0
    %3607 = vmatpush1.msra.mxu0 %v3489
    %3608 = vmatprep.subr.mxu0 0.0
    %3609 = vmatpush1.msra.mxu0 %v3488
    %3610 = vmatprep.subr.mxu0 0.0
    %3611 = vmatpush1.msra.mxu0 %v3487
    %3612 = vmatprep.subr.mxu0 0.0
    %3613 = vmatpush1.msra.mxu0 %v3486
    %3614 = vmatprep.subr.mxu0 0.0
    %3615 = vmatpush1.msra.mxu0 %v3485
    %3616 = vmatprep.subr.mxu0 0.0
    %3617 = vmatpush1.msra.mxu0 %v3484
    %3618 = vmatprep.subr.mxu0 0.0
    %3619 = vmatpush2.msra.mxu0 0.0
    %3620 = vmatprep.subr.mxu0 0.0
    %3621 = vmatpush2.msra.mxu0 0.0
    %3622 = vmatprep.subr.mxu0 0.0
    %3623 = vmatpush2.msra.mxu0 0.0
    %3624 = vmatprep.subr.mxu0 0.0
    %3625 = vmatpush2.msra.mxu0 0.0
    %3626 = vmatprep.subr.mxu0 0.0
    %3627 = vmatpush2.msra.mxu0 0.0
    %3628 = vmatprep.subr.mxu0 0.0
    %3629 = vmatpush2.msra.mxu0 0.0
    %3630 = vmatprep.subr.mxu0 0.0
    %3631 = vmatpush2.msra.mxu0 0.0
    %3632 = vmatprep.subr.mxu0 0.0
    %3633 = vmatpush2.msra.mxu0 0.0
    %3634 = vmatprep.subr.mxu0 0.0
    %3635 = vmatpush2.msra.mxu0 0.0
    %3636 = vmatprep.subr.mxu0 0.0
    %3637 = vmatpush2.msra.mxu0 0.0
    %3638 = vmatprep.subr.mxu0 0.0
    %3639 = vmatpush2.msra.mxu0 0.0
    %3640 = vmatprep.subr.mxu0 0.0
    %3641 = vmatpush2.msra.mxu0 0.0
    %3642 = vmatprep.subr.mxu0 0.0
    %3643 = vmatpush2.msra.mxu0 0.0
    %3644 = vmatprep.subr.mxu0 0.0
    %3645 = vmatpush2.msra.mxu0 0.0
    %3646 = vmatprep.subr.mxu0 0.0
    %3647 = vmatpush2.msra.mxu0 0.0
    %3648 = vmatprep.subr.mxu0 0.0
    %3649 = vmatpush2.msra.mxu0 0.0
    %3650 = vmatprep.mubr.f32.mxu0 0.0
    %3651 = vmatmul.mubr.f32.gmra.mxu0 %v1831
    %v3652 = vpop.f32.mrf.mxu0
    %v3653 = vadd.f32 %v3583, %v3652
    %v3654 = vpop.f32.mrf.mxu0
    %3655 = vdwg.mxu0
    %v3656 = vld [vmem:[%s11] sm:$0x1]
    %v3658 = vlaneseq
    %v3659 = vshrl.u32 %v3658, 7
    %v3660 = vsub.s32 0, %v3659
    %v3661 = vrot.slane %v3656, %v3660
    %v3663 = vadd.f32 %v3653, %v3661
    %v3664 = vmax.f32 %v3663, 0.0
    %v3665 = vld [vmem:[%s12] sm:$0xff]
    %v3666 = vld [vmem:[%s12 + $0x8] sm:$0xff]
    %v3667 = vld [vmem:[%s12 + $0x10] sm:$0xff]
    %v3668 = vld [vmem:[%s12 + $0x18] sm:$0xff]
    %v3669 = vld [vmem:[%s12 + $0x20] sm:$0xff]
    %v3670 = vld [vmem:[%s12 + $0x28] sm:$0xff]
    %v3671 = vld [vmem:[%s12 + $0x30] sm:$0xff]
    %v3672 = vld [vmem:[%s12 + $0x38] sm:$0xff]
    %v3673 = vld [vmem:[%s12 + $0x40] sm:$0xff]
    %v3674 = vld [vmem:[%s12 + $0x48] sm:$0xff]
    %v3675 = vld [vmem:[%s12 + $0x50] sm:$0xff]
    %v3676 = vld [vmem:[%s12 + $0x58] sm:$0xff]
    %v3677 = vld [vmem:[%s12 + $0x60] sm:$0xff]
    %v3678 = vld [vmem:[%s12 + $0x68] sm:$0xff]
    %v3679 = vld [vmem:[%s12 + $0x70] sm:$0xff]
    %v3680 = vld [vmem:[%s12 + $0x78] sm:$0xff]
    %v3681 = vld [vmem:[%s13] sm:$0x1]
    %v3683 = vlaneseq
    %v3684 = vshrl.u32 %v3683, 7
    %v3685 = vsub.s32 0, %v3684
    %v3686 = vrot.slane %v3681, %v3685
    %3688 = vmatprep.subr.mxu0 0.0
    %3689 = vmatpush1.msra.mxu0 %v3680
    %3690 = vmatprep.subr.mxu0 0.0
    %3691 = vmatpush1.msra.mxu0 %v3679
    %3692 = vmatprep.subr.mxu0 0.0
    %3693 = vmatpush1.msra.mxu0 %v3678
    %3694 = vmatprep.subr.mxu0 0.0
    %3695 = vmatpush1.msra.mxu0 %v3677
    %3696 = vmatprep.subr.mxu0 0.0
    %3697 = vmatpush1.msra.mxu0 %v3676
    %3698 = vmatprep.subr.mxu0 0.0
    %3699 = vmatpush1.msra.mxu0 %v3675
    %3700 = vmatprep.subr.mxu0 0.0
    %3701 = vmatpush1.msra.mxu0 %v3674
    %3702 = vmatprep.subr.mxu0 0.0
    %3703 = vmatpush1.msra.mxu0 %v3673
    %3704 = vmatprep.subr.mxu0 0.0
    %3705 = vmatpush1.msra.mxu0 %v3672
    %3706 = vmatprep.subr.mxu0 0.0
    %3707 = vmatpush1.msra.mxu0 %v3671
    %3708 = vmatprep.subr.mxu0 0.0
    %3709 = vmatpush1.msra.mxu0 %v3670
    %3710 = vmatprep.subr.mxu0 0.0
    %3711 = vmatpush1.msra.mxu0 %v3669
    %3712 = vmatprep.subr.mxu0 0.0
    %3713 = vmatpush1.msra.mxu0 %v3668
    %3714 = vmatprep.subr.mxu0 0.0
    %3715 = vmatpush1.msra.mxu0 %v3667
    %3716 = vmatprep.subr.mxu0 0.0
    %3717 = vmatpush1.msra.mxu0 %v3666
    %3718 = vmatprep.subr.mxu0 0.0
    %3719 = vmatpush1.msra.mxu0 %v3665
    %3720 = vmatprep.subr.mxu0 0.0
    %3721 = vmatpush2.msra.mxu0 0.0
    %3722 = vmatprep.subr.mxu0 0.0
    %3723 = vmatpush2.msra.mxu0 0.0
    %3724 = vmatprep.subr.mxu0 0.0
    %3725 = vmatpush2.msra.mxu0 0.0
    %3726 = vmatprep.subr.mxu0 0.0
    %3727 = vmatpush2.msra.mxu0 0.0
    %3728 = vmatprep.subr.mxu0 0.0
    %3729 = vmatpush2.msra.mxu0 0.0
    %3730 = vmatprep.subr.mxu0 0.0
    %3731 = vmatpush2.msra.mxu0 0.0
    %3732 = vmatprep.subr.mxu0 0.0
    %3733 = vmatpush2.msra.mxu0 0.0
    %3734 = vmatprep.subr.mxu0 0.0
    %3735 = vmatpush2.msra.mxu0 0.0
    %3736 = vmatprep.subr.mxu0 0.0
    %3737 = vmatpush2.msra.mxu0 0.0
    %3738 = vmatprep.subr.mxu0 0.0
    %3739 = vmatpush2.msra.mxu0 0.0
    %3740 = vmatprep.subr.mxu0 0.0
    %3741 = vmatpush2.msra.mxu0 0.0
    %3742 = vmatprep.subr.mxu0 0.0
    %3743 = vmatpush2.msra.mxu0 0.0
    %3744 = vmatprep.subr.mxu0 0.0
    %3745 = vmatpush2.msra.mxu0 0.0
    %3746 = vmatprep.subr.mxu0 0.0
    %3747 = vmatpush2.msra.mxu0 0.0
    %3748 = vmatprep.subr.mxu0 0.0
    %3749 = vmatpush2.msra.mxu0 0.0
    %3750 = vmatprep.subr.mxu0 0.0
    %3751 = vmatpush2.msra.mxu0 0.0
    %3752 = vmatprep.mubr.f32.mxu0 0.0
    %3753 = vmatmul.mubr.f32.gmra.mxu0 %v3664
    %v3754 = vpop.f32.mrf.mxu0
    %v3755 = vadd.f32 %v3686, %v3754
    %v3756 = vpop.f32.mrf.mxu0
    %3757 = vdwg.mxu0
    %vm3758 = vcmask 33792
    %3759 = vst.msk [vmem:[#allocation3] sm:$0x3] %vm3758, %v3755
    // Predicated region
    $region58: #{gru_module_forward.1} parent=1 // pred_check
      _
    $region59: #{gru_module_forward.1} parent=1 // pred_check_branch
      %3761 = sbr.rel (0) target = $region61
    $region60: #{gru_module_forward.1} parent=1 // pred_region
      %s3763 = ssub.s32 32, 32
      %3764 = vsyncadd [#allocation4], %s3763
      %s3766 = sshll.u32 [#allocation3], 4
      %s3767 = int_to_ptr.vmem [resolvable:$true] %s3766
      %3769 = dma.vmem_to_hbm [thread:$0]  %s3767, 32, %s14, [#allocation4]
    $region61: #{gru_module_forward.1} parent=1 // pred_fallthru
      _
    // Predicated region
    $region62: #{gru_module_forward.1} parent=1 // pred_check
      _
    $region63: #{gru_module_forward.1} parent=1 // pred_check_branch
      %3771 = sbr.rel (0) target = $region65
    $region64: #{gru_module_forward.1} parent=1 // pred_region
      %3772 = dma.done [#allocation4], 32
    $region65: #{gru_module_forward.1} parent=1 // pred_fallthru
      _
    %3773 = vsyncpa [#allocation4], 1

</llo_original>
